<compile_context>
chip_gen: v5e
topology: v5e:2x2
jax: 0.10.0
libtpu: 0.0.40
codegen_flags: <defaults>
</compile_context>

<pallas_src>
import jax
import jax.numpy as jnp
from jax import lax
from jax.experimental import pallas as pl
from jax.experimental.pallas import tpu as pltpu

EPS = 1e-5  # nn.InstanceNorm2d default


def _reflect_pad_into(pad_ref, x, H, W):
    """Write ReflectionPad2d(1) of x (H, W, C) into pad_ref (H+2, W+2, C)."""
    pad_ref[1:H + 1, 1:W + 1, :] = x                        # interior
    pad_ref[0:1, 1:W + 1, :] = x[1:2]                       # top    <- row 1
    pad_ref[H + 1:H + 2, 1:W + 1, :] = x[H - 2:H - 1]       # bottom <- row H-2
    # left / right columns (also fills the corners = double reflection)
    pad_ref[:, 0:1, :] = pad_ref[:, 2:3, :]                 # left   <- orig col 1
    pad_ref[:, W + 1:W + 2, :] = pad_ref[:, W - 1:W, :]     # right  <- orig col W-2


def _conv3x3_inorm(pad_ref, w_ref, H, W, C, relu):
    """3x3 VALID conv over the padded scratch (9 MXU taps, f32 accum) + IN.

    Bias is intentionally omitted: InstanceNorm(affine=False) subtracts the
    per-channel mean, which exactly cancels any per-channel constant.
    Returns (H*W, C) float32 (ReLU applied if `relu`).
    """
    xp = pad_ref[...]                                       # (H+2, W+2, C) f32
    acc = jnp.zeros((H * W, C), jnp.float32)
    for dy in range(3):
        for dx in range(3):
            patch = xp[dy:dy + H, dx:dx + W, :].reshape(H * W, C)
            acc = acc + jnp.dot(patch, w_ref[dy, dx].astype(jnp.float32),
                                preferred_element_type=jnp.float32)
    # one-pass statistics: var = E[x^2] - mean^2 (f32; clamp tiny negatives)
    inv_n = 1.0 / (H * W)
    mean = jnp.sum(acc, axis=0, keepdims=True) * inv_n
    ex2 = jnp.sum(acc * acc, axis=0, keepdims=True) * inv_n
    var = jnp.maximum(ex2 - mean * mean, 0.0)
    y = (acc - mean) * lax.rsqrt(var + EPS)
    if relu:
        y = jnp.maximum(y, 0.0)
    return y


def resnet_block_kernel(x_ref, w1_ref, w2_ref, o_ref, pad_ref):
    """Fused per-sample ResnetBlock: conv1+IN+ReLU -> conv2+IN -> +x."""
    _, H, W, C = o_ref.shape
    x = x_ref[0].astype(jnp.float32)                        # (H, W, C)

    # ---- conv1 + instance norm + ReLU ----
    _reflect_pad_into(pad_ref, x, H, W)
    h = _conv3x3_inorm(pad_ref, w1_ref, H, W, C, relu=True)

    # ---- conv2 + instance norm + residual (h never leaves VMEM) ----
    _reflect_pad_into(pad_ref, h.reshape(H, W, C), H, W)
    y = _conv3x3_inorm(pad_ref, w2_ref, H, W, C, relu=False)

    out = y.reshape(H, W, C) + x
    o_ref[...] = out.reshape(1, H, W, C).astype(o_ref.dtype)


def resnet_block(x_nchw, w1, b1, w2, b2):
    """ResnetBlock forward: out = x + conv_block(x). NCHW in/out like PyTorch.

    b1/b2 accepted for parity with Conv2d(bias=True) but unused: a per-channel
    bias is a mathematical no-op under InstanceNorm2d(affine=False).
    """
    del b1, b2
    N, C, H, W = x_nchw.shape
    x = jnp.transpose(x_nchw, (0, 2, 3, 1))                 # NHWC
    # TODO(synk): if the surrounding model stays NHWC, drop these transposes.

    act_spec = pl.BlockSpec((1, H, W, C), lambda n: (n, 0, 0, 0))
    w_spec = pl.BlockSpec((3, 3, C, C), lambda n: (0, 0, 0, 0))

    out = pl.pallas_call(
        resnet_block_kernel,
        out_shape=jax.ShapeDtypeStruct((N, H, W, C), x.dtype),
        grid=(N,),
        in_specs=[act_spec, w_spec, w_spec],
        out_specs=act_spec,
        scratch_shapes=[pltpu.VMEM((H + 2, W + 2, C), jnp.float32)],
        compiler_params=pltpu.CompilerParams(
            dimension_semantics=("parallel",),              # megacore over batch
            vmem_limit_bytes=60 * 1024 * 1024),             # > default scoped limit,
                                                            # <= physical on v5e/v6e/v7x
    )(x, w1, w2)

    return jnp.transpose(out, (0, 3, 1, 2))                 # back to NCHW


# -------------------- pure-JAX reference for verification --------------------
def _ref_conv3x3(x_nhwc, w, b):
    xp = jnp.pad(x_nhwc, ((0, 0), (1, 1), (1, 1), (0, 0)), mode="reflect")
    y = lax.conv_general_dilated(
        xp, w, window_strides=(1, 1), padding="VALID",
        dimension_numbers=("NHWC", "HWIO", "NHWC"))
    return y + b.reshape(1, 1, 1, -1)


def _ref_inorm(y):
    mean = jnp.mean(y, axis=(1, 2), keepdims=True)
    var = jnp.mean((y - mean) ** 2, axis=(1, 2), keepdims=True)
    return (y - mean) * lax.rsqrt(var + EPS)


def resnet_block_ref(x_nchw, w1, b1, w2, b2):
    x = jnp.transpose(x_nchw, (0, 2, 3, 1))
    h = jnp.maximum(_ref_inorm(_ref_conv3x3(x, w1, b1)), 0.0)
    h = _ref_inorm(_ref_conv3x3(h, w2, b2))
    return jnp.transpose(h + x, (0, 3, 1, 2))


if __name__ == "__main__":
    N, C, H, W = 2, 4, 16, 16
    key = jax.random.PRNGKey(0)
    kx, k1, k2, k3, k4 = jax.random.split(key, 5)

    x = jax.random.normal(kx, (N, C, H, W), dtype=jnp.float32)
    # Conv2d(dim, dim, kernel_size=3, bias=True) weights, stored as HWIO.
    w1 = jax.random.normal(k1, (3, 3, C, C), dtype=jnp.float32) * 0.1
    b1 = jax.random.normal(k2, (C,), dtype=jnp.float32) * 0.1
    w2 = jax.random.normal(k3, (3, 3, C, C), dtype=jnp.float32) * 0.1
    b2 = jax.random.normal(k4, (C,), dtype=jnp.float32) * 0.1

    out = jax.block_until_ready(resnet_block(x, w1, b1, w2, b2))
    ref = jax.block_until_ready(resnet_block_ref(x, w1, b1, w2, b2))

    assert out.shape == (N, C, H, W), out.shape
    assert jnp.allclose(out, ref, rtol=1e-4, atol=1e-4), (
        float(jnp.max(jnp.abs(out - ref))))
    print("KERNEL_OK")
</pallas_src>

<mosaic_0001>
module attributes {stable_mosaic.version = 11 : i64} {
  func.func @resnet_block_kernel(%arg0: i32, %arg1: memref<1x16x16x4xf32, #tpu.memory_space<vmem>>, %arg2: memref<3x3x4x4xf32, #tpu.memory_space<vmem>>, %arg3: memref<3x3x4x4xf32, #tpu.memory_space<vmem>>, %arg4: memref<1x16x16x4xf32, #tpu.memory_space<vmem>>, %arg5: memref<18x18x4xf32, #tpu.memory_space<vmem>>) attributes {dimension_semantics = [#tpu.dimension_semantics<parallel>], iteration_bounds = array<i64: 2>, scalar_prefetch = 0 : i64, scratch_operands = 1 : i64, tpu.core_type = #tpu.core_type<tc>, window_params = [{transform_indices = @transform_0, window_bounds = array<i64: 1, 16, 16, 4>}, {pipeline_mode = #tpu.pipeline_mode<synchronous>, transform_indices = @transform_1, window_bounds = array<i64: 3, 3, 4, 4>}, {pipeline_mode = #tpu.pipeline_mode<synchronous>, transform_indices = @transform_2, window_bounds = array<i64: 3, 3, 4, 4>}, {transform_indices = @transform_3, window_bounds = array<i64: 1, 16, 16, 4>}]} {
    %c0 = arith.constant 0 : index
    %c0_0 = arith.constant 0 : index
    %c0_1 = arith.constant 0 : index
    %c0_2 = arith.constant 0 : index
    %0 = vector.load %arg1[%c0, %c0_0, %c0_1, %c0_2] : memref<1x16x16x4xf32, #tpu.memory_space<vmem>>, vector<1x16x16x4xf32>
    %1 = vector.shape_cast %0 : vector<1x16x16x4xf32> to vector<16x16x4xf32>
    %c1 = arith.constant 1 : index
    %c1_3 = arith.constant 1 : index
    %c0_4 = arith.constant 0 : index
    %2 = vector.load %arg5[%c1, %c1_3, %c0_4] : memref<18x18x4xf32, #tpu.memory_space<vmem>>, vector<16x16x4xf32>
    tpu.vector_store %arg5[%c1, %c1_3, %c0_4], %1 {strides = array<i32>} : memref<18x18x4xf32, #tpu.memory_space<vmem>>, vector<16x16x4xf32>,
    %3 = vector.extract_strided_slice %1 {offsets = [1, 0, 0], sizes = [1, 16, 4], strides = [1, 1, 1]} : vector<16x16x4xf32> to vector<1x16x4xf32>
    %c0_5 = arith.constant 0 : index
    %c1_6 = arith.constant 1 : index
    %c0_7 = arith.constant 0 : index
    %4 = vector.load %arg5[%c0_5, %c1_6, %c0_7] : memref<18x18x4xf32, #tpu.memory_space<vmem>>, vector<1x16x4xf32>
    tpu.vector_store %arg5[%c0_5, %c1_6, %c0_7], %3 {strides = array<i32>} : memref<18x18x4xf32, #tpu.memory_space<vmem>>, vector<1x16x4xf32>,
    %5 = vector.extract_strided_slice %1 {offsets = [14, 0, 0], sizes = [1, 16, 4], strides = [1, 1, 1]} : vector<16x16x4xf32> to vector<1x16x4xf32>
    %c17 = arith.constant 17 : index
    %c1_8 = arith.constant 1 : index
    %c0_9 = arith.constant 0 : index
    %6 = vector.load %arg5[%c17, %c1_8, %c0_9] : memref<18x18x4xf32, #tpu.memory_space<vmem>>, vector<1x16x4xf32>
    tpu.vector_store %arg5[%c17, %c1_8, %c0_9], %5 {strides = array<i32>} : memref<18x18x4xf32, #tpu.memory_space<vmem>>, vector<1x16x4xf32>,
    %c0_10 = arith.constant 0 : index
    %c2 = arith.constant 2 : index
    %c0_11 = arith.constant 0 : index
    %7 = vector.load %arg5[%c0_10, %c2, %c0_11] : memref<18x18x4xf32, #tpu.memory_space<vmem>>, vector<18x1x4xf32>
    %c0_12 = arith.constant 0 : index
    %c0_13 = arith.constant 0 : index
    %c0_14 = arith.constant 0 : index
    %8 = vector.load %arg5[%c0_12, %c0_13, %c0_14] : memref<18x18x4xf32, #tpu.memory_space<vmem>>, vector<18x1x4xf32>
    tpu.vector_store %arg5[%c0_12, %c0_13, %c0_14], %7 {strides = array<i32>} : memref<18x18x4xf32, #tpu.memory_space<vmem>>, vector<18x1x4xf32>,
    %c0_15 = arith.constant 0 : index
    %c15 = arith.constant 15 : index
    %c0_16 = arith.constant 0 : index
    %9 = vector.load %arg5[%c0_15, %c15, %c0_16] : memref<18x18x4xf32, #tpu.memory_space<vmem>>, vector<18x1x4xf32>
    %c0_17 = arith.constant 0 : index
    %c17_18 = arith.constant 17 : index
    %c0_19 = arith.constant 0 : index
    %10 = vector.load %arg5[%c0_17, %c17_18, %c0_19] : memref<18x18x4xf32, #tpu.memory_space<vmem>>, vector<18x1x4xf32>
    tpu.vector_store %arg5[%c0_17, %c17_18, %c0_19], %9 {strides = array<i32>} : memref<18x18x4xf32, #tpu.memory_space<vmem>>, vector<18x1x4xf32>,
    %c0_20 = arith.constant 0 : index
    %c0_21 = arith.constant 0 : index
    %c0_22 = arith.constant 0 : index
    %11 = vector.load %arg5[%c0_20, %c0_21, %c0_22] : memref<18x18x4xf32, #tpu.memory_space<vmem>>, vector<18x18x4xf32>
    %cst = arith.constant 0.000000e+00 : f32
    %12 = vector.broadcast %cst : f32 to vector<256x4xf32>
    %13 = vector.extract_strided_slice %11 {offsets = [0, 0, 0], sizes = [16, 16, 4], strides = [1, 1, 1]} : vector<18x18x4xf32> to vector<16x16x4xf32>
    %14 = vector.shape_cast %13 : vector<16x16x4xf32> to vector<256x4xf32>
    %c0_23 = arith.constant 0 : index
    %c0_24 = arith.constant 0 : index
    %c0_25 = arith.constant 0 : index
    %c0_26 = arith.constant 0 : index
    %15 = vector.load %arg2[%c0_23, %c0_24, %c0_25, %c0_26] : memref<3x3x4x4xf32, #tpu.memory_space<vmem>>, vector<1x1x4x4xf32>
    %16 = vector.shape_cast %15 : vector<1x1x4x4xf32> to vector<4x4xf32>
    %cst_27 = arith.constant dense<0.000000e+00> : vector<256x4xf32>
    %17 = tpu.matmul %14, %16, %cst_27 {dimension_numbers = #tpu.dot_dimension_numbers<[1], [0], [0], [1], [0, 0, 1, 1], [], []>} : vector<256x4xf32>, vector<4x4xf32>, vector<256x4xf32> -> vector<256x4xf32>
    %18 = arith.addf %12, %17 : vector<256x4xf32>
    %19 = vector.extract_strided_slice %11 {offsets = [0, 1, 0], sizes = [16, 16, 4], strides = [1, 1, 1]} : vector<18x18x4xf32> to vector<16x16x4xf32>
    %20 = vector.shape_cast %19 : vector<16x16x4xf32> to vector<256x4xf32>
    %c0_28 = arith.constant 0 : index
    %c1_29 = arith.constant 1 : index
    %c0_30 = arith.constant 0 : index
    %c0_31 = arith.constant 0 : index
    %21 = vector.load %arg2[%c0_28, %c1_29, %c0_30, %c0_31] : memref<3x3x4x4xf32, #tpu.memory_space<vmem>>, vector<1x1x4x4xf32>
    %22 = vector.shape_cast %21 : vector<1x1x4x4xf32> to vector<4x4xf32>
    %cst_32 = arith.constant dense<0.000000e+00> : vector<256x4xf32>
    %23 = tpu.matmul %20, %22, %cst_32 {dimension_numbers = #tpu.dot_dimension_numbers<[1], [0], [0], [1], [0, 0, 1, 1], [], []>} : vector<256x4xf32>, vector<4x4xf32>, vector<256x4xf32> -> vector<256x4xf32>
    %24 = arith.addf %18, %23 : vector<256x4xf32>
    %25 = vector.extract_strided_slice %11 {offsets = [0, 2, 0], sizes = [16, 16, 4], strides = [1, 1, 1]} : vector<18x18x4xf32> to vector<16x16x4xf32>
    %26 = vector.shape_cast %25 : vector<16x16x4xf32> to vector<256x4xf32>
    %c0_33 = arith.constant 0 : index
    %c2_34 = arith.constant 2 : index
    %c0_35 = arith.constant 0 : index
    %c0_36 = arith.constant 0 : index
    %27 = vector.load %arg2[%c0_33, %c2_34, %c0_35, %c0_36] : memref<3x3x4x4xf32, #tpu.memory_space<vmem>>, vector<1x1x4x4xf32>
    %28 = vector.shape_cast %27 : vector<1x1x4x4xf32> to vector<4x4xf32>
    %cst_37 = arith.constant dense<0.000000e+00> : vector<256x4xf32>
    %29 = tpu.matmul %26, %28, %cst_37 {dimension_numbers = #tpu.dot_dimension_numbers<[1], [0], [0], [1], [0, 0, 1, 1], [], []>} : vector<256x4xf32>, vector<4x4xf32>, vector<256x4xf32> -> vector<256x4xf32>
    %30 = arith.addf %24, %29 : vector<256x4xf32>
    %31 = vector.extract_strided_slice %11 {offsets = [1, 0, 0], sizes = [16, 16, 4], strides = [1, 1, 1]} : vector<18x18x4xf32> to vector<16x16x4xf32>
    %32 = vector.shape_cast %31 : vector<16x16x4xf32> to vector<256x4xf32>
    %c1_38 = arith.constant 1 : index
    %c0_39 = arith.constant 0 : index
    %c0_40 = arith.constant 0 : index
    %c0_41 = arith.constant 0 : index
    %33 = vector.load %arg2[%c1_38, %c0_39, %c0_40, %c0_41] : memref<3x3x4x4xf32, #tpu.memory_space<vmem>>, vector<1x1x4x4xf32>
    %34 = vector.shape_cast %33 : vector<1x1x4x4xf32> to vector<4x4xf32>
    %cst_42 = arith.constant dense<0.000000e+00> : vector<256x4xf32>
    %35 = tpu.matmul %32, %34, %cst_42 {dimension_numbers = #tpu.dot_dimension_numbers<[1], [0], [0], [1], [0, 0, 1, 1], [], []>} : vector<256x4xf32>, vector<4x4xf32>, vector<256x4xf32> -> vector<256x4xf32>
    %36 = arith.addf %30, %35 : vector<256x4xf32>
    %37 = vector.extract_strided_slice %11 {offsets = [1, 1, 0], sizes = [16, 16, 4], strides = [1, 1, 1]} : vector<18x18x4xf32> to vector<16x16x4xf32>
    %38 = vector.shape_cast %37 : vector<16x16x4xf32> to vector<256x4xf32>
    %c1_43 = arith.constant 1 : index
    %c1_44 = arith.constant 1 : index
    %c0_45 = arith.constant 0 : index
    %c0_46 = arith.constant 0 : index
    %39 = vector.load %arg2[%c1_43, %c1_44, %c0_45, %c0_46] : memref<3x3x4x4xf32, #tpu.memory_space<vmem>>, vector<1x1x4x4xf32>
    %40 = vector.shape_cast %39 : vector<1x1x4x4xf32> to vector<4x4xf32>
    %cst_47 = arith.constant dense<0.000000e+00> : vector<256x4xf32>
    %41 = tpu.matmul %38, %40, %cst_47 {dimension_numbers = #tpu.dot_dimension_numbers<[1], [0], [0], [1], [0, 0, 1, 1], [], []>} : vector<256x4xf32>, vector<4x4xf32>, vector<256x4xf32> -> vector<256x4xf32>
    %42 = arith.addf %36, %41 : vector<256x4xf32>
    %43 = vector.extract_strided_slice %11 {offsets = [1, 2, 0], sizes = [16, 16, 4], strides = [1, 1, 1]} : vector<18x18x4xf32> to vector<16x16x4xf32>
    %44 = vector.shape_cast %43 : vector<16x16x4xf32> to vector<256x4xf32>
    %c1_48 = arith.constant 1 : index
    %c2_49 = arith.constant 2 : index
    %c0_50 = arith.constant 0 : index
    %c0_51 = arith.constant 0 : index
    %45 = vector.load %arg2[%c1_48, %c2_49, %c0_50, %c0_51] : memref<3x3x4x4xf32, #tpu.memory_space<vmem>>, vector<1x1x4x4xf32>
    %46 = vector.shape_cast %45 : vector<1x1x4x4xf32> to vector<4x4xf32>
    %cst_52 = arith.constant dense<0.000000e+00> : vector<256x4xf32>
    %47 = tpu.matmul %44, %46, %cst_52 {dimension_numbers = #tpu.dot_dimension_numbers<[1], [0], [0], [1], [0, 0, 1, 1], [], []>} : vector<256x4xf32>, vector<4x4xf32>, vector<256x4xf32> -> vector<256x4xf32>
    %48 = arith.addf %42, %47 : vector<256x4xf32>
    %49 = vector.extract_strided_slice %11 {offsets = [2, 0, 0], sizes = [16, 16, 4], strides = [1, 1, 1]} : vector<18x18x4xf32> to vector<16x16x4xf32>
    %50 = vector.shape_cast %49 : vector<16x16x4xf32> to vector<256x4xf32>
    %c2_53 = arith.constant 2 : index
    %c0_54 = arith.constant 0 : index
    %c0_55 = arith.constant 0 : index
    %c0_56 = arith.constant 0 : index
    %51 = vector.load %arg2[%c2_53, %c0_54, %c0_55, %c0_56] : memref<3x3x4x4xf32, #tpu.memory_space<vmem>>, vector<1x1x4x4xf32>
    %52 = vector.shape_cast %51 : vector<1x1x4x4xf32> to vector<4x4xf32>
    %cst_57 = arith.constant dense<0.000000e+00> : vector<256x4xf32>
    %53 = tpu.matmul %50, %52, %cst_57 {dimension_numbers = #tpu.dot_dimension_numbers<[1], [0], [0], [1], [0, 0, 1, 1], [], []>} : vector<256x4xf32>, vector<4x4xf32>, vector<256x4xf32> -> vector<256x4xf32>
    %54 = arith.addf %48, %53 : vector<256x4xf32>
    %55 = vector.extract_strided_slice %11 {offsets = [2, 1, 0], sizes = [16, 16, 4], strides = [1, 1, 1]} : vector<18x18x4xf32> to vector<16x16x4xf32>
    %56 = vector.shape_cast %55 : vector<16x16x4xf32> to vector<256x4xf32>
    %c2_58 = arith.constant 2 : index
    %c1_59 = arith.constant 1 : index
    %c0_60 = arith.constant 0 : index
    %c0_61 = arith.constant 0 : index
    %57 = vector.load %arg2[%c2_58, %c1_59, %c0_60, %c0_61] : memref<3x3x4x4xf32, #tpu.memory_space<vmem>>, vector<1x1x4x4xf32>
    %58 = vector.shape_cast %57 : vector<1x1x4x4xf32> to vector<4x4xf32>
    %cst_62 = arith.constant dense<0.000000e+00> : vector<256x4xf32>
    %59 = tpu.matmul %56, %58, %cst_62 {dimension_numbers = #tpu.dot_dimension_numbers<[1], [0], [0], [1], [0, 0, 1, 1], [], []>} : vector<256x4xf32>, vector<4x4xf32>, vector<256x4xf32> -> vector<256x4xf32>
    %60 = arith.addf %54, %59 : vector<256x4xf32>
    %61 = vector.extract_strided_slice %11 {offsets = [2, 2, 0], sizes = [16, 16, 4], strides = [1, 1, 1]} : vector<18x18x4xf32> to vector<16x16x4xf32>
    %62 = vector.shape_cast %61 : vector<16x16x4xf32> to vector<256x4xf32>
    %c2_63 = arith.constant 2 : index
    %c2_64 = arith.constant 2 : index
    %c0_65 = arith.constant 0 : index
    %c0_66 = arith.constant 0 : index
    %63 = vector.load %arg2[%c2_63, %c2_64, %c0_65, %c0_66] : memref<3x3x4x4xf32, #tpu.memory_space<vmem>>, vector<1x1x4x4xf32>
    %64 = vector.shape_cast %63 : vector<1x1x4x4xf32> to vector<4x4xf32>
    %cst_67 = arith.constant dense<0.000000e+00> : vector<256x4xf32>
    %65 = tpu.matmul %62, %64, %cst_67 {dimension_numbers = #tpu.dot_dimension_numbers<[1], [0], [0], [1], [0, 0, 1, 1], [], []>} : vector<256x4xf32>, vector<4x4xf32>, vector<256x4xf32> -> vector<256x4xf32>
    %66 = arith.addf %60, %65 : vector<256x4xf32>
    %cst_68 = arith.constant dense<0.000000e+00> : vector<4xf32>
    %67 = vector.multi_reduction <add>, %66, %cst_68 [0] : vector<256x4xf32> to vector<4xf32>
    %68 = vector.shape_cast %67 : vector<4xf32> to vector<1x4xf32>
    %cst_69 = arith.constant 3.906250e-03 : f32
    %69 = vector.broadcast %cst_69 : f32 to vector<1x4xf32>
    %70 = arith.mulf %68, %69 : vector<1x4xf32>
    %71 = arith.mulf %66, %66 : vector<256x4xf32>
    %cst_70 = arith.constant dense<0.000000e+00> : vector<4xf32>
    %72 = vector.multi_reduction <add>, %71, %cst_70 [0] : vector<256x4xf32> to vector<4xf32>
    %73 = vector.shape_cast %72 : vector<4xf32> to vector<1x4xf32>
    %cst_71 = arith.constant 3.906250e-03 : f32
    %74 = vector.broadcast %cst_71 : f32 to vector<1x4xf32>
    %75 = arith.mulf %73, %74 : vector<1x4xf32>
    %76 = arith.mulf %70, %70 : vector<1x4xf32>
    %77 = arith.subf %75, %76 : vector<1x4xf32>
    %cst_72 = arith.constant 0.000000e+00 : f32
    %78 = vector.broadcast %cst_72 : f32 to vector<1x4xf32>
    %79 = arith.maximumf %77, %78 : vector<1x4xf32>
    %80 = vector.broadcast %70 : vector<1x4xf32> to vector<256x4xf32>
    %81 = arith.subf %66, %80 : vector<256x4xf32>
    %cst_73 = arith.constant 9.99999974E-6 : f32
    %82 = vector.broadcast %cst_73 : f32 to vector<1x4xf32>
    %83 = arith.addf %79, %82 : vector<1x4xf32>
    %84 = math.rsqrt %83 : vector<1x4xf32>
    %85 = vector.broadcast %84 : vector<1x4xf32> to vector<256x4xf32>
    %86 = arith.mulf %81, %85 : vector<256x4xf32>
    %cst_74 = arith.constant 0.000000e+00 : f32
    %87 = vector.broadcast %cst_74 : f32 to vector<256x4xf32>
    %88 = arith.maximumf %86, %87 : vector<256x4xf32>
    %89 = vector.shape_cast %88 : vector<256x4xf32> to vector<16x16x4xf32>
    %c1_75 = arith.constant 1 : index
    %c1_76 = arith.constant 1 : index
    %c0_77 = arith.constant 0 : index
    %90 = vector.load %arg5[%c1_75, %c1_76, %c0_77] : memref<18x18x4xf32, #tpu.memory_space<vmem>>, vector<16x16x4xf32>
    tpu.vector_store %arg5[%c1_75, %c1_76, %c0_77], %89 {strides = array<i32>} : memref<18x18x4xf32, #tpu.memory_space<vmem>>, vector<16x16x4xf32>,
    %91 = vector.extract_strided_slice %89 {offsets = [1, 0, 0], sizes = [1, 16, 4], strides = [1, 1, 1]} : vector<16x16x4xf32> to vector<1x16x4xf32>
    %c0_78 = arith.constant 0 : index
    %c1_79 = arith.constant 1 : index
    %c0_80 = arith.constant 0 : index
    %92 = vector.load %arg5[%c0_78, %c1_79, %c0_80] : memref<18x18x4xf32, #tpu.memory_space<vmem>>, vector<1x16x4xf32>
    tpu.vector_store %arg5[%c0_78, %c1_79, %c0_80], %91 {strides = array<i32>} : memref<18x18x4xf32, #tpu.memory_space<vmem>>, vector<1x16x4xf32>,
    %93 = vector.extract_strided_slice %89 {offsets = [14, 0, 0], sizes = [1, 16, 4], strides = [1, 1, 1]} : vector<16x16x4xf32> to vector<1x16x4xf32>
    %c17_81 = arith.constant 17 : index
    %c1_82 = arith.constant 1 : index
    %c0_83 = arith.constant 0 : index
    %94 = vector.load %arg5[%c17_81, %c1_82, %c0_83] : memref<18x18x4xf32, #tpu.memory_space<vmem>>, vector<1x16x4xf32>
    tpu.vector_store %arg5[%c17_81, %c1_82, %c0_83], %93 {strides = array<i32>} : memref<18x18x4xf32, #tpu.memory_space<vmem>>, vector<1x16x4xf32>,
    %c0_84 = arith.constant 0 : index
    %c2_85 = arith.constant 2 : index
    %c0_86 = arith.constant 0 : index
    %95 = vector.load %arg5[%c0_84, %c2_85, %c0_86] : memref<18x18x4xf32, #tpu.memory_space<vmem>>, vector<18x1x4xf32>
    %c0_87 = arith.constant 0 : index
    %c0_88 = arith.constant 0 : index
    %c0_89 = arith.constant 0 : index
    %96 = vector.load %arg5[%c0_87, %c0_88, %c0_89] : memref<18x18x4xf32, #tpu.memory_space<vmem>>, vector<18x1x4xf32>
    tpu.vector_store %arg5[%c0_87, %c0_88, %c0_89], %95 {strides = array<i32>} : memref<18x18x4xf32, #tpu.memory_space<vmem>>, vector<18x1x4xf32>,
    %c0_90 = arith.constant 0 : index
    %c15_91 = arith.constant 15 : index
    %c0_92 = arith.constant 0 : index
    %97 = vector.load %arg5[%c0_90, %c15_91, %c0_92] : memref<18x18x4xf32, #tpu.memory_space<vmem>>, vector<18x1x4xf32>
    %c0_93 = arith.constant 0 : index
    %c17_94 = arith.constant 17 : index
    %c0_95 = arith.constant 0 : index
    %98 = vector.load %arg5[%c0_93, %c17_94, %c0_95] : memref<18x18x4xf32, #tpu.memory_space<vmem>>, vector<18x1x4xf32>
    tpu.vector_store %arg5[%c0_93, %c17_94, %c0_95], %97 {strides = array<i32>} : memref<18x18x4xf32, #tpu.memory_space<vmem>>, vector<18x1x4xf32>,
    %c0_96 = arith.constant 0 : index
    %c0_97 = arith.constant 0 : index
    %c0_98 = arith.constant 0 : index
    %99 = vector.load %arg5[%c0_96, %c0_97, %c0_98] : memref<18x18x4xf32, #tpu.memory_space<vmem>>, vector<18x18x4xf32>
    %cst_99 = arith.constant 0.000000e+00 : f32
    %100 = vector.broadcast %cst_99 : f32 to vector<256x4xf32>
    %101 = vector.extract_strided_slice %99 {offsets = [0, 0, 0], sizes = [16, 16, 4], strides = [1, 1, 1]} : vector<18x18x4xf32> to vector<16x16x4xf32>
    %102 = vector.shape_cast %101 : vector<16x16x4xf32> to vector<256x4xf32>
    %c0_100 = arith.constant 0 : index
    %c0_101 = arith.constant 0 : index
    %c0_102 = arith.constant 0 : index
    %c0_103 = arith.constant 0 : index
    %103 = vector.load %arg3[%c0_100, %c0_101, %c0_102, %c0_103] : memref<3x3x4x4xf32, #tpu.memory_space<vmem>>, vector<1x1x4x4xf32>
    %104 = vector.shape_cast %103 : vector<1x1x4x4xf32> to vector<4x4xf32>
    %cst_104 = arith.constant dense<0.000000e+00> : vector<256x4xf32>
    %105 = tpu.matmul %102, %104, %cst_104 {dimension_numbers = #tpu.dot_dimension_numbers<[1], [0], [0], [1], [0, 0, 1, 1], [], []>} : vector<256x4xf32>, vector<4x4xf32>, vector<256x4xf32> -> vector<256x4xf32>
    %106 = arith.addf %100, %105 : vector<256x4xf32>
    %107 = vector.extract_strided_slice %99 {offsets = [0, 1, 0], sizes = [16, 16, 4], strides = [1, 1, 1]} : vector<18x18x4xf32> to vector<16x16x4xf32>
    %108 = vector.shape_cast %107 : vector<16x16x4xf32> to vector<256x4xf32>
    %c0_105 = arith.constant 0 : index
    %c1_106 = arith.constant 1 : index
    %c0_107 = arith.constant 0 : index
    %c0_108 = arith.constant 0 : index
    %109 = vector.load %arg3[%c0_105, %c1_106, %c0_107, %c0_108] : memref<3x3x4x4xf32, #tpu.memory_space<vmem>>, vector<1x1x4x4xf32>
    %110 = vector.shape_cast %109 : vector<1x1x4x4xf32> to vector<4x4xf32>
    %cst_109 = arith.constant dense<0.000000e+00> : vector<256x4xf32>
    %111 = tpu.matmul %108, %110, %cst_109 {dimension_numbers = #tpu.dot_dimension_numbers<[1], [0], [0], [1], [0, 0, 1, 1], [], []>} : vector<256x4xf32>, vector<4x4xf32>, vector<256x4xf32> -> vector<256x4xf32>
    %112 = arith.addf %106, %111 : vector<256x4xf32>
    %113 = vector.extract_strided_slice %99 {offsets = [0, 2, 0], sizes = [16, 16, 4], strides = [1, 1, 1]} : vector<18x18x4xf32> to vector<16x16x4xf32>
    %114 = vector.shape_cast %113 : vector<16x16x4xf32> to vector<256x4xf32>
    %c0_110 = arith.constant 0 : index
    %c2_111 = arith.constant 2 : index
    %c0_112 = arith.constant 0 : index
    %c0_113 = arith.constant 0 : index
    %115 = vector.load %arg3[%c0_110, %c2_111, %c0_112, %c0_113] : memref<3x3x4x4xf32, #tpu.memory_space<vmem>>, vector<1x1x4x4xf32>
    %116 = vector.shape_cast %115 : vector<1x1x4x4xf32> to vector<4x4xf32>
    %cst_114 = arith.constant dense<0.000000e+00> : vector<256x4xf32>
    %117 = tpu.matmul %114, %116, %cst_114 {dimension_numbers = #tpu.dot_dimension_numbers<[1], [0], [0], [1], [0, 0, 1, 1], [], []>} : vector<256x4xf32>, vector<4x4xf32>, vector<256x4xf32> -> vector<256x4xf32>
    %118 = arith.addf %112, %117 : vector<256x4xf32>
    %119 = vector.extract_strided_slice %99 {offsets = [1, 0, 0], sizes = [16, 16, 4], strides = [1, 1, 1]} : vector<18x18x4xf32> to vector<16x16x4xf32>
    %120 = vector.shape_cast %119 : vector<16x16x4xf32> to vector<256x4xf32>
    %c1_115 = arith.constant 1 : index
    %c0_116 = arith.constant 0 : index
    %c0_117 = arith.constant 0 : index
    %c0_118 = arith.constant 0 : index
    %121 = vector.load %arg3[%c1_115, %c0_116, %c0_117, %c0_118] : memref<3x3x4x4xf32, #tpu.memory_space<vmem>>, vector<1x1x4x4xf32>
    %122 = vector.shape_cast %121 : vector<1x1x4x4xf32> to vector<4x4xf32>
    %cst_119 = arith.constant dense<0.000000e+00> : vector<256x4xf32>
    %123 = tpu.matmul %120, %122, %cst_119 {dimension_numbers = #tpu.dot_dimension_numbers<[1], [0], [0], [1], [0, 0, 1, 1], [], []>} : vector<256x4xf32>, vector<4x4xf32>, vector<256x4xf32> -> vector<256x4xf32>
    %124 = arith.addf %118, %123 : vector<256x4xf32>
    %125 = vector.extract_strided_slice %99 {offsets = [1, 1, 0], sizes = [16, 16, 4], strides = [1, 1, 1]} : vector<18x18x4xf32> to vector<16x16x4xf32>
    %126 = vector.shape_cast %125 : vector<16x16x4xf32> to vector<256x4xf32>
    %c1_120 = arith.constant 1 : index
    %c1_121 = arith.constant 1 : index
    %c0_122 = arith.constant 0 : index
    %c0_123 = arith.constant 0 : index
    %127 = vector.load %arg3[%c1_120, %c1_121, %c0_122, %c0_123] : memref<3x3x4x4xf32, #tpu.memory_space<vmem>>, vector<1x1x4x4xf32>
    %128 = vector.shape_cast %127 : vector<1x1x4x4xf32> to vector<4x4xf32>
    %cst_124 = arith.constant dense<0.000000e+00> : vector<256x4xf32>
    %129 = tpu.matmul %126, %128, %cst_124 {dimension_numbers = #tpu.dot_dimension_numbers<[1], [0], [0], [1], [0, 0, 1, 1], [], []>} : vector<256x4xf32>, vector<4x4xf32>, vector<256x4xf32> -> vector<256x4xf32>
    %130 = arith.addf %124, %129 : vector<256x4xf32>
    %131 = vector.extract_strided_slice %99 {offsets = [1, 2, 0], sizes = [16, 16, 4], strides = [1, 1, 1]} : vector<18x18x4xf32> to vector<16x16x4xf32>
    %132 = vector.shape_cast %131 : vector<16x16x4xf32> to vector<256x4xf32>
    %c1_125 = arith.constant 1 : index
    %c2_126 = arith.constant 2 : index
    %c0_127 = arith.constant 0 : index
    %c0_128 = arith.constant 0 : index
    %133 = vector.load %arg3[%c1_125, %c2_126, %c0_127, %c0_128] : memref<3x3x4x4xf32, #tpu.memory_space<vmem>>, vector<1x1x4x4xf32>
    %134 = vector.shape_cast %133 : vector<1x1x4x4xf32> to vector<4x4xf32>
    %cst_129 = arith.constant dense<0.000000e+00> : vector<256x4xf32>
    %135 = tpu.matmul %132, %134, %cst_129 {dimension_numbers = #tpu.dot_dimension_numbers<[1], [0], [0], [1], [0, 0, 1, 1], [], []>} : vector<256x4xf32>, vector<4x4xf32>, vector<256x4xf32> -> vector<256x4xf32>
    %136 = arith.addf %130, %135 : vector<256x4xf32>
    %137 = vector.extract_strided_slice %99 {offsets = [2, 0, 0], sizes = [16, 16, 4], strides = [1, 1, 1]} : vector<18x18x4xf32> to vector<16x16x4xf32>
    %138 = vector.shape_cast %137 : vector<16x16x4xf32> to vector<256x4xf32>
    %c2_130 = arith.constant 2 : index
    %c0_131 = arith.constant 0 : index
    %c0_132 = arith.constant 0 : index
    %c0_133 = arith.constant 0 : index
    %139 = vector.load %arg3[%c2_130, %c0_131, %c0_132, %c0_133] : memref<3x3x4x4xf32, #tpu.memory_space<vmem>>, vector<1x1x4x4xf32>
    %140 = vector.shape_cast %139 : vector<1x1x4x4xf32> to vector<4x4xf32>
    %cst_134 = arith.constant dense<0.000000e+00> : vector<256x4xf32>
    %141 = tpu.matmul %138, %140, %cst_134 {dimension_numbers = #tpu.dot_dimension_numbers<[1], [0], [0], [1], [0, 0, 1, 1], [], []>} : vector<256x4xf32>, vector<4x4xf32>, vector<256x4xf32> -> vector<256x4xf32>
    %142 = arith.addf %136, %141 : vector<256x4xf32>
    %143 = vector.extract_strided_slice %99 {offsets = [2, 1, 0], sizes = [16, 16, 4], strides = [1, 1, 1]} : vector<18x18x4xf32> to vector<16x16x4xf32>
    %144 = vector.shape_cast %143 : vector<16x16x4xf32> to vector<256x4xf32>
    %c2_135 = arith.constant 2 : index
    %c1_136 = arith.constant 1 : index
    %c0_137 = arith.constant 0 : index
    %c0_138 = arith.constant 0 : index
    %145 = vector.load %arg3[%c2_135, %c1_136, %c0_137, %c0_138] : memref<3x3x4x4xf32, #tpu.memory_space<vmem>>, vector<1x1x4x4xf32>
    %146 = vector.shape_cast %145 : vector<1x1x4x4xf32> to vector<4x4xf32>
    %cst_139 = arith.constant dense<0.000000e+00> : vector<256x4xf32>
    %147 = tpu.matmul %144, %146, %cst_139 {dimension_numbers = #tpu.dot_dimension_numbers<[1], [0], [0], [1], [0, 0, 1, 1], [], []>} : vector<256x4xf32>, vector<4x4xf32>, vector<256x4xf32> -> vector<256x4xf32>
    %148 = arith.addf %142, %147 : vector<256x4xf32>
    %149 = vector.extract_strided_slice %99 {offsets = [2, 2, 0], sizes = [16, 16, 4], strides = [1, 1, 1]} : vector<18x18x4xf32> to vector<16x16x4xf32>
    %150 = vector.shape_cast %149 : vector<16x16x4xf32> to vector<256x4xf32>
    %c2_140 = arith.constant 2 : index
    %c2_141 = arith.constant 2 : index
    %c0_142 = arith.constant 0 : index
    %c0_143 = arith.constant 0 : index
    %151 = vector.load %arg3[%c2_140, %c2_141, %c0_142, %c0_143] : memref<3x3x4x4xf32, #tpu.memory_space<vmem>>, vector<1x1x4x4xf32>
    %152 = vector.shape_cast %151 : vector<1x1x4x4xf32> to vector<4x4xf32>
    %cst_144 = arith.constant dense<0.000000e+00> : vector<256x4xf32>
    %153 = tpu.matmul %150, %152, %cst_144 {dimension_numbers = #tpu.dot_dimension_numbers<[1], [0], [0], [1], [0, 0, 1, 1], [], []>} : vector<256x4xf32>, vector<4x4xf32>, vector<256x4xf32> -> vector<256x4xf32>
    %154 = arith.addf %148, %153 : vector<256x4xf32>
    %cst_145 = arith.constant dense<0.000000e+00> : vector<4xf32>
    %155 = vector.multi_reduction <add>, %154, %cst_145 [0] : vector<256x4xf32> to vector<4xf32>
    %156 = vector.shape_cast %155 : vector<4xf32> to vector<1x4xf32>
    %cst_146 = arith.constant 3.906250e-03 : f32
    %157 = vector.broadcast %cst_146 : f32 to vector<1x4xf32>
    %158 = arith.mulf %156, %157 : vector<1x4xf32>
    %159 = arith.mulf %154, %154 : vector<256x4xf32>
    %cst_147 = arith.constant dense<0.000000e+00> : vector<4xf32>
    %160 = vector.multi_reduction <add>, %159, %cst_147 [0] : vector<256x4xf32> to vector<4xf32>
    %161 = vector.shape_cast %160 : vector<4xf32> to vector<1x4xf32>
    %cst_148 = arith.constant 3.906250e-03 : f32
    %162 = vector.broadcast %cst_148 : f32 to vector<1x4xf32>
    %163 = arith.mulf %161, %162 : vector<1x4xf32>
    %164 = arith.mulf %158, %158 : vector<1x4xf32>
    %165 = arith.subf %163, %164 : vector<1x4xf32>
    %cst_149 = arith.constant 0.000000e+00 : f32
    %166 = vector.broadcast %cst_149 : f32 to vector<1x4xf32>
    %167 = arith.maximumf %165, %166 : vector<1x4xf32>
    %168 = vector.broadcast %158 : vector<1x4xf32> to vector<256x4xf32>
    %169 = arith.subf %154, %168 : vector<256x4xf32>
    %cst_150 = arith.constant 9.99999974E-6 : f32
    %170 = vector.broadcast %cst_150 : f32 to vector<1x4xf32>
    %171 = arith.addf %167, %170 : vector<1x4xf32>
    %172 = math.rsqrt %171 : vector<1x4xf32>
    %173 = vector.broadcast %172 : vector<1x4xf32> to vector<256x4xf32>
    %174 = arith.mulf %169, %173 : vector<256x4xf32>
    %175 = vector.shape_cast %174 : vector<256x4xf32> to vector<16x16x4xf32>
    %176 = arith.addf %175, %1 : vector<16x16x4xf32>
    %177 = vector.shape_cast %176 : vector<16x16x4xf32> to vector<1x16x16x4xf32>
    %c0_151 = arith.constant 0 : index
    %c0_152 = arith.constant 0 : index
    %c0_153 = arith.constant 0 : index
    %c0_154 = arith.constant 0 : index
    %178 = vector.load %arg4[%c0_151, %c0_152, %c0_153, %c0_154] : memref<1x16x16x4xf32, #tpu.memory_space<vmem>>, vector<1x16x16x4xf32>
    tpu.vector_store %arg4[%c0_151, %c0_152, %c0_153, %c0_154], %177 {strides = array<i32>} : memref<1x16x16x4xf32, #tpu.memory_space<vmem>>, vector<1x16x16x4xf32>,
    return
  }
  func.func @transform_0(%arg0: i32) -> (i32, i32, i32, i32) {
    %c0_i32 = arith.constant 0 : i32
    %c0_i32_0 = arith.constant 0 : i32
    %c0_i32_1 = arith.constant 0 : i32
    %c0_i32_2 = arith.constant 0 : i32
    return %arg0, %c0_i32, %c0_i32_0, %c0_i32_1 : i32, i32, i32, i32
  }
  func.func @transform_1(%arg0: i32) -> (i32, i32, i32, i32) {
    %c0_i32 = arith.constant 0 : i32
    %c0_i32_0 = arith.constant 0 : i32
    %c0_i32_1 = arith.constant 0 : i32
    %c0_i32_2 = arith.constant 0 : i32
    %c0_i32_3 = arith.constant 0 : i32
    return %c0_i32, %c0_i32_0, %c0_i32_1, %c0_i32_2 : i32, i32, i32, i32
  }
  func.func @transform_2(%arg0: i32) -> (i32, i32, i32, i32) {
    %c0_i32 = arith.constant 0 : i32
    %c0_i32_0 = arith.constant 0 : i32
    %c0_i32_1 = arith.constant 0 : i32
    %c0_i32_2 = arith.constant 0 : i32
    %c0_i32_3 = arith.constant 0 : i32
    return %c0_i32, %c0_i32_0, %c0_i32_1, %c0_i32_2 : i32, i32, i32, i32
  }
  func.func @transform_3(%arg0: i32) -> (i32, i32, i32, i32) {
    %c0_i32 = arith.constant 0 : i32
    %c0_i32_0 = arith.constant 0 : i32
    %c0_i32_1 = arith.constant 0 : i32
    %c0_i32_2 = arith.constant 0 : i32
    return %arg0, %c0_i32, %c0_i32_0, %c0_i32_1 : i32, i32, i32, i32
  }
}

</mosaic_0001>

<llo_original>
// kernel: tpu_custom_call.1
$region0: #{tpu_custom_call.1}
  #allocation0 [shape = 'u32[]', space=smem, size = 0x4, offset = 0x4, fixed_abs, tag = 'smem constant byte address 0x4 - core index']
  #allocation1 [shape = 'u32[72,128]{1,0:T(1,128)}', space=vmem, size = 0x9000, scoped, tag = 'internal scratch']
  #allocation2 [shape = 'f32[18,18,4]{2,1,0:T(8,128)}', space=vmem, size = 0x36000, scoped, tag = 'scratch operand']
  %s0 = inlined_call_operand.vmem [shape: f32[2,16,16,4], index: 0, kind: input, shape index: {}]
  %s1 = inlined_call_operand.vmem [shape: f32[3,3,4,4], index: 1, kind: input, shape index: {}]
  %s2 = inlined_call_operand.vmem [shape: f32[3,3,4,4], index: 2, kind: input, shape index: {}]
  %s3 = inlined_call_operand.vmem [shape: f32[2,16,16,4], index: 3, kind: output, shape index: {}]
  %s4 = sld [smem:[#allocation0]]
  $region45: #{tpu_custom_call.1} parent=0
    _
  %s6 = ssub.s32 1, %s4
  %s7 = scalar_select 0, %s6, %s4
  loop: start=0, step=1, limit=4
  $region2: #{tpu_custom_call.1} parent=0 // loop_pre_header
    _
  $region3: #{tpu_custom_call.1} parent=0 // loop_header
    %s9 = sphi 0, %s13
    %p10 = scmp.ge.s32.totalorder %s9, 4
    %s19 = sphi 0, %s21
    %s22 = sphi 0, %s19
    %s23 = sphi 0, %s22
    %s39 = sphi 0, %s23
    %s43 = sphi 0, %s43
    %s45 = sphi 0, %s43
    %s46 = sphi 0, %s45
    %s60 = sphi 0, %s46
    %s64 = sphi 0, %s64
    %s66 = sphi 0, %s64
    %s67 = sphi 0, %s66
    %s81 = sphi 0, %s67
    %s87 = sphi 0, %s89
    %s90 = sphi 0, %s87
    %s91 = sphi 0, %s90
    %s107 = sphi 0, %s91
  $region4: #{tpu_custom_call.1} parent=0 // loop_header_branch
    %12 = sbr.rel (%p10) target = $region8
  $region5: #{tpu_custom_call.1} parent=0 // loop_body
    %s14 = ssub.s32 %s9, 1
    %s15 = ssub.s32 %s9, 2
    %s16 = sadd.s32 %s9, 1
    %s17 = ssub.s32 %s9, %s16
    %p18 = scmp.eq.s32.totalorder %s17, 0
    %s20 = sadd.s32 %s19, 1
    %s21 = scalar_select %p18, %s19, %s20
    %p24 = pneg %p18
    %p25 = scmp.eq.s32.totalorder %s9, 1
    %p26 = por %p24, %p25
    %p27 = scmp.ne.s32.totalorder %s19, %s22
    %p28 = scmp.eq.s32.totalorder %s9, 0
    %p29 = por %p27, %p28
    %p30 = scmp.ne.s32.totalorder %s19, %s22
    %p31 = scmp.eq.s32.totalorder %s14, 1
    %p32 = por %p30, %p31
    %p33 = scmp.ne.s32.totalorder %s22, %s23
    %p34 = scmp.eq.s32.totalorder %s14, 0
    %p35 = por %p33, %p34
    %p36 = scmp.ne.s32.totalorder %s22, %s23
    %p37 = scmp.eq.s32.totalorder %s15, 1
    %p38 = por %p36, %p37
    %p40 = scmp.ne.s32.totalorder %s23, %s39
    %p41 = scmp.eq.s32.totalorder %s15, 0
    %p42 = por %p40, %p41
    %s44 = sadd.s32 %s43, 1
    %p47 = scmp.eq.s32.totalorder %s9, 1
    %p48 = scmp.ne.s32.totalorder %s43, %s45
    %p49 = scmp.eq.s32.totalorder %s9, 0
    %p50 = por %p48, %p49
    %p51 = scmp.ne.s32.totalorder %s43, %s45
    %p52 = scmp.eq.s32.totalorder %s14, 1
    %p53 = por %p51, %p52
    %p54 = scmp.ne.s32.totalorder %s45, %s46
    %p55 = scmp.eq.s32.totalorder %s14, 0
    %p56 = por %p54, %p55
    %p57 = scmp.ne.s32.totalorder %s45, %s46
    %p58 = scmp.eq.s32.totalorder %s15, 1
    %p59 = por %p57, %p58
    %p61 = scmp.ne.s32.totalorder %s46, %s60
    %p62 = scmp.eq.s32.totalorder %s15, 0
    %p63 = por %p61, %p62
    %s65 = sadd.s32 %s64, 1
    %p68 = scmp.eq.s32.totalorder %s9, 1
    %p69 = scmp.ne.s32.totalorder %s64, %s66
    %p70 = scmp.eq.s32.totalorder %s9, 0
    %p71 = por %p69, %p70
    %p72 = scmp.ne.s32.totalorder %s64, %s66
    %p73 = scmp.eq.s32.totalorder %s14, 1
    %p74 = por %p72, %p73
    %p75 = scmp.ne.s32.totalorder %s66, %s67
    %p76 = scmp.eq.s32.totalorder %s14, 0
    %p77 = por %p75, %p76
    %p78 = scmp.ne.s32.totalorder %s66, %s67
    %p79 = scmp.eq.s32.totalorder %s15, 1
    %p80 = por %p78, %p79
    %p82 = scmp.ne.s32.totalorder %s67, %s81
    %p83 = scmp.eq.s32.totalorder %s15, 0
    %p84 = por %p82, %p83
    %s85 = ssub.s32 %s9, %s16
    %p86 = scmp.eq.s32.totalorder %s85, 0
    %s88 = sadd.s32 %s87, 1
    %s89 = scalar_select %p86, %s87, %s88
    %p92 = pneg %p86
    %p93 = scmp.eq.s32.totalorder %s9, 1
    %p94 = por %p92, %p93
    %p95 = scmp.ne.s32.totalorder %s87, %s90
    %p96 = scmp.eq.s32.totalorder %s9, 0
    %p97 = por %p95, %p96
    %p98 = scmp.ne.s32.totalorder %s87, %s90
    %p99 = scmp.eq.s32.totalorder %s14, 1
    %p100 = por %p98, %p99
    %p101 = scmp.ne.s32.totalorder %s90, %s91
    %p102 = scmp.eq.s32.totalorder %s14, 0
    %p103 = por %p101, %p102
    %p104 = scmp.ne.s32.totalorder %s90, %s91
    %p105 = scmp.eq.s32.totalorder %s15, 1
    %p106 = por %p104, %p105
    %p108 = scmp.ne.s32.totalorder %s91, %s107
    %p109 = scmp.eq.s32.totalorder %s15, 0
    %p110 = por %p108, %p109
    %p111 = scmp.le.s32.totalorder 1, %s9
    %p112 = scmp.lt.s32.totalorder %s9, 3
    %p113 = pnand %p111, %p112
    %p114 = pneg %p113
    // Predicated region
    $region9: #{tpu_custom_call.1} parent=5 // pred_check
      _
    $region10: #{tpu_custom_call.1} parent=5 // pred_check_branch
      %116 = sbr.rel (%p113) target = $region12
    $region11: #{tpu_custom_call.1} parent=5 // pred_region
      %s117 = ssub.s32 %s9, 1
      // Predicated region
      $region13: #{tpu_custom_call.1} parent=11 // pred_check
        %p118 = pneg %p56
      $region14: #{tpu_custom_call.1} parent=11 // pred_check_branch
        %120 = sbr.rel (%p118) target = $region16
      $region15: #{tpu_custom_call.1} parent=11 // pred_region
        _
      $region16: #{tpu_custom_call.1} parent=11 // pred_fallthru
        _
      // Predicated region
      $region17: #{tpu_custom_call.1} parent=11 // pred_check
        %p121 = pneg %p77
      $region18: #{tpu_custom_call.1} parent=11 // pred_check_branch
        %123 = sbr.rel (%p121) target = $region20
      $region19: #{tpu_custom_call.1} parent=11 // pred_region
        _
      $region20: #{tpu_custom_call.1} parent=11 // pred_fallthru
        _
    $region12: #{tpu_custom_call.1} parent=5 // pred_fallthru
      _
    %p124 = scmp.lt.s32.totalorder %s9, 2
    // Predicated region
    $region21: #{tpu_custom_call.1} parent=5 // pred_check
      %p125 = pneg %p124
    $region22: #{tpu_custom_call.1} parent=5 // pred_check_branch
      %127 = sbr.rel (%p125) target = $region24
    $region23: #{tpu_custom_call.1} parent=5 // pred_region
      // Predicated region
      $region25: #{tpu_custom_call.1} parent=23 // pred_check
        %p128 = pneg %p29
      $region26: #{tpu_custom_call.1} parent=23 // pred_check_branch
        %130 = sbr.rel (%p128) target = $region28
      $region27: #{tpu_custom_call.1} parent=23 // pred_region
        %p131 = scmp.lt.s32.totalorder %s9, 1
        %s132 = scalar_select %p131, %s9, 1
        %s133 = smul.addr %s132, 32
        %s134 = smul.addr %s133, 8
        %s135 = scalar_lea.vmem %s0, %s134
      $region28: #{tpu_custom_call.1} parent=23 // pred_fallthru
        _
    $region24: #{tpu_custom_call.1} parent=5 // pred_fallthru
      _
    %p136 = scmp.le.s32.totalorder 1, %s9
    %p137 = scmp.lt.s32.totalorder %s9, 3
    %p138 = pnand %p136, %p137
    %p139 = pneg %p138
    // Predicated region
    $region29: #{tpu_custom_call.1} parent=5 // pred_check
      _
    $region30: #{tpu_custom_call.1} parent=5 // pred_check_branch
      %141 = sbr.rel (%p138) target = $region32
    $region31: #{tpu_custom_call.1} parent=5 // pred_region
      %s142 = ssub.s32 %s9, 1
      %p143 = scmp.lt.s32.totalorder %s14, 1
      %s144 = scalar_select %p143, %s14, 1
      %s145 = smul.addr %s144, 32
      %s146 = smul.addr %s145, 8
      %s147 = scalar_lea.vmem %s0, %s146
      %p148 = pneg %p35
      %p149 = pneg %p32
      %p150 = pneg %p56
      %p151 = pneg %p53
      %p152 = pneg %p77
      %p153 = pneg %p74
      %p154 = pneg %p103
      %p155 = pneg %p100
      %p156 = scmp.lt.s32.totalorder %s14, 1
      %s157 = scalar_select %p156, %s14, 1
      %s158 = smul.addr %s157, 32
      %s159 = smul.addr %s158, 8
      %s160 = scalar_lea.vmem %s3, %s159
      %p161 = scmp.lt.s32.totalorder %s14, 1
      %s162 = scalar_select %p161, %s14, 1
      %s163 = smul.addr %s162, 32
      %s164 = smul.addr %s163, 8
      %s165 = scalar_lea.vmem %s0, %s164
      %p166 = scmp.lt.s32.totalorder %s14, 1
      %s167 = scalar_select %p166, %s14, 1
      %s168 = smul.addr %s167, 32
      %s169 = smul.addr %s168, 8
      %s170 = scalar_lea.vmem %s3, %s169
      %v171 = vld [vmem:[%s165] sm:$0xff]
      %v172 = vld [vmem:[%s165 + $0x8] sm:$0xff]
      %v173 = vld [vmem:[%s165 + $0x10] sm:$0xff]
      %v174 = vld [vmem:[%s165 + $0x18] sm:$0xff]
      %v175 = vld [vmem:[%s165 + $0x20] sm:$0xff]
      %v176 = vld [vmem:[%s165 + $0x28] sm:$0xff]
      %v177 = vld [vmem:[%s165 + $0x30] sm:$0xff]
      %v178 = vld [vmem:[%s165 + $0x38] sm:$0xff]
      %v179 = vld [vmem:[%s165 + $0x40] sm:$0xff]
      %v180 = vld [vmem:[%s165 + $0x48] sm:$0xff]
      %v181 = vld [vmem:[%s165 + $0x50] sm:$0xff]
      %v182 = vld [vmem:[%s165 + $0x58] sm:$0xff]
      %v183 = vld [vmem:[%s165 + $0x60] sm:$0xff]
      %v184 = vld [vmem:[%s165 + $0x68] sm:$0xff]
      %v185 = vld [vmem:[%s165 + $0x70] sm:$0xff]
      %v186 = vld [vmem:[%s165 + $0x78] sm:$0xff]
      %v187 = vld [vmem:[%s165 + $0x80] sm:$0xff]
      %v188 = vld [vmem:[%s165 + $0x88] sm:$0xff]
      %v189 = vld [vmem:[%s165 + $0x90] sm:$0xff]
      %v190 = vld [vmem:[%s165 + $0x98] sm:$0xff]
      %v191 = vld [vmem:[%s165 + $0xa0] sm:$0xff]
      %v192 = vld [vmem:[%s165 + $0xa8] sm:$0xff]
      %v193 = vld [vmem:[%s165 + $0xb0] sm:$0xff]
      %v194 = vld [vmem:[%s165 + $0xb8] sm:$0xff]
      %v195 = vld [vmem:[%s165 + $0xc0] sm:$0xff]
      %v196 = vld [vmem:[%s165 + $0xc8] sm:$0xff]
      %v197 = vld [vmem:[%s165 + $0xd0] sm:$0xff]
      %v198 = vld [vmem:[%s165 + $0xd8] sm:$0xff]
      %v199 = vld [vmem:[%s165 + $0xe0] sm:$0xff]
      %v200 = vld [vmem:[%s165 + $0xe8] sm:$0xff]
      %v201 = vld [vmem:[%s165 + $0xf0] sm:$0xff]
      %v202 = vld [vmem:[%s165 + $0xf8] sm:$0xff]
      %s203 = scalar_lea.vmem [#allocation2], 24
      %vm204 = vcmask 31744
      %205 = vst.msk [vmem:[%s203 + $0x1] sm:$0xff] %vm204, %v171
      %206 = vst.msk [vmem:[%s203 + $0x9] sm:$0xff] %vm204, %v172
      %207 = vst.msk [vmem:[%s203 + $0x19] sm:$0xff] %vm204, %v173
      %208 = vst.msk [vmem:[%s203 + $0x21] sm:$0xff] %vm204, %v174
      %209 = vst.msk [vmem:[%s203 + $0x31] sm:$0xff] %vm204, %v175
      %210 = vst.msk [vmem:[%s203 + $0x39] sm:$0xff] %vm204, %v176
      %211 = vst.msk [vmem:[%s203 + $0x49] sm:$0xff] %vm204, %v177
      %212 = vst.msk [vmem:[%s203 + $0x51] sm:$0xff] %vm204, %v178
      %213 = vst.msk [vmem:[%s203 + $0x61] sm:$0xff] %vm204, %v179
      %214 = vst.msk [vmem:[%s203 + $0x69] sm:$0xff] %vm204, %v180
      %215 = vst.msk [vmem:[%s203 + $0x79] sm:$0xff] %vm204, %v181
      %216 = vst.msk [vmem:[%s203 + $0x81] sm:$0xff] %vm204, %v182
      %217 = vst.msk [vmem:[%s203 + $0x91] sm:$0xff] %vm204, %v183
      %218 = vst.msk [vmem:[%s203 + $0x99] sm:$0xff] %vm204, %v184
      %219 = vst.msk [vmem:[%s203 + $0xa9] sm:$0xff] %vm204, %v185
      %220 = vst.msk [vmem:[%s203 + $0xb1] sm:$0xff] %vm204, %v186
      %221 = vst.msk [vmem:[%s203 + $0xc1] sm:$0xff] %vm204, %v187
      %222 = vst.msk [vmem:[%s203 + $0xc9] sm:$0xff] %vm204, %v188
      %223 = vst.msk [vmem:[%s203 + $0xd9] sm:$0xff] %vm204, %v189
      %224 = vst.msk [vmem:[%s203 + $0xe1] sm:$0xff] %vm204, %v190
      %225 = vst.msk [vmem:[%s203 + $0xf1] sm:$0xff] %vm204, %v191
      %226 = vst.msk [vmem:[%s203 + $0xf9] sm:$0xff] %vm204, %v192
      %227 = vst.msk [vmem:[%s203 + $0x109] sm:$0xff] %vm204, %v193
      %228 = vst.msk [vmem:[%s203 + $0x111] sm:$0xff] %vm204, %v194
      %229 = vst.msk [vmem:[%s203 + $0x121] sm:$0xff] %vm204, %v195
      %230 = vst.msk [vmem:[%s203 + $0x129] sm:$0xff] %vm204, %v196
      %231 = vst.msk [vmem:[%s203 + $0x139] sm:$0xff] %vm204, %v197
      %232 = vst.msk [vmem:[%s203 + $0x141] sm:$0xff] %vm204, %v198
      %233 = vst.msk [vmem:[%s203 + $0x151] sm:$0xff] %vm204, %v199
      %234 = vst.msk [vmem:[%s203 + $0x159] sm:$0xff] %vm204, %v200
      %235 = vst.msk [vmem:[%s203 + $0x169] sm:$0xff] %vm204, %v201
      %236 = vst.msk [vmem:[%s203 + $0x171] sm:$0xff] %vm204, %v202
      %237 = vst.msk [vmem:[#allocation2 + $0x1] sm:$0xff] %vm204, %v173
      %238 = vst.msk [vmem:[#allocation2 + $0x9] sm:$0xff] %vm204, %v174
      %s239 = scalar_lea.vmem [#allocation2], 408
      %240 = vst.msk [vmem:[%s239 + $0x1] sm:$0xff] %vm204, %v199
      %241 = vst.msk [vmem:[%s239 + $0x9] sm:$0xff] %vm204, %v200
      %v242 = vld [vmem:[#allocation2 + $0x2] sm:$0x1]
      %v243 = vld [vmem:[#allocation2 + $0x1a] sm:$0x1]
      %v244 = vld [vmem:[#allocation2 + $0x32] sm:$0x1]
      %v245 = vld [vmem:[#allocation2 + $0x4a] sm:$0x1]
      %v246 = vld [vmem:[#allocation2 + $0x62] sm:$0x1]
      %v247 = vld [vmem:[#allocation2 + $0x7a] sm:$0x1]
      %v248 = vld [vmem:[#allocation2 + $0x92] sm:$0x1]
      %v249 = vld [vmem:[#allocation2 + $0xaa] sm:$0x1]
      %v250 = vld [vmem:[#allocation2 + $0xc2] sm:$0x1]
      %v251 = vld [vmem:[#allocation2 + $0xda] sm:$0x1]
      %v252 = vld [vmem:[#allocation2 + $0xf2] sm:$0x1]
      %v253 = vld [vmem:[#allocation2 + $0x10a] sm:$0x1]
      %v254 = vld [vmem:[#allocation2 + $0x122] sm:$0x1]
      %v255 = vld [vmem:[#allocation2 + $0x13a] sm:$0x1]
      %v256 = vld [vmem:[#allocation2 + $0x152] sm:$0x1]
      %v257 = vld [vmem:[#allocation2 + $0x16a] sm:$0x1]
      %v258 = vld [vmem:[#allocation2 + $0x182] sm:$0x1]
      %v259 = vld [vmem:[#allocation2 + $0x19a] sm:$0x1]
      %vm260 = vcmask 24576
      %261 = vst.msk [vmem:[#allocation2] sm:$0x1] %vm260, %v242
      %262 = vst.msk [vmem:[#allocation2 + $0x18] sm:$0x1] %vm260, %v243
      %263 = vst.msk [vmem:[#allocation2 + $0x30] sm:$0x1] %vm260, %v244
      %264 = vst.msk [vmem:[#allocation2 + $0x48] sm:$0x1] %vm260, %v245
      %265 = vst.msk [vmem:[#allocation2 + $0x60] sm:$0x1] %vm260, %v246
      %266 = vst.msk [vmem:[#allocation2 + $0x78] sm:$0x1] %vm260, %v247
      %267 = vst.msk [vmem:[#allocation2 + $0x90] sm:$0x1] %vm260, %v248
      %268 = vst.msk [vmem:[#allocation2 + $0xa8] sm:$0x1] %vm260, %v249
      %269 = vst.msk [vmem:[#allocation2 + $0xc0] sm:$0x1] %vm260, %v250
      %270 = vst.msk [vmem:[#allocation2 + $0xd8] sm:$0x1] %vm260, %v251
      %271 = vst.msk [vmem:[#allocation2 + $0xf0] sm:$0x1] %vm260, %v252
      %272 = vst.msk [vmem:[#allocation2 + $0x108] sm:$0x1] %vm260, %v253
      %273 = vst.msk [vmem:[#allocation2 + $0x120] sm:$0x1] %vm260, %v254
      %274 = vst.msk [vmem:[#allocation2 + $0x138] sm:$0x1] %vm260, %v255
      %275 = vst.msk [vmem:[#allocation2 + $0x150] sm:$0x1] %vm260, %v256
      %276 = vst.msk [vmem:[#allocation2 + $0x168] sm:$0x1] %vm260, %v257
      %277 = vst.msk [vmem:[#allocation2 + $0x180] sm:$0x1] %vm260, %v258
      %278 = vst.msk [vmem:[#allocation2 + $0x198] sm:$0x1] %vm260, %v259
      %v279 = vld [vmem:[#allocation2 + $0xf] sm:$0x1]
      %v280 = vld [vmem:[#allocation2 + $0x27] sm:$0x1]
      %v281 = vld [vmem:[#allocation2 + $0x3f] sm:$0x1]
      %v282 = vld [vmem:[#allocation2 + $0x57] sm:$0x1]
      %v283 = vld [vmem:[#allocation2 + $0x6f] sm:$0x1]
      %v284 = vld [vmem:[#allocation2 + $0x87] sm:$0x1]
      %v285 = vld [vmem:[#allocation2 + $0x9f] sm:$0x1]
      %v286 = vld [vmem:[#allocation2 + $0xb7] sm:$0x1]
      %v287 = vld [vmem:[#allocation2 + $0xcf] sm:$0x1]
      %v288 = vld [vmem:[#allocation2 + $0xe7] sm:$0x1]
      %v289 = vld [vmem:[#allocation2 + $0xff] sm:$0x1]
      %v290 = vld [vmem:[#allocation2 + $0x117] sm:$0x1]
      %v291 = vld [vmem:[#allocation2 + $0x12f] sm:$0x1]
      %v292 = vld [vmem:[#allocation2 + $0x147] sm:$0x1]
      %v293 = vld [vmem:[#allocation2 + $0x15f] sm:$0x1]
      %v294 = vld [vmem:[#allocation2 + $0x177] sm:$0x1]
      %v295 = vld [vmem:[#allocation2 + $0x18f] sm:$0x1]
      %v296 = vld [vmem:[#allocation2 + $0x1a7] sm:$0x1]
      %297 = vst.msk [vmem:[#allocation2 + $0x11] sm:$0x1] %vm260, %v279
      %298 = vst.msk [vmem:[#allocation2 + $0x29] sm:$0x1] %vm260, %v280
      %299 = vst.msk [vmem:[#allocation2 + $0x41] sm:$0x1] %vm260, %v281
      %300 = vst.msk [vmem:[#allocation2 + $0x59] sm:$0x1] %vm260, %v282
      %301 = vst.msk [vmem:[#allocation2 + $0x71] sm:$0x1] %vm260, %v283
      %302 = vst.msk [vmem:[#allocation2 + $0x89] sm:$0x1] %vm260, %v284
      %303 = vst.msk [vmem:[#allocation2 + $0xa1] sm:$0x1] %vm260, %v285
      %304 = vst.msk [vmem:[#allocation2 + $0xb9] sm:$0x1] %vm260, %v286
      %305 = vst.msk [vmem:[#allocation2 + $0xd1] sm:$0x1] %vm260, %v287
      %306 = vst.msk [vmem:[#allocation2 + $0xe9] sm:$0x1] %vm260, %v288
      %307 = vst.msk [vmem:[#allocation2 + $0x101] sm:$0x1] %vm260, %v289
      %308 = vst.msk [vmem:[#allocation2 + $0x119] sm:$0x1] %vm260, %v290
      %309 = vst.msk [vmem:[#allocation2 + $0x131] sm:$0x1] %vm260, %v291
      %310 = vst.msk [vmem:[#allocation2 + $0x149] sm:$0x1] %vm260, %v292
      %311 = vst.msk [vmem:[#allocation2 + $0x161] sm:$0x1] %vm260, %v293
      %312 = vst.msk [vmem:[#allocation2 + $0x179] sm:$0x1] %vm260, %v294
      %313 = vst.msk [vmem:[#allocation2 + $0x191] sm:$0x1] %vm260, %v295
      %314 = vst.msk [vmem:[#allocation2 + $0x1a9] sm:$0x1] %vm260, %v296
      %v315 = vld [vmem:[#allocation2] sm:$0xff]
      %v316 = vld [vmem:[#allocation2 + $0x8] sm:$0xff]
      %v317 = vld [vmem:[#allocation2 + $0x10] sm:$0x3]
      %v318 = vld [vmem:[#allocation2 + $0x18] sm:$0xff]
      %v319 = vld [vmem:[#allocation2 + $0x20] sm:$0xff]
      %v320 = vld [vmem:[#allocation2 + $0x28] sm:$0x3]
      %v321 = vld [vmem:[#allocation2 + $0x30] sm:$0xff]
      %v322 = vld [vmem:[#allocation2 + $0x38] sm:$0xff]
      %v323 = vld [vmem:[#allocation2 + $0x40] sm:$0x3]
      %v324 = vld [vmem:[#allocation2 + $0x48] sm:$0xff]
      %v325 = vld [vmem:[#allocation2 + $0x50] sm:$0xff]
      %v326 = vld [vmem:[#allocation2 + $0x58] sm:$0x3]
      %v327 = vld [vmem:[#allocation2 + $0x60] sm:$0xff]
      %v328 = vld [vmem:[#allocation2 + $0x68] sm:$0xff]
      %v329 = vld [vmem:[#allocation2 + $0x70] sm:$0x3]
      %v330 = vld [vmem:[#allocation2 + $0x78] sm:$0xff]
      %v331 = vld [vmem:[#allocation2 + $0x80] sm:$0xff]
      %v332 = vld [vmem:[#allocation2 + $0x88] sm:$0x3]
      %v333 = vld [vmem:[#allocation2 + $0x90] sm:$0xff]
      %v334 = vld [vmem:[#allocation2 + $0x98] sm:$0xff]
      %v335 = vld [vmem:[#allocation2 + $0xa0] sm:$0x3]
      %v336 = vld [vmem:[#allocation2 + $0xa8] sm:$0xff]
      %v337 = vld [vmem:[#allocation2 + $0xb0] sm:$0xff]
      %v338 = vld [vmem:[#allocation2 + $0xb8] sm:$0x3]
      %v339 = vld [vmem:[#allocation2 + $0xc0] sm:$0xff]
      %v340 = vld [vmem:[#allocation2 + $0xc8] sm:$0xff]
      %v341 = vld [vmem:[#allocation2 + $0xd0] sm:$0x3]
      %v342 = vld [vmem:[#allocation2 + $0xd8] sm:$0xff]
      %v343 = vld [vmem:[#allocation2 + $0xe0] sm:$0xff]
      %v344 = vld [vmem:[#allocation2 + $0xe8] sm:$0x3]
      %v345 = vld [vmem:[#allocation2 + $0xf0] sm:$0xff]
      %v346 = vld [vmem:[#allocation2 + $0xf8] sm:$0xff]
      %v347 = vld [vmem:[#allocation2 + $0x100] sm:$0x3]
      %v348 = vld [vmem:[#allocation2 + $0x108] sm:$0xff]
      %v349 = vld [vmem:[#allocation2 + $0x110] sm:$0xff]
      %v350 = vld [vmem:[#allocation2 + $0x118] sm:$0x3]
      %v351 = vld [vmem:[#allocation2 + $0x120] sm:$0xff]
      %v352 = vld [vmem:[#allocation2 + $0x128] sm:$0xff]
      %v353 = vld [vmem:[#allocation2 + $0x130] sm:$0x3]
      %v354 = vld [vmem:[#allocation2 + $0x138] sm:$0xff]
      %v355 = vld [vmem:[#allocation2 + $0x140] sm:$0xff]
      %v356 = vld [vmem:[#allocation2 + $0x148] sm:$0x3]
      %v357 = vld [vmem:[#allocation2 + $0x150] sm:$0xff]
      %v358 = vld [vmem:[#allocation2 + $0x158] sm:$0xff]
      %v359 = vld [vmem:[#allocation2 + $0x160] sm:$0x3]
      %v360 = vld [vmem:[#allocation2 + $0x168] sm:$0xff]
      %v361 = vld [vmem:[#allocation2 + $0x170] sm:$0xff]
      %v362 = vld [vmem:[#allocation2 + $0x178] sm:$0x3]
      %v363 = vld [vmem:[#allocation2 + $0x180] sm:$0xff]
      %v364 = vld [vmem:[#allocation2 + $0x188] sm:$0xff]
      %v365 = vld [vmem:[#allocation2 + $0x190] sm:$0x3]
      %v366 = vld [vmem:[#allocation2 + $0x198] sm:$0xff]
      %v367 = vld [vmem:[#allocation2 + $0x1a0] sm:$0xff]
      %v368 = vld [vmem:[#allocation2 + $0x1a8] sm:$0x3]
      %v369 = vld [vmem:[%s1] sm:$0xf]
      %vm418 = vcmask 1046528
      %v419 = vrot.slane %v315, 1
      %v420 = vrot.slane %v316, 1
      %v421 = vsel %vm418, %v419, %v420
      %v422 = vrot.slane %v317, 1
      %v423 = vsel %vm418, %v420, %v422
      %v424 = vrot.slane %v318, 1
      %v425 = vrot.slane %v319, 1
      %v426 = vsel %vm418, %v424, %v425
      %v427 = vrot.slane %v320, 1
      %v428 = vsel %vm418, %v425, %v427
      %v429 = vrot.slane %v321, 1
      %v430 = vrot.slane %v322, 1
      %v431 = vsel %vm418, %v429, %v430
      %v432 = vrot.slane %v323, 1
      %v433 = vsel %vm418, %v430, %v432
      %v434 = vrot.slane %v324, 1
      %v435 = vrot.slane %v325, 1
      %v436 = vsel %vm418, %v434, %v435
      %v437 = vrot.slane %v326, 1
      %v438 = vsel %vm418, %v435, %v437
      %v439 = vrot.slane %v327, 1
      %v440 = vrot.slane %v328, 1
      %v441 = vsel %vm418, %v439, %v440
      %v442 = vrot.slane %v329, 1
      %v443 = vsel %vm418, %v440, %v442
      %v444 = vrot.slane %v330, 1
      %v445 = vrot.slane %v331, 1
      %v446 = vsel %vm418, %v444, %v445
      %v447 = vrot.slane %v332, 1
      %v448 = vsel %vm418, %v445, %v447
      %v449 = vrot.slane %v333, 1
      %v450 = vrot.slane %v334, 1
      %v451 = vsel %vm418, %v449, %v450
      %v452 = vrot.slane %v335, 1
      %v453 = vsel %vm418, %v450, %v452
      %v454 = vrot.slane %v336, 1
      %v455 = vrot.slane %v337, 1
      %v456 = vsel %vm418, %v454, %v455
      %v457 = vrot.slane %v338, 1
      %v458 = vsel %vm418, %v455, %v457
      %v459 = vrot.slane %v339, 1
      %v460 = vrot.slane %v340, 1
      %v461 = vsel %vm418, %v459, %v460
      %v462 = vrot.slane %v341, 1
      %v463 = vsel %vm418, %v460, %v462
      %v464 = vrot.slane %v342, 1
      %v465 = vrot.slane %v343, 1
      %v466 = vsel %vm418, %v464, %v465
      %v467 = vrot.slane %v344, 1
      %v468 = vsel %vm418, %v465, %v467
      %v469 = vrot.slane %v345, 1
      %v470 = vrot.slane %v346, 1
      %v471 = vsel %vm418, %v469, %v470
      %v472 = vrot.slane %v347, 1
      %v473 = vsel %vm418, %v470, %v472
      %v474 = vrot.slane %v348, 1
      %v475 = vrot.slane %v349, 1
      %v476 = vsel %vm418, %v474, %v475
      %v477 = vrot.slane %v350, 1
      %v478 = vsel %vm418, %v475, %v477
      %v479 = vrot.slane %v351, 1
      %v480 = vrot.slane %v352, 1
      %v481 = vsel %vm418, %v479, %v480
      %v482 = vrot.slane %v353, 1
      %v483 = vsel %vm418, %v480, %v482
      %v484 = vrot.slane %v354, 1
      %v485 = vrot.slane %v355, 1
      %v486 = vsel %vm418, %v484, %v485
      %v487 = vrot.slane %v356, 1
      %v488 = vsel %vm418, %v485, %v487
      %v489 = vrot.slane %v357, 1
      %v490 = vrot.slane %v358, 1
      %v491 = vsel %vm418, %v489, %v490
      %v492 = vrot.slane %v359, 1
      %v493 = vsel %vm418, %v490, %v492
      %v494 = vrot.slane %v360, 1
      %v495 = vrot.slane %v361, 1
      %v496 = vsel %vm418, %v494, %v495
      %v497 = vrot.slane %v362, 1
      %v498 = vsel %vm418, %v495, %v497
      %s499 = scalar_lea.vmem %s1, 4
      %v500 = vld [vmem:[%s499] sm:$0xf]
      %v501 = vsel %vm204, %v421, 0
      %v503 = vsel %vm204, %v423, 0
      %v505 = vsel %vm204, %v426, 0
      %v507 = vsel %vm204, %v428, 0
      %v509 = vsel %vm204, %v431, 0
      %v511 = vsel %vm204, %v433, 0
      %v513 = vsel %vm204, %v436, 0
      %v515 = vsel %vm204, %v438, 0
      %v517 = vsel %vm204, %v441, 0
      %v519 = vsel %vm204, %v443, 0
      %v521 = vsel %vm204, %v446, 0
      %v523 = vsel %vm204, %v448, 0
      %v525 = vsel %vm204, %v451, 0
      %v527 = vsel %vm204, %v453, 0
      %v529 = vsel %vm204, %v456, 0
      %v531 = vsel %vm204, %v458, 0
      %v533 = vsel %vm204, %v461, 0
      %v535 = vsel %vm204, %v463, 0
      %v537 = vsel %vm204, %v466, 0
      %v539 = vsel %vm204, %v468, 0
      %v541 = vsel %vm204, %v471, 0
      %v543 = vsel %vm204, %v473, 0
      %v545 = vsel %vm204, %v476, 0
      %v547 = vsel %vm204, %v478, 0
      %v549 = vsel %vm204, %v481, 0
      %v551 = vsel %vm204, %v483, 0
      %v553 = vsel %vm204, %v486, 0
      %v555 = vsel %vm204, %v488, 0
      %v557 = vsel %vm204, %v491, 0
      %v559 = vsel %vm204, %v493, 0
      %v561 = vsel %vm204, %v496, 0
      %v563 = vsel %vm204, %v498, 0
      %vm565 = vcmask 1043456
      %v567 = vsel %vm565, %v500, 0
      %569 = vmatpush.msra.mxu0 0.0
      %570 = vmatpush.msra.mxu0 0.0
      %571 = vmatpush.msra.mxu0 0.0
      %572 = vmatpush.msra.mxu0 0.0
      %573 = vmatpush.msra.mxu0 0.0
      %574 = vmatpush.msra.mxu0 0.0
      %575 = vmatpush.msra.mxu0 0.0
      %576 = vmatpush.msra.mxu0 0.0
      %577 = vmatpush.msra.mxu0 0.0
      %578 = vmatpush.msra.mxu0 0.0
      %579 = vmatpush.msra.mxu0 0.0
      %580 = vmatpush.msra.mxu0 0.0
      %581 = vmatpush.msra.mxu0 0.0
      %582 = vmatpush.msra.mxu0 0.0
      %583 = vmatpush.msra.mxu0 0.0
      %584 = vmatpush.msra.mxu0 %v567
      %585 = vmatmul.f32.gmra.mxu0 %v501
      %v586 = vpop.f32.mrf.mxu0
      %v587 = vadd.f32 0.0, %v586
      %588 = vmatmul.f32.gmra.mxu0 %v503
      %v589 = vpop.f32.mrf.mxu0
      %v590 = vadd.f32 0.0, %v589
      %591 = vmatmul.f32.gmra.mxu0 %v505
      %v592 = vpop.f32.mrf.mxu0
      %v593 = vadd.f32 0.0, %v592
      %594 = vmatmul.f32.gmra.mxu0 %v507
      %v595 = vpop.f32.mrf.mxu0
      %v596 = vadd.f32 0.0, %v595
      %597 = vmatmul.f32.gmra.mxu0 %v509
      %v598 = vpop.f32.mrf.mxu0
      %v599 = vadd.f32 0.0, %v598
      %600 = vmatmul.f32.gmra.mxu0 %v511
      %v601 = vpop.f32.mrf.mxu0
      %v602 = vadd.f32 0.0, %v601
      %603 = vmatmul.f32.gmra.mxu0 %v513
      %v604 = vpop.f32.mrf.mxu0
      %v605 = vadd.f32 0.0, %v604
      %606 = vmatmul.f32.gmra.mxu0 %v515
      %v607 = vpop.f32.mrf.mxu0
      %v608 = vadd.f32 0.0, %v607
      %609 = vmatmul.f32.gmra.mxu0 %v517
      %v610 = vpop.f32.mrf.mxu0
      %v611 = vadd.f32 0.0, %v610
      %612 = vmatmul.f32.gmra.mxu0 %v519
      %v613 = vpop.f32.mrf.mxu0
      %v614 = vadd.f32 0.0, %v613
      %615 = vmatmul.f32.gmra.mxu0 %v521
      %v616 = vpop.f32.mrf.mxu0
      %v617 = vadd.f32 0.0, %v616
      %618 = vmatmul.f32.gmra.mxu0 %v523
      %v619 = vpop.f32.mrf.mxu0
      %v620 = vadd.f32 0.0, %v619
      %621 = vmatmul.f32.gmra.mxu0 %v525
      %v622 = vpop.f32.mrf.mxu0
      %v623 = vadd.f32 0.0, %v622
      %624 = vmatmul.f32.gmra.mxu0 %v527
      %v625 = vpop.f32.mrf.mxu0
      %v626 = vadd.f32 0.0, %v625
      %627 = vmatmul.f32.gmra.mxu0 %v529
      %v628 = vpop.f32.mrf.mxu0
      %v629 = vadd.f32 0.0, %v628
      %630 = vmatmul.f32.gmra.mxu0 %v531
      %v631 = vpop.f32.mrf.mxu0
      %v632 = vadd.f32 0.0, %v631
      %633 = vmatmul.f32.gmra.mxu0 %v533
      %v634 = vpop.f32.mrf.mxu0
      %v635 = vadd.f32 0.0, %v634
      %636 = vmatmul.f32.gmra.mxu0 %v535
      %v637 = vpop.f32.mrf.mxu0
      %v638 = vadd.f32 0.0, %v637
      %639 = vmatmul.f32.gmra.mxu0 %v537
      %v640 = vpop.f32.mrf.mxu0
      %v641 = vadd.f32 0.0, %v640
      %642 = vmatmul.f32.gmra.mxu0 %v539
      %v643 = vpop.f32.mrf.mxu0
      %v644 = vadd.f32 0.0, %v643
      %645 = vmatmul.f32.gmra.mxu0 %v541
      %v646 = vpop.f32.mrf.mxu0
      %v647 = vadd.f32 0.0, %v646
      %648 = vmatmul.f32.gmra.mxu0 %v543
      %v649 = vpop.f32.mrf.mxu0
      %v650 = vadd.f32 0.0, %v649
      %651 = vmatmul.f32.gmra.mxu0 %v545
      %v652 = vpop.f32.mrf.mxu0
      %v653 = vadd.f32 0.0, %v652
      %654 = vmatmul.f32.gmra.mxu0 %v547
      %v655 = vpop.f32.mrf.mxu0
      %v656 = vadd.f32 0.0, %v655
      %657 = vmatmul.f32.gmra.mxu0 %v549
      %v658 = vpop.f32.mrf.mxu0
      %v659 = vadd.f32 0.0, %v658
      %660 = vmatmul.f32.gmra.mxu0 %v551
      %v661 = vpop.f32.mrf.mxu0
      %v662 = vadd.f32 0.0, %v661
      %663 = vmatmul.f32.gmra.mxu0 %v553
      %v664 = vpop.f32.mrf.mxu0
      %v665 = vadd.f32 0.0, %v664
      %666 = vmatmul.f32.gmra.mxu0 %v555
      %v667 = vpop.f32.mrf.mxu0
      %v668 = vadd.f32 0.0, %v667
      %669 = vmatmul.f32.gmra.mxu0 %v557
      %v670 = vpop.f32.mrf.mxu0
      %v671 = vadd.f32 0.0, %v670
      %672 = vmatmul.f32.gmra.mxu0 %v559
      %v673 = vpop.f32.mrf.mxu0
      %v674 = vadd.f32 0.0, %v673
      %675 = vmatmul.f32.gmra.mxu0 %v561
      %v676 = vpop.f32.mrf.mxu0
      %v677 = vadd.f32 0.0, %v676
      %678 = vmatmul.f32.gmra.mxu0 %v563
      %v679 = vpop.f32.mrf.mxu0
      %v680 = vadd.f32 0.0, %v679
      %681 = vdwg.mxu0
      %v682 = vsel %vm204, %v315, 0
      %v684 = vsel %vm204, %v316, 0
      %v686 = vsel %vm204, %v318, 0
      %v688 = vsel %vm204, %v319, 0
      %v690 = vsel %vm204, %v321, 0
      %v692 = vsel %vm204, %v322, 0
      %v694 = vsel %vm204, %v324, 0
      %v696 = vsel %vm204, %v325, 0
      %v698 = vsel %vm204, %v327, 0
      %v700 = vsel %vm204, %v328, 0
      %v702 = vsel %vm204, %v330, 0
      %v704 = vsel %vm204, %v331, 0
      %v706 = vsel %vm204, %v333, 0
      %v708 = vsel %vm204, %v334, 0
      %v710 = vsel %vm204, %v336, 0
      %v712 = vsel %vm204, %v337, 0
      %v714 = vsel %vm204, %v339, 0
      %v716 = vsel %vm204, %v340, 0
      %v718 = vsel %vm204, %v342, 0
      %v720 = vsel %vm204, %v343, 0
      %v722 = vsel %vm204, %v345, 0
      %v724 = vsel %vm204, %v346, 0
      %v726 = vsel %vm204, %v348, 0
      %v728 = vsel %vm204, %v349, 0
      %v730 = vsel %vm204, %v351, 0
      %v732 = vsel %vm204, %v352, 0
      %v734 = vsel %vm204, %v354, 0
      %v736 = vsel %vm204, %v355, 0
      %v738 = vsel %vm204, %v357, 0
      %v740 = vsel %vm204, %v358, 0
      %v742 = vsel %vm204, %v360, 0
      %v744 = vsel %vm204, %v361, 0
      %v747 = vsel %vm565, %v369, 0
      %749 = vmatpush.msra.mxu0 0.0
      %750 = vmatpush.msra.mxu0 0.0
      %751 = vmatpush.msra.mxu0 0.0
      %752 = vmatpush.msra.mxu0 0.0
      %753 = vmatpush.msra.mxu0 0.0
      %754 = vmatpush.msra.mxu0 0.0
      %755 = vmatpush.msra.mxu0 0.0
      %756 = vmatpush.msra.mxu0 0.0
      %757 = vmatpush.msra.mxu0 0.0
      %758 = vmatpush.msra.mxu0 0.0
      %759 = vmatpush.msra.mxu0 0.0
      %760 = vmatpush.msra.mxu0 0.0
      %761 = vmatpush.msra.mxu0 0.0
      %762 = vmatpush.msra.mxu0 0.0
      %763 = vmatpush.msra.mxu0 0.0
      %764 = vmatpush.msra.mxu0 %v747
      %765 = vmatmul.f32.gmra.mxu0 %v682
      %v766 = vpop.f32.mrf.mxu0
      %v767 = vadd.f32 %v587, %v766
      %768 = vmatmul.f32.gmra.mxu0 %v684
      %v769 = vpop.f32.mrf.mxu0
      %v770 = vadd.f32 %v590, %v769
      %771 = vmatmul.f32.gmra.mxu0 %v686
      %v772 = vpop.f32.mrf.mxu0
      %v773 = vadd.f32 %v593, %v772
      %774 = vmatmul.f32.gmra.mxu0 %v688
      %v775 = vpop.f32.mrf.mxu0
      %v776 = vadd.f32 %v596, %v775
      %777 = vmatmul.f32.gmra.mxu0 %v690
      %v778 = vpop.f32.mrf.mxu0
      %v779 = vadd.f32 %v599, %v778
      %780 = vmatmul.f32.gmra.mxu0 %v692
      %v781 = vpop.f32.mrf.mxu0
      %v782 = vadd.f32 %v602, %v781
      %783 = vmatmul.f32.gmra.mxu0 %v694
      %v784 = vpop.f32.mrf.mxu0
      %v785 = vadd.f32 %v605, %v784
      %786 = vmatmul.f32.gmra.mxu0 %v696
      %v787 = vpop.f32.mrf.mxu0
      %v788 = vadd.f32 %v608, %v787
      %789 = vmatmul.f32.gmra.mxu0 %v698
      %v790 = vpop.f32.mrf.mxu0
      %v791 = vadd.f32 %v611, %v790
      %792 = vmatmul.f32.gmra.mxu0 %v700
      %v793 = vpop.f32.mrf.mxu0
      %v794 = vadd.f32 %v614, %v793
      %795 = vmatmul.f32.gmra.mxu0 %v702
      %v796 = vpop.f32.mrf.mxu0
      %v797 = vadd.f32 %v617, %v796
      %798 = vmatmul.f32.gmra.mxu0 %v704
      %v799 = vpop.f32.mrf.mxu0
      %v800 = vadd.f32 %v620, %v799
      %801 = vmatmul.f32.gmra.mxu0 %v706
      %v802 = vpop.f32.mrf.mxu0
      %v803 = vadd.f32 %v623, %v802
      %804 = vmatmul.f32.gmra.mxu0 %v708
      %v805 = vpop.f32.mrf.mxu0
      %v806 = vadd.f32 %v626, %v805
      %807 = vmatmul.f32.gmra.mxu0 %v710
      %v808 = vpop.f32.mrf.mxu0
      %v809 = vadd.f32 %v629, %v808
      %810 = vmatmul.f32.gmra.mxu0 %v712
      %v811 = vpop.f32.mrf.mxu0
      %v812 = vadd.f32 %v632, %v811
      %813 = vmatmul.f32.gmra.mxu0 %v714
      %v814 = vpop.f32.mrf.mxu0
      %v815 = vadd.f32 %v635, %v814
      %816 = vmatmul.f32.gmra.mxu0 %v716
      %v817 = vpop.f32.mrf.mxu0
      %v818 = vadd.f32 %v638, %v817
      %819 = vmatmul.f32.gmra.mxu0 %v718
      %v820 = vpop.f32.mrf.mxu0
      %v821 = vadd.f32 %v641, %v820
      %822 = vmatmul.f32.gmra.mxu0 %v720
      %v823 = vpop.f32.mrf.mxu0
      %v824 = vadd.f32 %v644, %v823
      %825 = vmatmul.f32.gmra.mxu0 %v722
      %v826 = vpop.f32.mrf.mxu0
      %v827 = vadd.f32 %v647, %v826
      %828 = vmatmul.f32.gmra.mxu0 %v724
      %v829 = vpop.f32.mrf.mxu0
      %v830 = vadd.f32 %v650, %v829
      %831 = vmatmul.f32.gmra.mxu0 %v726
      %v832 = vpop.f32.mrf.mxu0
      %v833 = vadd.f32 %v653, %v832
      %834 = vmatmul.f32.gmra.mxu0 %v728
      %v835 = vpop.f32.mrf.mxu0
      %v836 = vadd.f32 %v656, %v835
      %837 = vmatmul.f32.gmra.mxu0 %v730
      %v838 = vpop.f32.mrf.mxu0
      %v839 = vadd.f32 %v659, %v838
      %840 = vmatmul.f32.gmra.mxu0 %v732
      %v841 = vpop.f32.mrf.mxu0
      %v842 = vadd.f32 %v662, %v841
      %843 = vmatmul.f32.gmra.mxu0 %v734
      %v844 = vpop.f32.mrf.mxu0
      %v845 = vadd.f32 %v665, %v844
      %846 = vmatmul.f32.gmra.mxu0 %v736
      %v847 = vpop.f32.mrf.mxu0
      %v848 = vadd.f32 %v668, %v847
      %849 = vmatmul.f32.gmra.mxu0 %v738
      %v850 = vpop.f32.mrf.mxu0
      %v851 = vadd.f32 %v671, %v850
      %852 = vmatmul.f32.gmra.mxu0 %v740
      %v853 = vpop.f32.mrf.mxu0
      %v854 = vadd.f32 %v674, %v853
      %855 = vmatmul.f32.gmra.mxu0 %v742
      %v856 = vpop.f32.mrf.mxu0
      %v857 = vadd.f32 %v677, %v856
      %858 = vmatmul.f32.gmra.mxu0 %v744
      %v859 = vpop.f32.mrf.mxu0
      %v860 = vadd.f32 %v680, %v859
      %861 = vdwg.mxu0
      %vm862 = vcmask 1045504
      %v863 = vrot.slane %v315, 2
      %v864 = vrot.slane %v316, 2
      %v865 = vsel %vm862, %v863, %v864
      %v866 = vrot.slane %v317, 2
      %v867 = vsel %vm862, %v864, %v866
      %v868 = vrot.slane %v318, 2
      %v869 = vrot.slane %v319, 2
      %v870 = vsel %vm862, %v868, %v869
      %v871 = vrot.slane %v320, 2
      %v872 = vsel %vm862, %v869, %v871
      %v873 = vrot.slane %v321, 2
      %v874 = vrot.slane %v322, 2
      %v875 = vsel %vm862, %v873, %v874
      %v876 = vrot.slane %v323, 2
      %v877 = vsel %vm862, %v874, %v876
      %v878 = vrot.slane %v324, 2
      %v879 = vrot.slane %v325, 2
      %v880 = vsel %vm862, %v878, %v879
      %v881 = vrot.slane %v326, 2
      %v882 = vsel %vm862, %v879, %v881
      %v883 = vrot.slane %v327, 2
      %v884 = vrot.slane %v328, 2
      %v885 = vsel %vm862, %v883, %v884
      %v886 = vrot.slane %v329, 2
      %v887 = vsel %vm862, %v884, %v886
      %v888 = vrot.slane %v330, 2
      %v889 = vrot.slane %v331, 2
      %v890 = vsel %vm862, %v888, %v889
      %v891 = vrot.slane %v332, 2
      %v892 = vsel %vm862, %v889, %v891
      %v893 = vrot.slane %v333, 2
      %v894 = vrot.slane %v334, 2
      %v895 = vsel %vm862, %v893, %v894
      %v896 = vrot.slane %v335, 2
      %v897 = vsel %vm862, %v894, %v896
      %v898 = vrot.slane %v336, 2
      %v899 = vrot.slane %v337, 2
      %v900 = vsel %vm862, %v898, %v899
      %v901 = vrot.slane %v338, 2
      %v902 = vsel %vm862, %v899, %v901
      %v903 = vrot.slane %v339, 2
      %v904 = vrot.slane %v340, 2
      %v905 = vsel %vm862, %v903, %v904
      %v906 = vrot.slane %v341, 2
      %v907 = vsel %vm862, %v904, %v906
      %v908 = vrot.slane %v342, 2
      %v909 = vrot.slane %v343, 2
      %v910 = vsel %vm862, %v908, %v909
      %v911 = vrot.slane %v344, 2
      %v912 = vsel %vm862, %v909, %v911
      %v913 = vrot.slane %v345, 2
      %v914 = vrot.slane %v346, 2
      %v915 = vsel %vm862, %v913, %v914
      %v916 = vrot.slane %v347, 2
      %v917 = vsel %vm862, %v914, %v916
      %v918 = vrot.slane %v348, 2
      %v919 = vrot.slane %v349, 2
      %v920 = vsel %vm862, %v918, %v919
      %v921 = vrot.slane %v350, 2
      %v922 = vsel %vm862, %v919, %v921
      %v923 = vrot.slane %v351, 2
      %v924 = vrot.slane %v352, 2
      %v925 = vsel %vm862, %v923, %v924
      %v926 = vrot.slane %v353, 2
      %v927 = vsel %vm862, %v924, %v926
      %v928 = vrot.slane %v354, 2
      %v929 = vrot.slane %v355, 2
      %v930 = vsel %vm862, %v928, %v929
      %v931 = vrot.slane %v356, 2
      %v932 = vsel %vm862, %v929, %v931
      %v933 = vrot.slane %v357, 2
      %v934 = vrot.slane %v358, 2
      %v935 = vsel %vm862, %v933, %v934
      %v936 = vrot.slane %v359, 2
      %v937 = vsel %vm862, %v934, %v936
      %v938 = vrot.slane %v360, 2
      %v939 = vrot.slane %v361, 2
      %v940 = vsel %vm862, %v938, %v939
      %v941 = vrot.slane %v362, 2
      %v942 = vsel %vm862, %v939, %v941
      %s943 = scalar_lea.vmem %s1, 8
      %v944 = vld [vmem:[%s943] sm:$0xf]
      %v945 = vsel %vm204, %v865, 0
      %v947 = vsel %vm204, %v867, 0
      %v949 = vsel %vm204, %v870, 0
      %v951 = vsel %vm204, %v872, 0
      %v953 = vsel %vm204, %v875, 0
      %v955 = vsel %vm204, %v877, 0
      %v957 = vsel %vm204, %v880, 0
      %v959 = vsel %vm204, %v882, 0
      %v961 = vsel %vm204, %v885, 0
      %v963 = vsel %vm204, %v887, 0
      %v965 = vsel %vm204, %v890, 0
      %v967 = vsel %vm204, %v892, 0
      %v969 = vsel %vm204, %v895, 0
      %v971 = vsel %vm204, %v897, 0
      %v973 = vsel %vm204, %v900, 0
      %v975 = vsel %vm204, %v902, 0
      %v977 = vsel %vm204, %v905, 0
      %v979 = vsel %vm204, %v907, 0
      %v981 = vsel %vm204, %v910, 0
      %v983 = vsel %vm204, %v912, 0
      %v985 = vsel %vm204, %v915, 0
      %v987 = vsel %vm204, %v917, 0
      %v989 = vsel %vm204, %v920, 0
      %v991 = vsel %vm204, %v922, 0
      %v993 = vsel %vm204, %v925, 0
      %v995 = vsel %vm204, %v927, 0
      %v997 = vsel %vm204, %v930, 0
      %v999 = vsel %vm204, %v932, 0
      %v1001 = vsel %vm204, %v935, 0
      %v1003 = vsel %vm204, %v937, 0
      %v1005 = vsel %vm204, %v940, 0
      %v1007 = vsel %vm204, %v942, 0
      %v1010 = vsel %vm565, %v944, 0
      %1012 = vmatpush.msra.mxu0 0.0
      %1013 = vmatpush.msra.mxu0 0.0
      %1014 = vmatpush.msra.mxu0 0.0
      %1015 = vmatpush.msra.mxu0 0.0
      %1016 = vmatpush.msra.mxu0 0.0
      %1017 = vmatpush.msra.mxu0 0.0
      %1018 = vmatpush.msra.mxu0 0.0
      %1019 = vmatpush.msra.mxu0 0.0
      %1020 = vmatpush.msra.mxu0 0.0
      %1021 = vmatpush.msra.mxu0 0.0
      %1022 = vmatpush.msra.mxu0 0.0
      %1023 = vmatpush.msra.mxu0 0.0
      %1024 = vmatpush.msra.mxu0 0.0
      %1025 = vmatpush.msra.mxu0 0.0
      %1026 = vmatpush.msra.mxu0 0.0
      %1027 = vmatpush.msra.mxu0 %v1010
      %1028 = vmatmul.f32.gmra.mxu0 %v945
      %v1029 = vpop.f32.mrf.mxu0
      %v1030 = vadd.f32 0.0, %v1029
      %1031 = vmatmul.f32.gmra.mxu0 %v947
      %v1032 = vpop.f32.mrf.mxu0
      %v1033 = vadd.f32 0.0, %v1032
      %1034 = vmatmul.f32.gmra.mxu0 %v949
      %v1035 = vpop.f32.mrf.mxu0
      %v1036 = vadd.f32 0.0, %v1035
      %1037 = vmatmul.f32.gmra.mxu0 %v951
      %v1038 = vpop.f32.mrf.mxu0
      %v1039 = vadd.f32 0.0, %v1038
      %1040 = vmatmul.f32.gmra.mxu0 %v953
      %v1041 = vpop.f32.mrf.mxu0
      %v1042 = vadd.f32 0.0, %v1041
      %1043 = vmatmul.f32.gmra.mxu0 %v955
      %v1044 = vpop.f32.mrf.mxu0
      %v1045 = vadd.f32 0.0, %v1044
      %1046 = vmatmul.f32.gmra.mxu0 %v957
      %v1047 = vpop.f32.mrf.mxu0
      %v1048 = vadd.f32 0.0, %v1047
      %1049 = vmatmul.f32.gmra.mxu0 %v959
      %v1050 = vpop.f32.mrf.mxu0
      %v1051 = vadd.f32 0.0, %v1050
      %1052 = vmatmul.f32.gmra.mxu0 %v961
      %v1053 = vpop.f32.mrf.mxu0
      %v1054 = vadd.f32 0.0, %v1053
      %1055 = vmatmul.f32.gmra.mxu0 %v963
      %v1056 = vpop.f32.mrf.mxu0
      %v1057 = vadd.f32 0.0, %v1056
      %1058 = vmatmul.f32.gmra.mxu0 %v965
      %v1059 = vpop.f32.mrf.mxu0
      %v1060 = vadd.f32 0.0, %v1059
      %1061 = vmatmul.f32.gmra.mxu0 %v967
      %v1062 = vpop.f32.mrf.mxu0
      %v1063 = vadd.f32 0.0, %v1062
      %1064 = vmatmul.f32.gmra.mxu0 %v969
      %v1065 = vpop.f32.mrf.mxu0
      %v1066 = vadd.f32 0.0, %v1065
      %1067 = vmatmul.f32.gmra.mxu0 %v971
      %v1068 = vpop.f32.mrf.mxu0
      %v1069 = vadd.f32 0.0, %v1068
      %1070 = vmatmul.f32.gmra.mxu0 %v973
      %v1071 = vpop.f32.mrf.mxu0
      %v1072 = vadd.f32 0.0, %v1071
      %1073 = vmatmul.f32.gmra.mxu0 %v975
      %v1074 = vpop.f32.mrf.mxu0
      %v1075 = vadd.f32 0.0, %v1074
      %1076 = vmatmul.f32.gmra.mxu0 %v977
      %v1077 = vpop.f32.mrf.mxu0
      %v1078 = vadd.f32 0.0, %v1077
      %1079 = vmatmul.f32.gmra.mxu0 %v979
      %v1080 = vpop.f32.mrf.mxu0
      %v1081 = vadd.f32 0.0, %v1080
      %1082 = vmatmul.f32.gmra.mxu0 %v981
      %v1083 = vpop.f32.mrf.mxu0
      %v1084 = vadd.f32 0.0, %v1083
      %1085 = vmatmul.f32.gmra.mxu0 %v983
      %v1086 = vpop.f32.mrf.mxu0
      %v1087 = vadd.f32 0.0, %v1086
      %1088 = vmatmul.f32.gmra.mxu0 %v985
      %v1089 = vpop.f32.mrf.mxu0
      %v1090 = vadd.f32 0.0, %v1089
      %1091 = vmatmul.f32.gmra.mxu0 %v987
      %v1092 = vpop.f32.mrf.mxu0
      %v1093 = vadd.f32 0.0, %v1092
      %1094 = vmatmul.f32.gmra.mxu0 %v989
      %v1095 = vpop.f32.mrf.mxu0
      %v1096 = vadd.f32 0.0, %v1095
      %1097 = vmatmul.f32.gmra.mxu0 %v991
      %v1098 = vpop.f32.mrf.mxu0
      %v1099 = vadd.f32 0.0, %v1098
      %1100 = vmatmul.f32.gmra.mxu0 %v993
      %v1101 = vpop.f32.mrf.mxu0
      %v1102 = vadd.f32 0.0, %v1101
      %1103 = vmatmul.f32.gmra.mxu0 %v995
      %v1104 = vpop.f32.mrf.mxu0
      %v1105 = vadd.f32 0.0, %v1104
      %1106 = vmatmul.f32.gmra.mxu0 %v997
      %v1107 = vpop.f32.mrf.mxu0
      %v1108 = vadd.f32 0.0, %v1107
      %1109 = vmatmul.f32.gmra.mxu0 %v999
      %v1110 = vpop.f32.mrf.mxu0
      %v1111 = vadd.f32 0.0, %v1110
      %1112 = vmatmul.f32.gmra.mxu0 %v1001
      %v1113 = vpop.f32.mrf.mxu0
      %v1114 = vadd.f32 0.0, %v1113
      %1115 = vmatmul.f32.gmra.mxu0 %v1003
      %v1116 = vpop.f32.mrf.mxu0
      %v1117 = vadd.f32 0.0, %v1116
      %1118 = vmatmul.f32.gmra.mxu0 %v1005
      %v1119 = vpop.f32.mrf.mxu0
      %v1120 = vadd.f32 0.0, %v1119
      %1121 = vmatmul.f32.gmra.mxu0 %v1007
      %v1122 = vpop.f32.mrf.mxu0
      %v1123 = vadd.f32 0.0, %v1122
      %1124 = vdwg.mxu0
      %v1125 = vadd.f32 %v767, %v1030
      %v1126 = vadd.f32 %v770, %v1033
      %v1127 = vadd.f32 %v773, %v1036
      %v1128 = vadd.f32 %v776, %v1039
      %v1129 = vadd.f32 %v779, %v1042
      %v1130 = vadd.f32 %v782, %v1045
      %v1131 = vadd.f32 %v785, %v1048
      %v1132 = vadd.f32 %v788, %v1051
      %v1133 = vadd.f32 %v791, %v1054
      %v1134 = vadd.f32 %v794, %v1057
      %v1135 = vadd.f32 %v797, %v1060
      %v1136 = vadd.f32 %v800, %v1063
      %v1137 = vadd.f32 %v803, %v1066
      %v1138 = vadd.f32 %v806, %v1069
      %v1139 = vadd.f32 %v809, %v1072
      %v1140 = vadd.f32 %v812, %v1075
      %v1141 = vadd.f32 %v815, %v1078
      %v1142 = vadd.f32 %v818, %v1081
      %v1143 = vadd.f32 %v821, %v1084
      %v1144 = vadd.f32 %v824, %v1087
      %v1145 = vadd.f32 %v827, %v1090
      %v1146 = vadd.f32 %v830, %v1093
      %v1147 = vadd.f32 %v833, %v1096
      %v1148 = vadd.f32 %v836, %v1099
      %v1149 = vadd.f32 %v839, %v1102
      %v1150 = vadd.f32 %v842, %v1105
      %v1151 = vadd.f32 %v845, %v1108
      %v1152 = vadd.f32 %v848, %v1111
      %v1153 = vadd.f32 %v851, %v1114
      %v1154 = vadd.f32 %v854, %v1117
      %v1155 = vadd.f32 %v857, %v1120
      %v1156 = vadd.f32 %v860, %v1123
      %s1157 = scalar_lea.vmem %s1, 12
      %v1158 = vld [vmem:[%s1157] sm:$0xf]
      %v1160 = vsel %vm204, %v363, 0
      %v1163 = vsel %vm204, %v364, 0
      %v1166 = vsel %vm565, %v1158, 0
      %1168 = vmatpush.msra.mxu0 0.0
      %1169 = vmatpush.msra.mxu0 0.0
      %1170 = vmatpush.msra.mxu0 0.0
      %1171 = vmatpush.msra.mxu0 0.0
      %1172 = vmatpush.msra.mxu0 0.0
      %1173 = vmatpush.msra.mxu0 0.0
      %1174 = vmatpush.msra.mxu0 0.0
      %1175 = vmatpush.msra.mxu0 0.0
      %1176 = vmatpush.msra.mxu0 0.0
      %1177 = vmatpush.msra.mxu0 0.0
      %1178 = vmatpush.msra.mxu0 0.0
      %1179 = vmatpush.msra.mxu0 0.0
      %1180 = vmatpush.msra.mxu0 0.0
      %1181 = vmatpush.msra.mxu0 0.0
      %1182 = vmatpush.msra.mxu0 0.0
      %1183 = vmatpush.msra.mxu0 %v1166
      %1184 = vmatmul.f32.gmra.mxu0 %v686
      %v1185 = vpop.f32.mrf.mxu0
      %v1186 = vadd.f32 0.0, %v1185
      %1187 = vmatmul.f32.gmra.mxu0 %v688
      %v1188 = vpop.f32.mrf.mxu0
      %v1189 = vadd.f32 0.0, %v1188
      %1190 = vmatmul.f32.gmra.mxu0 %v690
      %v1191 = vpop.f32.mrf.mxu0
      %v1192 = vadd.f32 0.0, %v1191
      %1193 = vmatmul.f32.gmra.mxu0 %v692
      %v1194 = vpop.f32.mrf.mxu0
      %v1195 = vadd.f32 0.0, %v1194
      %1196 = vmatmul.f32.gmra.mxu0 %v694
      %v1197 = vpop.f32.mrf.mxu0
      %v1198 = vadd.f32 0.0, %v1197
      %1199 = vmatmul.f32.gmra.mxu0 %v696
      %v1200 = vpop.f32.mrf.mxu0
      %v1201 = vadd.f32 0.0, %v1200
      %1202 = vmatmul.f32.gmra.mxu0 %v698
      %v1203 = vpop.f32.mrf.mxu0
      %v1204 = vadd.f32 0.0, %v1203
      %1205 = vmatmul.f32.gmra.mxu0 %v700
      %v1206 = vpop.f32.mrf.mxu0
      %v1207 = vadd.f32 0.0, %v1206
      %1208 = vmatmul.f32.gmra.mxu0 %v702
      %v1209 = vpop.f32.mrf.mxu0
      %v1210 = vadd.f32 0.0, %v1209
      %1211 = vmatmul.f32.gmra.mxu0 %v704
      %v1212 = vpop.f32.mrf.mxu0
      %v1213 = vadd.f32 0.0, %v1212
      %1214 = vmatmul.f32.gmra.mxu0 %v706
      %v1215 = vpop.f32.mrf.mxu0
      %v1216 = vadd.f32 0.0, %v1215
      %1217 = vmatmul.f32.gmra.mxu0 %v708
      %v1218 = vpop.f32.mrf.mxu0
      %v1219 = vadd.f32 0.0, %v1218
      %1220 = vmatmul.f32.gmra.mxu0 %v710
      %v1221 = vpop.f32.mrf.mxu0
      %v1222 = vadd.f32 0.0, %v1221
      %1223 = vmatmul.f32.gmra.mxu0 %v712
      %v1224 = vpop.f32.mrf.mxu0
      %v1225 = vadd.f32 0.0, %v1224
      %1226 = vmatmul.f32.gmra.mxu0 %v714
      %v1227 = vpop.f32.mrf.mxu0
      %v1228 = vadd.f32 0.0, %v1227
      %1229 = vmatmul.f32.gmra.mxu0 %v716
      %v1230 = vpop.f32.mrf.mxu0
      %v1231 = vadd.f32 0.0, %v1230
      %1232 = vmatmul.f32.gmra.mxu0 %v718
      %v1233 = vpop.f32.mrf.mxu0
      %v1234 = vadd.f32 0.0, %v1233
      %1235 = vmatmul.f32.gmra.mxu0 %v720
      %v1236 = vpop.f32.mrf.mxu0
      %v1237 = vadd.f32 0.0, %v1236
      %1238 = vmatmul.f32.gmra.mxu0 %v722
      %v1239 = vpop.f32.mrf.mxu0
      %v1240 = vadd.f32 0.0, %v1239
      %1241 = vmatmul.f32.gmra.mxu0 %v724
      %v1242 = vpop.f32.mrf.mxu0
      %v1243 = vadd.f32 0.0, %v1242
      %1244 = vmatmul.f32.gmra.mxu0 %v726
      %v1245 = vpop.f32.mrf.mxu0
      %v1246 = vadd.f32 0.0, %v1245
      %1247 = vmatmul.f32.gmra.mxu0 %v728
      %v1248 = vpop.f32.mrf.mxu0
      %v1249 = vadd.f32 0.0, %v1248
      %1250 = vmatmul.f32.gmra.mxu0 %v730
      %v1251 = vpop.f32.mrf.mxu0
      %v1252 = vadd.f32 0.0, %v1251
      %1253 = vmatmul.f32.gmra.mxu0 %v732
      %v1254 = vpop.f32.mrf.mxu0
      %v1255 = vadd.f32 0.0, %v1254
      %1256 = vmatmul.f32.gmra.mxu0 %v734
      %v1257 = vpop.f32.mrf.mxu0
      %v1258 = vadd.f32 0.0, %v1257
      %1259 = vmatmul.f32.gmra.mxu0 %v736
      %v1260 = vpop.f32.mrf.mxu0
      %v1261 = vadd.f32 0.0, %v1260
      %1262 = vmatmul.f32.gmra.mxu0 %v738
      %v1263 = vpop.f32.mrf.mxu0
      %v1264 = vadd.f32 0.0, %v1263
      %1265 = vmatmul.f32.gmra.mxu0 %v740
      %v1266 = vpop.f32.mrf.mxu0
      %v1267 = vadd.f32 0.0, %v1266
      %1268 = vmatmul.f32.gmra.mxu0 %v742
      %v1269 = vpop.f32.mrf.mxu0
      %v1270 = vadd.f32 0.0, %v1269
      %1271 = vmatmul.f32.gmra.mxu0 %v744
      %v1272 = vpop.f32.mrf.mxu0
      %v1273 = vadd.f32 0.0, %v1272
      %1274 = vmatmul.f32.gmra.mxu0 %v1160
      %v1275 = vpop.f32.mrf.mxu0
      %v1276 = vadd.f32 0.0, %v1275
      %1277 = vmatmul.f32.gmra.mxu0 %v1163
      %v1278 = vpop.f32.mrf.mxu0
      %v1279 = vadd.f32 0.0, %v1278
      %1280 = vdwg.mxu0
      %v1281 = vadd.f32 %v1125, %v1186
      %v1282 = vadd.f32 %v1126, %v1189
      %v1283 = vadd.f32 %v1127, %v1192
      %v1284 = vadd.f32 %v1128, %v1195
      %v1285 = vadd.f32 %v1129, %v1198
      %v1286 = vadd.f32 %v1130, %v1201
      %v1287 = vadd.f32 %v1131, %v1204
      %v1288 = vadd.f32 %v1132, %v1207
      %v1289 = vadd.f32 %v1133, %v1210
      %v1290 = vadd.f32 %v1134, %v1213
      %v1291 = vadd.f32 %v1135, %v1216
      %v1292 = vadd.f32 %v1136, %v1219
      %v1293 = vadd.f32 %v1137, %v1222
      %v1294 = vadd.f32 %v1138, %v1225
      %v1295 = vadd.f32 %v1139, %v1228
      %v1296 = vadd.f32 %v1140, %v1231
      %v1297 = vadd.f32 %v1141, %v1234
      %v1298 = vadd.f32 %v1142, %v1237
      %v1299 = vadd.f32 %v1143, %v1240
      %v1300 = vadd.f32 %v1144, %v1243
      %v1301 = vadd.f32 %v1145, %v1246
      %v1302 = vadd.f32 %v1146, %v1249
      %v1303 = vadd.f32 %v1147, %v1252
      %v1304 = vadd.f32 %v1148, %v1255
      %v1305 = vadd.f32 %v1149, %v1258
      %v1306 = vadd.f32 %v1150, %v1261
      %v1307 = vadd.f32 %v1151, %v1264
      %v1308 = vadd.f32 %v1152, %v1267
      %v1309 = vadd.f32 %v1153, %v1270
      %v1310 = vadd.f32 %v1154, %v1273
      %v1311 = vadd.f32 %v1155, %v1276
      %v1312 = vadd.f32 %v1156, %v1279
      %v1314 = vrot.slane %v363, 1
      %v1315 = vrot.slane %v364, 1
      %v1316 = vsel %vm418, %v1314, %v1315
      %v1317 = vrot.slane %v365, 1
      %v1318 = vsel %vm418, %v1315, %v1317
      %s1319 = scalar_lea.vmem %s1, 16
      %v1320 = vld [vmem:[%s1319] sm:$0xf]
      %v1321 = vsel %vm204, %v1316, 0
      %v1323 = vsel %vm204, %v1318, 0
      %v1326 = vsel %vm565, %v1320, 0
      %1328 = vmatpush.msra.mxu0 0.0
      %1329 = vmatpush.msra.mxu0 0.0
      %1330 = vmatpush.msra.mxu0 0.0
      %1331 = vmatpush.msra.mxu0 0.0
      %1332 = vmatpush.msra.mxu0 0.0
      %1333 = vmatpush.msra.mxu0 0.0
      %1334 = vmatpush.msra.mxu0 0.0
      %1335 = vmatpush.msra.mxu0 0.0
      %1336 = vmatpush.msra.mxu0 0.0
      %1337 = vmatpush.msra.mxu0 0.0
      %1338 = vmatpush.msra.mxu0 0.0
      %1339 = vmatpush.msra.mxu0 0.0
      %1340 = vmatpush.msra.mxu0 0.0
      %1341 = vmatpush.msra.mxu0 0.0
      %1342 = vmatpush.msra.mxu0 0.0
      %1343 = vmatpush.msra.mxu0 %v1326
      %1344 = vmatmul.f32.gmra.mxu0 %v505
      %v1345 = vpop.f32.mrf.mxu0
      %v1346 = vadd.f32 0.0, %v1345
      %1347 = vmatmul.f32.gmra.mxu0 %v507
      %v1348 = vpop.f32.mrf.mxu0
      %v1349 = vadd.f32 0.0, %v1348
      %1350 = vmatmul.f32.gmra.mxu0 %v509
      %v1351 = vpop.f32.mrf.mxu0
      %v1352 = vadd.f32 0.0, %v1351
      %1353 = vmatmul.f32.gmra.mxu0 %v511
      %v1354 = vpop.f32.mrf.mxu0
      %v1355 = vadd.f32 0.0, %v1354
      %1356 = vmatmul.f32.gmra.mxu0 %v513
      %v1357 = vpop.f32.mrf.mxu0
      %v1358 = vadd.f32 0.0, %v1357
      %1359 = vmatmul.f32.gmra.mxu0 %v515
      %v1360 = vpop.f32.mrf.mxu0
      %v1361 = vadd.f32 0.0, %v1360
      %1362 = vmatmul.f32.gmra.mxu0 %v517
      %v1363 = vpop.f32.mrf.mxu0
      %v1364 = vadd.f32 0.0, %v1363
      %1365 = vmatmul.f32.gmra.mxu0 %v519
      %v1366 = vpop.f32.mrf.mxu0
      %v1367 = vadd.f32 0.0, %v1366
      %1368 = vmatmul.f32.gmra.mxu0 %v521
      %v1369 = vpop.f32.mrf.mxu0
      %v1370 = vadd.f32 0.0, %v1369
      %1371 = vmatmul.f32.gmra.mxu0 %v523
      %v1372 = vpop.f32.mrf.mxu0
      %v1373 = vadd.f32 0.0, %v1372
      %1374 = vmatmul.f32.gmra.mxu0 %v525
      %v1375 = vpop.f32.mrf.mxu0
      %v1376 = vadd.f32 0.0, %v1375
      %1377 = vmatmul.f32.gmra.mxu0 %v527
      %v1378 = vpop.f32.mrf.mxu0
      %v1379 = vadd.f32 0.0, %v1378
      %1380 = vmatmul.f32.gmra.mxu0 %v529
      %v1381 = vpop.f32.mrf.mxu0
      %v1382 = vadd.f32 0.0, %v1381
      %1383 = vmatmul.f32.gmra.mxu0 %v531
      %v1384 = vpop.f32.mrf.mxu0
      %v1385 = vadd.f32 0.0, %v1384
      %1386 = vmatmul.f32.gmra.mxu0 %v533
      %v1387 = vpop.f32.mrf.mxu0
      %v1388 = vadd.f32 0.0, %v1387
      %1389 = vmatmul.f32.gmra.mxu0 %v535
      %v1390 = vpop.f32.mrf.mxu0
      %v1391 = vadd.f32 0.0, %v1390
      %1392 = vmatmul.f32.gmra.mxu0 %v537
      %v1393 = vpop.f32.mrf.mxu0
      %v1394 = vadd.f32 0.0, %v1393
      %1395 = vmatmul.f32.gmra.mxu0 %v539
      %v1396 = vpop.f32.mrf.mxu0
      %v1397 = vadd.f32 0.0, %v1396
      %1398 = vmatmul.f32.gmra.mxu0 %v541
      %v1399 = vpop.f32.mrf.mxu0
      %v1400 = vadd.f32 0.0, %v1399
      %1401 = vmatmul.f32.gmra.mxu0 %v543
      %v1402 = vpop.f32.mrf.mxu0
      %v1403 = vadd.f32 0.0, %v1402
      %1404 = vmatmul.f32.gmra.mxu0 %v545
      %v1405 = vpop.f32.mrf.mxu0
      %v1406 = vadd.f32 0.0, %v1405
      %1407 = vmatmul.f32.gmra.mxu0 %v547
      %v1408 = vpop.f32.mrf.mxu0
      %v1409 = vadd.f32 0.0, %v1408
      %1410 = vmatmul.f32.gmra.mxu0 %v549
      %v1411 = vpop.f32.mrf.mxu0
      %v1412 = vadd.f32 0.0, %v1411
      %1413 = vmatmul.f32.gmra.mxu0 %v551
      %v1414 = vpop.f32.mrf.mxu0
      %v1415 = vadd.f32 0.0, %v1414
      %1416 = vmatmul.f32.gmra.mxu0 %v553
      %v1417 = vpop.f32.mrf.mxu0
      %v1418 = vadd.f32 0.0, %v1417
      %1419 = vmatmul.f32.gmra.mxu0 %v555
      %v1420 = vpop.f32.mrf.mxu0
      %v1421 = vadd.f32 0.0, %v1420
      %1422 = vmatmul.f32.gmra.mxu0 %v557
      %v1423 = vpop.f32.mrf.mxu0
      %v1424 = vadd.f32 0.0, %v1423
      %1425 = vmatmul.f32.gmra.mxu0 %v559
      %v1426 = vpop.f32.mrf.mxu0
      %v1427 = vadd.f32 0.0, %v1426
      %1428 = vmatmul.f32.gmra.mxu0 %v561
      %v1429 = vpop.f32.mrf.mxu0
      %v1430 = vadd.f32 0.0, %v1429
      %1431 = vmatmul.f32.gmra.mxu0 %v563
      %v1432 = vpop.f32.mrf.mxu0
      %v1433 = vadd.f32 0.0, %v1432
      %1434 = vmatmul.f32.gmra.mxu0 %v1321
      %v1435 = vpop.f32.mrf.mxu0
      %v1436 = vadd.f32 0.0, %v1435
      %1437 = vmatmul.f32.gmra.mxu0 %v1323
      %v1438 = vpop.f32.mrf.mxu0
      %v1439 = vadd.f32 0.0, %v1438
      %1440 = vdwg.mxu0
      %v1441 = vadd.f32 %v1281, %v1346
      %v1442 = vadd.f32 %v1282, %v1349
      %v1443 = vadd.f32 %v1283, %v1352
      %v1444 = vadd.f32 %v1284, %v1355
      %v1445 = vadd.f32 %v1285, %v1358
      %v1446 = vadd.f32 %v1286, %v1361
      %v1447 = vadd.f32 %v1287, %v1364
      %v1448 = vadd.f32 %v1288, %v1367
      %v1449 = vadd.f32 %v1289, %v1370
      %v1450 = vadd.f32 %v1290, %v1373
      %v1451 = vadd.f32 %v1291, %v1376
      %v1452 = vadd.f32 %v1292, %v1379
      %v1453 = vadd.f32 %v1293, %v1382
      %v1454 = vadd.f32 %v1294, %v1385
      %v1455 = vadd.f32 %v1295, %v1388
      %v1456 = vadd.f32 %v1296, %v1391
      %v1457 = vadd.f32 %v1297, %v1394
      %v1458 = vadd.f32 %v1298, %v1397
      %v1459 = vadd.f32 %v1299, %v1400
      %v1460 = vadd.f32 %v1300, %v1403
      %v1461 = vadd.f32 %v1301, %v1406
      %v1462 = vadd.f32 %v1302, %v1409
      %v1463 = vadd.f32 %v1303, %v1412
      %v1464 = vadd.f32 %v1304, %v1415
      %v1465 = vadd.f32 %v1305, %v1418
      %v1466 = vadd.f32 %v1306, %v1421
      %v1467 = vadd.f32 %v1307, %v1424
      %v1468 = vadd.f32 %v1308, %v1427
      %v1469 = vadd.f32 %v1309, %v1430
      %v1470 = vadd.f32 %v1310, %v1433
      %v1471 = vadd.f32 %v1311, %v1436
      %v1472 = vadd.f32 %v1312, %v1439
      %v1473 = vrot.slane %v363, 2
      %v1474 = vrot.slane %v364, 2
      %v1475 = vsel %vm862, %v1473, %v1474
      %v1476 = vrot.slane %v365, 2
      %v1477 = vsel %vm862, %v1474, %v1476
      %s1478 = scalar_lea.vmem %s1, 20
      %v1479 = vld [vmem:[%s1478] sm:$0xf]
      %v1480 = vsel %vm204, %v1475, 0
      %v1482 = vsel %vm204, %v1477, 0
      %v1485 = vsel %vm565, %v1479, 0
      %1487 = vmatpush.msra.mxu0 0.0
      %1488 = vmatpush.msra.mxu0 0.0
      %1489 = vmatpush.msra.mxu0 0.0
      %1490 = vmatpush.msra.mxu0 0.0
      %1491 = vmatpush.msra.mxu0 0.0
      %1492 = vmatpush.msra.mxu0 0.0
      %1493 = vmatpush.msra.mxu0 0.0
      %1494 = vmatpush.msra.mxu0 0.0
      %1495 = vmatpush.msra.mxu0 0.0
      %1496 = vmatpush.msra.mxu0 0.0
      %1497 = vmatpush.msra.mxu0 0.0
      %1498 = vmatpush.msra.mxu0 0.0
      %1499 = vmatpush.msra.mxu0 0.0
      %1500 = vmatpush.msra.mxu0 0.0
      %1501 = vmatpush.msra.mxu0 0.0
      %1502 = vmatpush.msra.mxu0 %v1485
      %1503 = vmatmul.f32.gmra.mxu0 %v949
      %v1504 = vpop.f32.mrf.mxu0
      %v1505 = vadd.f32 0.0, %v1504
      %1506 = vmatmul.f32.gmra.mxu0 %v951
      %v1507 = vpop.f32.mrf.mxu0
      %v1508 = vadd.f32 0.0, %v1507
      %1509 = vmatmul.f32.gmra.mxu0 %v953
      %v1510 = vpop.f32.mrf.mxu0
      %v1511 = vadd.f32 0.0, %v1510
      %1512 = vmatmul.f32.gmra.mxu0 %v955
      %v1513 = vpop.f32.mrf.mxu0
      %v1514 = vadd.f32 0.0, %v1513
      %1515 = vmatmul.f32.gmra.mxu0 %v957
      %v1516 = vpop.f32.mrf.mxu0
      %v1517 = vadd.f32 0.0, %v1516
      %1518 = vmatmul.f32.gmra.mxu0 %v959
      %v1519 = vpop.f32.mrf.mxu0
      %v1520 = vadd.f32 0.0, %v1519
      %1521 = vmatmul.f32.gmra.mxu0 %v961
      %v1522 = vpop.f32.mrf.mxu0
      %v1523 = vadd.f32 0.0, %v1522
      %1524 = vmatmul.f32.gmra.mxu0 %v963
      %v1525 = vpop.f32.mrf.mxu0
      %v1526 = vadd.f32 0.0, %v1525
      %1527 = vmatmul.f32.gmra.mxu0 %v965
      %v1528 = vpop.f32.mrf.mxu0
      %v1529 = vadd.f32 0.0, %v1528
      %1530 = vmatmul.f32.gmra.mxu0 %v967
      %v1531 = vpop.f32.mrf.mxu0
      %v1532 = vadd.f32 0.0, %v1531
      %1533 = vmatmul.f32.gmra.mxu0 %v969
      %v1534 = vpop.f32.mrf.mxu0
      %v1535 = vadd.f32 0.0, %v1534
      %1536 = vmatmul.f32.gmra.mxu0 %v971
      %v1537 = vpop.f32.mrf.mxu0
      %v1538 = vadd.f32 0.0, %v1537
      %1539 = vmatmul.f32.gmra.mxu0 %v973
      %v1540 = vpop.f32.mrf.mxu0
      %v1541 = vadd.f32 0.0, %v1540
      %1542 = vmatmul.f32.gmra.mxu0 %v975
      %v1543 = vpop.f32.mrf.mxu0
      %v1544 = vadd.f32 0.0, %v1543
      %1545 = vmatmul.f32.gmra.mxu0 %v977
      %v1546 = vpop.f32.mrf.mxu0
      %v1547 = vadd.f32 0.0, %v1546
      %1548 = vmatmul.f32.gmra.mxu0 %v979
      %v1549 = vpop.f32.mrf.mxu0
      %v1550 = vadd.f32 0.0, %v1549
      %1551 = vmatmul.f32.gmra.mxu0 %v981
      %v1552 = vpop.f32.mrf.mxu0
      %v1553 = vadd.f32 0.0, %v1552
      %1554 = vmatmul.f32.gmra.mxu0 %v983
      %v1555 = vpop.f32.mrf.mxu0
      %v1556 = vadd.f32 0.0, %v1555
      %1557 = vmatmul.f32.gmra.mxu0 %v985
      %v1558 = vpop.f32.mrf.mxu0
      %v1559 = vadd.f32 0.0, %v1558
      %1560 = vmatmul.f32.gmra.mxu0 %v987
      %v1561 = vpop.f32.mrf.mxu0
      %v1562 = vadd.f32 0.0, %v1561
      %1563 = vmatmul.f32.gmra.mxu0 %v989
      %v1564 = vpop.f32.mrf.mxu0
      %v1565 = vadd.f32 0.0, %v1564
      %1566 = vmatmul.f32.gmra.mxu0 %v991
      %v1567 = vpop.f32.mrf.mxu0
      %v1568 = vadd.f32 0.0, %v1567
      %1569 = vmatmul.f32.gmra.mxu0 %v993
      %v1570 = vpop.f32.mrf.mxu0
      %v1571 = vadd.f32 0.0, %v1570
      %1572 = vmatmul.f32.gmra.mxu0 %v995
      %v1573 = vpop.f32.mrf.mxu0
      %v1574 = vadd.f32 0.0, %v1573
      %1575 = vmatmul.f32.gmra.mxu0 %v997
      %v1576 = vpop.f32.mrf.mxu0
      %v1577 = vadd.f32 0.0, %v1576
      %1578 = vmatmul.f32.gmra.mxu0 %v999
      %v1579 = vpop.f32.mrf.mxu0
      %v1580 = vadd.f32 0.0, %v1579
      %1581 = vmatmul.f32.gmra.mxu0 %v1001
      %v1582 = vpop.f32.mrf.mxu0
      %v1583 = vadd.f32 0.0, %v1582
      %1584 = vmatmul.f32.gmra.mxu0 %v1003
      %v1585 = vpop.f32.mrf.mxu0
      %v1586 = vadd.f32 0.0, %v1585
      %1587 = vmatmul.f32.gmra.mxu0 %v1005
      %v1588 = vpop.f32.mrf.mxu0
      %v1589 = vadd.f32 0.0, %v1588
      %1590 = vmatmul.f32.gmra.mxu0 %v1007
      %v1591 = vpop.f32.mrf.mxu0
      %v1592 = vadd.f32 0.0, %v1591
      %1593 = vmatmul.f32.gmra.mxu0 %v1480
      %v1594 = vpop.f32.mrf.mxu0
      %v1595 = vadd.f32 0.0, %v1594
      %1596 = vmatmul.f32.gmra.mxu0 %v1482
      %v1597 = vpop.f32.mrf.mxu0
      %v1598 = vadd.f32 0.0, %v1597
      %1599 = vdwg.mxu0
      %v1600 = vadd.f32 %v1441, %v1505
      %v1601 = vadd.f32 %v1442, %v1508
      %v1602 = vadd.f32 %v1443, %v1511
      %v1603 = vadd.f32 %v1444, %v1514
      %v1604 = vadd.f32 %v1445, %v1517
      %v1605 = vadd.f32 %v1446, %v1520
      %v1606 = vadd.f32 %v1447, %v1523
      %v1607 = vadd.f32 %v1448, %v1526
      %v1608 = vadd.f32 %v1449, %v1529
      %v1609 = vadd.f32 %v1450, %v1532
      %v1610 = vadd.f32 %v1451, %v1535
      %v1611 = vadd.f32 %v1452, %v1538
      %v1612 = vadd.f32 %v1453, %v1541
      %v1613 = vadd.f32 %v1454, %v1544
      %v1614 = vadd.f32 %v1455, %v1547
      %v1615 = vadd.f32 %v1456, %v1550
      %v1616 = vadd.f32 %v1457, %v1553
      %v1617 = vadd.f32 %v1458, %v1556
      %v1618 = vadd.f32 %v1459, %v1559
      %v1619 = vadd.f32 %v1460, %v1562
      %v1620 = vadd.f32 %v1461, %v1565
      %v1621 = vadd.f32 %v1462, %v1568
      %v1622 = vadd.f32 %v1463, %v1571
      %v1623 = vadd.f32 %v1464, %v1574
      %v1624 = vadd.f32 %v1465, %v1577
      %v1625 = vadd.f32 %v1466, %v1580
      %v1626 = vadd.f32 %v1467, %v1583
      %v1627 = vadd.f32 %v1468, %v1586
      %v1628 = vadd.f32 %v1469, %v1589
      %v1629 = vadd.f32 %v1470, %v1592
      %v1630 = vadd.f32 %v1471, %v1595
      %v1631 = vadd.f32 %v1472, %v1598
      %s1632 = scalar_lea.vmem %s1, 24
      %v1633 = vld [vmem:[%s1632] sm:$0xf]
      %v1635 = vsel %vm204, %v366, 0
      %v1638 = vsel %vm204, %v367, 0
      %v1641 = vsel %vm565, %v1633, 0
      %1643 = vmatpush.msra.mxu0 0.0
      %1644 = vmatpush.msra.mxu0 0.0
      %1645 = vmatpush.msra.mxu0 0.0
      %1646 = vmatpush.msra.mxu0 0.0
      %1647 = vmatpush.msra.mxu0 0.0
      %1648 = vmatpush.msra.mxu0 0.0
      %1649 = vmatpush.msra.mxu0 0.0
      %1650 = vmatpush.msra.mxu0 0.0
      %1651 = vmatpush.msra.mxu0 0.0
      %1652 = vmatpush.msra.mxu0 0.0
      %1653 = vmatpush.msra.mxu0 0.0
      %1654 = vmatpush.msra.mxu0 0.0
      %1655 = vmatpush.msra.mxu0 0.0
      %1656 = vmatpush.msra.mxu0 0.0
      %1657 = vmatpush.msra.mxu0 0.0
      %1658 = vmatpush.msra.mxu0 %v1641
      %1659 = vmatmul.f32.gmra.mxu0 %v690
      %v1660 = vpop.f32.mrf.mxu0
      %v1661 = vadd.f32 0.0, %v1660
      %1662 = vmatmul.f32.gmra.mxu0 %v692
      %v1663 = vpop.f32.mrf.mxu0
      %v1664 = vadd.f32 0.0, %v1663
      %1665 = vmatmul.f32.gmra.mxu0 %v694
      %v1666 = vpop.f32.mrf.mxu0
      %v1667 = vadd.f32 0.0, %v1666
      %1668 = vmatmul.f32.gmra.mxu0 %v696
      %v1669 = vpop.f32.mrf.mxu0
      %v1670 = vadd.f32 0.0, %v1669
      %1671 = vmatmul.f32.gmra.mxu0 %v698
      %v1672 = vpop.f32.mrf.mxu0
      %v1673 = vadd.f32 0.0, %v1672
      %1674 = vmatmul.f32.gmra.mxu0 %v700
      %v1675 = vpop.f32.mrf.mxu0
      %v1676 = vadd.f32 0.0, %v1675
      %1677 = vmatmul.f32.gmra.mxu0 %v702
      %v1678 = vpop.f32.mrf.mxu0
      %v1679 = vadd.f32 0.0, %v1678
      %1680 = vmatmul.f32.gmra.mxu0 %v704
      %v1681 = vpop.f32.mrf.mxu0
      %v1682 = vadd.f32 0.0, %v1681
      %1683 = vmatmul.f32.gmra.mxu0 %v706
      %v1684 = vpop.f32.mrf.mxu0
      %v1685 = vadd.f32 0.0, %v1684
      %1686 = vmatmul.f32.gmra.mxu0 %v708
      %v1687 = vpop.f32.mrf.mxu0
      %v1688 = vadd.f32 0.0, %v1687
      %1689 = vmatmul.f32.gmra.mxu0 %v710
      %v1690 = vpop.f32.mrf.mxu0
      %v1691 = vadd.f32 0.0, %v1690
      %1692 = vmatmul.f32.gmra.mxu0 %v712
      %v1693 = vpop.f32.mrf.mxu0
      %v1694 = vadd.f32 0.0, %v1693
      %1695 = vmatmul.f32.gmra.mxu0 %v714
      %v1696 = vpop.f32.mrf.mxu0
      %v1697 = vadd.f32 0.0, %v1696
      %1698 = vmatmul.f32.gmra.mxu0 %v716
      %v1699 = vpop.f32.mrf.mxu0
      %v1700 = vadd.f32 0.0, %v1699
      %1701 = vmatmul.f32.gmra.mxu0 %v718
      %v1702 = vpop.f32.mrf.mxu0
      %v1703 = vadd.f32 0.0, %v1702
      %1704 = vmatmul.f32.gmra.mxu0 %v720
      %v1705 = vpop.f32.mrf.mxu0
      %v1706 = vadd.f32 0.0, %v1705
      %1707 = vmatmul.f32.gmra.mxu0 %v722
      %v1708 = vpop.f32.mrf.mxu0
      %v1709 = vadd.f32 0.0, %v1708
      %1710 = vmatmul.f32.gmra.mxu0 %v724
      %v1711 = vpop.f32.mrf.mxu0
      %v1712 = vadd.f32 0.0, %v1711
      %1713 = vmatmul.f32.gmra.mxu0 %v726
      %v1714 = vpop.f32.mrf.mxu0
      %v1715 = vadd.f32 0.0, %v1714
      %1716 = vmatmul.f32.gmra.mxu0 %v728
      %v1717 = vpop.f32.mrf.mxu0
      %v1718 = vadd.f32 0.0, %v1717
      %1719 = vmatmul.f32.gmra.mxu0 %v730
      %v1720 = vpop.f32.mrf.mxu0
      %v1721 = vadd.f32 0.0, %v1720
      %1722 = vmatmul.f32.gmra.mxu0 %v732
      %v1723 = vpop.f32.mrf.mxu0
      %v1724 = vadd.f32 0.0, %v1723
      %1725 = vmatmul.f32.gmra.mxu0 %v734
      %v1726 = vpop.f32.mrf.mxu0
      %v1727 = vadd.f32 0.0, %v1726
      %1728 = vmatmul.f32.gmra.mxu0 %v736
      %v1729 = vpop.f32.mrf.mxu0
      %v1730 = vadd.f32 0.0, %v1729
      %1731 = vmatmul.f32.gmra.mxu0 %v738
      %v1732 = vpop.f32.mrf.mxu0
      %v1733 = vadd.f32 0.0, %v1732
      %1734 = vmatmul.f32.gmra.mxu0 %v740
      %v1735 = vpop.f32.mrf.mxu0
      %v1736 = vadd.f32 0.0, %v1735
      %1737 = vmatmul.f32.gmra.mxu0 %v742
      %v1738 = vpop.f32.mrf.mxu0
      %v1739 = vadd.f32 0.0, %v1738
      %1740 = vmatmul.f32.gmra.mxu0 %v744
      %v1741 = vpop.f32.mrf.mxu0
      %v1742 = vadd.f32 0.0, %v1741
      %1743 = vmatmul.f32.gmra.mxu0 %v1160
      %v1744 = vpop.f32.mrf.mxu0
      %v1745 = vadd.f32 0.0, %v1744
      %1746 = vmatmul.f32.gmra.mxu0 %v1163
      %v1747 = vpop.f32.mrf.mxu0
      %v1748 = vadd.f32 0.0, %v1747
      %1749 = vmatmul.f32.gmra.mxu0 %v1635
      %v1750 = vpop.f32.mrf.mxu0
      %v1751 = vadd.f32 0.0, %v1750
      %1752 = vmatmul.f32.gmra.mxu0 %v1638
      %v1753 = vpop.f32.mrf.mxu0
      %v1754 = vadd.f32 0.0, %v1753
      %1755 = vdwg.mxu0
      %v1756 = vadd.f32 %v1600, %v1661
      %v1757 = vadd.f32 %v1601, %v1664
      %v1758 = vadd.f32 %v1602, %v1667
      %v1759 = vadd.f32 %v1603, %v1670
      %v1760 = vadd.f32 %v1604, %v1673
      %v1761 = vadd.f32 %v1605, %v1676
      %v1762 = vadd.f32 %v1606, %v1679
      %v1763 = vadd.f32 %v1607, %v1682
      %v1764 = vadd.f32 %v1608, %v1685
      %v1765 = vadd.f32 %v1609, %v1688
      %v1766 = vadd.f32 %v1610, %v1691
      %v1767 = vadd.f32 %v1611, %v1694
      %v1768 = vadd.f32 %v1612, %v1697
      %v1769 = vadd.f32 %v1613, %v1700
      %v1770 = vadd.f32 %v1614, %v1703
      %v1771 = vadd.f32 %v1615, %v1706
      %v1772 = vadd.f32 %v1616, %v1709
      %v1773 = vadd.f32 %v1617, %v1712
      %v1774 = vadd.f32 %v1618, %v1715
      %v1775 = vadd.f32 %v1619, %v1718
      %v1776 = vadd.f32 %v1620, %v1721
      %v1777 = vadd.f32 %v1621, %v1724
      %v1778 = vadd.f32 %v1622, %v1727
      %v1779 = vadd.f32 %v1623, %v1730
      %v1780 = vadd.f32 %v1624, %v1733
      %v1781 = vadd.f32 %v1625, %v1736
      %v1782 = vadd.f32 %v1626, %v1739
      %v1783 = vadd.f32 %v1627, %v1742
      %v1784 = vadd.f32 %v1628, %v1745
      %v1785 = vadd.f32 %v1629, %v1748
      %v1786 = vadd.f32 %v1630, %v1751
      %v1787 = vadd.f32 %v1631, %v1754
      %v1789 = vrot.slane %v366, 1
      %v1790 = vrot.slane %v367, 1
      %v1791 = vsel %vm418, %v1789, %v1790
      %v1792 = vrot.slane %v368, 1
      %v1793 = vsel %vm418, %v1790, %v1792
      %s1794 = scalar_lea.vmem %s1, 28
      %v1795 = vld [vmem:[%s1794] sm:$0xf]
      %v1796 = vsel %vm204, %v1791, 0
      %v1798 = vsel %vm204, %v1793, 0
      %v1801 = vsel %vm565, %v1795, 0
      %1803 = vmatpush.msra.mxu0 0.0
      %1804 = vmatpush.msra.mxu0 0.0
      %1805 = vmatpush.msra.mxu0 0.0
      %1806 = vmatpush.msra.mxu0 0.0
      %1807 = vmatpush.msra.mxu0 0.0
      %1808 = vmatpush.msra.mxu0 0.0
      %1809 = vmatpush.msra.mxu0 0.0
      %1810 = vmatpush.msra.mxu0 0.0
      %1811 = vmatpush.msra.mxu0 0.0
      %1812 = vmatpush.msra.mxu0 0.0
      %1813 = vmatpush.msra.mxu0 0.0
      %1814 = vmatpush.msra.mxu0 0.0
      %1815 = vmatpush.msra.mxu0 0.0
      %1816 = vmatpush.msra.mxu0 0.0
      %1817 = vmatpush.msra.mxu0 0.0
      %1818 = vmatpush.msra.mxu0 %v1801
      %1819 = vmatmul.f32.gmra.mxu0 %v509
      %v1820 = vpop.f32.mrf.mxu0
      %v1821 = vadd.f32 0.0, %v1820
      %1822 = vmatmul.f32.gmra.mxu0 %v511
      %v1823 = vpop.f32.mrf.mxu0
      %v1824 = vadd.f32 0.0, %v1823
      %1825 = vmatmul.f32.gmra.mxu0 %v513
      %v1826 = vpop.f32.mrf.mxu0
      %v1827 = vadd.f32 0.0, %v1826
      %1828 = vmatmul.f32.gmra.mxu0 %v515
      %v1829 = vpop.f32.mrf.mxu0
      %v1830 = vadd.f32 0.0, %v1829
      %1831 = vmatmul.f32.gmra.mxu0 %v517
      %v1832 = vpop.f32.mrf.mxu0
      %v1833 = vadd.f32 0.0, %v1832
      %1834 = vmatmul.f32.gmra.mxu0 %v519
      %v1835 = vpop.f32.mrf.mxu0
      %v1836 = vadd.f32 0.0, %v1835
      %1837 = vmatmul.f32.gmra.mxu0 %v521
      %v1838 = vpop.f32.mrf.mxu0
      %v1839 = vadd.f32 0.0, %v1838
      %1840 = vmatmul.f32.gmra.mxu0 %v523
      %v1841 = vpop.f32.mrf.mxu0
      %v1842 = vadd.f32 0.0, %v1841
      %1843 = vmatmul.f32.gmra.mxu0 %v525
      %v1844 = vpop.f32.mrf.mxu0
      %v1845 = vadd.f32 0.0, %v1844
      %1846 = vmatmul.f32.gmra.mxu0 %v527
      %v1847 = vpop.f32.mrf.mxu0
      %v1848 = vadd.f32 0.0, %v1847
      %1849 = vmatmul.f32.gmra.mxu0 %v529
      %v1850 = vpop.f32.mrf.mxu0
      %v1851 = vadd.f32 0.0, %v1850
      %1852 = vmatmul.f32.gmra.mxu0 %v531
      %v1853 = vpop.f32.mrf.mxu0
      %v1854 = vadd.f32 0.0, %v1853
      %1855 = vmatmul.f32.gmra.mxu0 %v533
      %v1856 = vpop.f32.mrf.mxu0
      %v1857 = vadd.f32 0.0, %v1856
      %1858 = vmatmul.f32.gmra.mxu0 %v535
      %v1859 = vpop.f32.mrf.mxu0
      %v1860 = vadd.f32 0.0, %v1859
      %1861 = vmatmul.f32.gmra.mxu0 %v537
      %v1862 = vpop.f32.mrf.mxu0
      %v1863 = vadd.f32 0.0, %v1862
      %1864 = vmatmul.f32.gmra.mxu0 %v539
      %v1865 = vpop.f32.mrf.mxu0
      %v1866 = vadd.f32 0.0, %v1865
      %1867 = vmatmul.f32.gmra.mxu0 %v541
      %v1868 = vpop.f32.mrf.mxu0
      %v1869 = vadd.f32 0.0, %v1868
      %1870 = vmatmul.f32.gmra.mxu0 %v543
      %v1871 = vpop.f32.mrf.mxu0
      %v1872 = vadd.f32 0.0, %v1871
      %1873 = vmatmul.f32.gmra.mxu0 %v545
      %v1874 = vpop.f32.mrf.mxu0
      %v1875 = vadd.f32 0.0, %v1874
      %1876 = vmatmul.f32.gmra.mxu0 %v547
      %v1877 = vpop.f32.mrf.mxu0
      %v1878 = vadd.f32 0.0, %v1877
      %1879 = vmatmul.f32.gmra.mxu0 %v549
      %v1880 = vpop.f32.mrf.mxu0
      %v1881 = vadd.f32 0.0, %v1880
      %1882 = vmatmul.f32.gmra.mxu0 %v551
      %v1883 = vpop.f32.mrf.mxu0
      %v1884 = vadd.f32 0.0, %v1883
      %1885 = vmatmul.f32.gmra.mxu0 %v553
      %v1886 = vpop.f32.mrf.mxu0
      %v1887 = vadd.f32 0.0, %v1886
      %1888 = vmatmul.f32.gmra.mxu0 %v555
      %v1889 = vpop.f32.mrf.mxu0
      %v1890 = vadd.f32 0.0, %v1889
      %1891 = vmatmul.f32.gmra.mxu0 %v557
      %v1892 = vpop.f32.mrf.mxu0
      %v1893 = vadd.f32 0.0, %v1892
      %1894 = vmatmul.f32.gmra.mxu0 %v559
      %v1895 = vpop.f32.mrf.mxu0
      %v1896 = vadd.f32 0.0, %v1895
      %1897 = vmatmul.f32.gmra.mxu0 %v561
      %v1898 = vpop.f32.mrf.mxu0
      %v1899 = vadd.f32 0.0, %v1898
      %1900 = vmatmul.f32.gmra.mxu0 %v563
      %v1901 = vpop.f32.mrf.mxu0
      %v1902 = vadd.f32 0.0, %v1901
      %1903 = vmatmul.f32.gmra.mxu0 %v1321
      %v1904 = vpop.f32.mrf.mxu0
      %v1905 = vadd.f32 0.0, %v1904
      %1906 = vmatmul.f32.gmra.mxu0 %v1323
      %v1907 = vpop.f32.mrf.mxu0
      %v1908 = vadd.f32 0.0, %v1907
      %1909 = vmatmul.f32.gmra.mxu0 %v1796
      %v1910 = vpop.f32.mrf.mxu0
      %v1911 = vadd.f32 0.0, %v1910
      %1912 = vmatmul.f32.gmra.mxu0 %v1798
      %v1913 = vpop.f32.mrf.mxu0
      %v1914 = vadd.f32 0.0, %v1913
      %1915 = vdwg.mxu0
      %v1916 = vadd.f32 %v1756, %v1821
      %v1917 = vadd.f32 %v1757, %v1824
      %v1918 = vadd.f32 %v1758, %v1827
      %v1919 = vadd.f32 %v1759, %v1830
      %v1920 = vadd.f32 %v1760, %v1833
      %v1921 = vadd.f32 %v1761, %v1836
      %v1922 = vadd.f32 %v1762, %v1839
      %v1923 = vadd.f32 %v1763, %v1842
      %v1924 = vadd.f32 %v1764, %v1845
      %v1925 = vadd.f32 %v1765, %v1848
      %v1926 = vadd.f32 %v1766, %v1851
      %v1927 = vadd.f32 %v1767, %v1854
      %v1928 = vadd.f32 %v1768, %v1857
      %v1929 = vadd.f32 %v1769, %v1860
      %v1930 = vadd.f32 %v1770, %v1863
      %v1931 = vadd.f32 %v1771, %v1866
      %v1932 = vadd.f32 %v1772, %v1869
      %v1933 = vadd.f32 %v1773, %v1872
      %v1934 = vadd.f32 %v1774, %v1875
      %v1935 = vadd.f32 %v1775, %v1878
      %v1936 = vadd.f32 %v1776, %v1881
      %v1937 = vadd.f32 %v1777, %v1884
      %v1938 = vadd.f32 %v1778, %v1887
      %v1939 = vadd.f32 %v1779, %v1890
      %v1940 = vadd.f32 %v1780, %v1893
      %v1941 = vadd.f32 %v1781, %v1896
      %v1942 = vadd.f32 %v1782, %v1899
      %v1943 = vadd.f32 %v1783, %v1902
      %v1944 = vadd.f32 %v1784, %v1905
      %v1945 = vadd.f32 %v1785, %v1908
      %v1946 = vadd.f32 %v1786, %v1911
      %v1947 = vadd.f32 %v1787, %v1914
      %v1948 = vrot.slane %v366, 2
      %v1949 = vrot.slane %v367, 2
      %v1950 = vsel %vm862, %v1948, %v1949
      %v1951 = vrot.slane %v368, 2
      %v1952 = vsel %vm862, %v1949, %v1951
      %s1953 = scalar_lea.vmem %s1, 32
      %v1954 = vld [vmem:[%s1953] sm:$0xf]
      %v1955 = vsel %vm204, %v1950, 0
      %v1957 = vsel %vm204, %v1952, 0
      %v1960 = vsel %vm565, %v1954, 0
      %1962 = vmatpush.msra.mxu0 0.0
      %1963 = vmatpush.msra.mxu0 0.0
      %1964 = vmatpush.msra.mxu0 0.0
      %1965 = vmatpush.msra.mxu0 0.0
      %1966 = vmatpush.msra.mxu0 0.0
      %1967 = vmatpush.msra.mxu0 0.0
      %1968 = vmatpush.msra.mxu0 0.0
      %1969 = vmatpush.msra.mxu0 0.0
      %1970 = vmatpush.msra.mxu0 0.0
      %1971 = vmatpush.msra.mxu0 0.0
      %1972 = vmatpush.msra.mxu0 0.0
      %1973 = vmatpush.msra.mxu0 0.0
      %1974 = vmatpush.msra.mxu0 0.0
      %1975 = vmatpush.msra.mxu0 0.0
      %1976 = vmatpush.msra.mxu0 0.0
      %1977 = vmatpush.msra.mxu0 %v1960
      %1978 = vmatmul.f32.gmra.mxu0 %v953
      %v1979 = vpop.f32.mrf.mxu0
      %v1980 = vadd.f32 0.0, %v1979
      %1981 = vmatmul.f32.gmra.mxu0 %v955
      %v1982 = vpop.f32.mrf.mxu0
      %v1983 = vadd.f32 0.0, %v1982
      %1984 = vmatmul.f32.gmra.mxu0 %v957
      %v1985 = vpop.f32.mrf.mxu0
      %v1986 = vadd.f32 0.0, %v1985
      %1987 = vmatmul.f32.gmra.mxu0 %v959
      %v1988 = vpop.f32.mrf.mxu0
      %v1989 = vadd.f32 0.0, %v1988
      %1990 = vmatmul.f32.gmra.mxu0 %v961
      %v1991 = vpop.f32.mrf.mxu0
      %v1992 = vadd.f32 0.0, %v1991
      %1993 = vmatmul.f32.gmra.mxu0 %v963
      %v1994 = vpop.f32.mrf.mxu0
      %v1995 = vadd.f32 0.0, %v1994
      %1996 = vmatmul.f32.gmra.mxu0 %v965
      %v1997 = vpop.f32.mrf.mxu0
      %v1998 = vadd.f32 0.0, %v1997
      %1999 = vmatmul.f32.gmra.mxu0 %v967
      %v2000 = vpop.f32.mrf.mxu0
      %v2001 = vadd.f32 0.0, %v2000
      %2002 = vmatmul.f32.gmra.mxu0 %v969
      %v2003 = vpop.f32.mrf.mxu0
      %v2004 = vadd.f32 0.0, %v2003
      %2005 = vmatmul.f32.gmra.mxu0 %v971
      %v2006 = vpop.f32.mrf.mxu0
      %v2007 = vadd.f32 0.0, %v2006
      %2008 = vmatmul.f32.gmra.mxu0 %v973
      %v2009 = vpop.f32.mrf.mxu0
      %v2010 = vadd.f32 0.0, %v2009
      %2011 = vmatmul.f32.gmra.mxu0 %v975
      %v2012 = vpop.f32.mrf.mxu0
      %v2013 = vadd.f32 0.0, %v2012
      %2014 = vmatmul.f32.gmra.mxu0 %v977
      %v2015 = vpop.f32.mrf.mxu0
      %v2016 = vadd.f32 0.0, %v2015
      %2017 = vmatmul.f32.gmra.mxu0 %v979
      %v2018 = vpop.f32.mrf.mxu0
      %v2019 = vadd.f32 0.0, %v2018
      %2020 = vmatmul.f32.gmra.mxu0 %v981
      %v2021 = vpop.f32.mrf.mxu0
      %v2022 = vadd.f32 0.0, %v2021
      %2023 = vmatmul.f32.gmra.mxu0 %v983
      %v2024 = vpop.f32.mrf.mxu0
      %v2025 = vadd.f32 0.0, %v2024
      %2026 = vmatmul.f32.gmra.mxu0 %v985
      %v2027 = vpop.f32.mrf.mxu0
      %v2028 = vadd.f32 0.0, %v2027
      %2029 = vmatmul.f32.gmra.mxu0 %v987
      %v2030 = vpop.f32.mrf.mxu0
      %v2031 = vadd.f32 0.0, %v2030
      %2032 = vmatmul.f32.gmra.mxu0 %v989
      %v2033 = vpop.f32.mrf.mxu0
      %v2034 = vadd.f32 0.0, %v2033
      %2035 = vmatmul.f32.gmra.mxu0 %v991
      %v2036 = vpop.f32.mrf.mxu0
      %v2037 = vadd.f32 0.0, %v2036
      %2038 = vmatmul.f32.gmra.mxu0 %v993
      %v2039 = vpop.f32.mrf.mxu0
      %v2040 = vadd.f32 0.0, %v2039
      %2041 = vmatmul.f32.gmra.mxu0 %v995
      %v2042 = vpop.f32.mrf.mxu0
      %v2043 = vadd.f32 0.0, %v2042
      %2044 = vmatmul.f32.gmra.mxu0 %v997
      %v2045 = vpop.f32.mrf.mxu0
      %v2046 = vadd.f32 0.0, %v2045
      %2047 = vmatmul.f32.gmra.mxu0 %v999
      %v2048 = vpop.f32.mrf.mxu0
      %v2049 = vadd.f32 0.0, %v2048
      %2050 = vmatmul.f32.gmra.mxu0 %v1001
      %v2051 = vpop.f32.mrf.mxu0
      %v2052 = vadd.f32 0.0, %v2051
      %2053 = vmatmul.f32.gmra.mxu0 %v1003
      %v2054 = vpop.f32.mrf.mxu0
      %v2055 = vadd.f32 0.0, %v2054
      %2056 = vmatmul.f32.gmra.mxu0 %v1005
      %v2057 = vpop.f32.mrf.mxu0
      %v2058 = vadd.f32 0.0, %v2057
      %2059 = vmatmul.f32.gmra.mxu0 %v1007
      %v2060 = vpop.f32.mrf.mxu0
      %v2061 = vadd.f32 0.0, %v2060
      %2062 = vmatmul.f32.gmra.mxu0 %v1480
      %v2063 = vpop.f32.mrf.mxu0
      %v2064 = vadd.f32 0.0, %v2063
      %2065 = vmatmul.f32.gmra.mxu0 %v1482
      %v2066 = vpop.f32.mrf.mxu0
      %v2067 = vadd.f32 0.0, %v2066
      %2068 = vmatmul.f32.gmra.mxu0 %v1955
      %v2069 = vpop.f32.mrf.mxu0
      %v2070 = vadd.f32 0.0, %v2069
      %2071 = vmatmul.f32.gmra.mxu0 %v1957
      %v2072 = vpop.f32.mrf.mxu0
      %v2073 = vadd.f32 0.0, %v2072
      %2074 = vdwg.mxu0
      %v2075 = vadd.f32 %v1916, %v1980
      %v2076 = vadd.f32 %v1917, %v1983
      %v2077 = vadd.f32 %v1918, %v1986
      %v2078 = vadd.f32 %v1919, %v1989
      %v2079 = vadd.f32 %v1920, %v1992
      %v2080 = vadd.f32 %v1921, %v1995
      %v2081 = vadd.f32 %v1922, %v1998
      %v2082 = vadd.f32 %v1923, %v2001
      %v2083 = vadd.f32 %v1924, %v2004
      %v2084 = vadd.f32 %v1925, %v2007
      %v2085 = vadd.f32 %v1926, %v2010
      %v2086 = vadd.f32 %v1927, %v2013
      %v2087 = vadd.f32 %v1928, %v2016
      %v2088 = vadd.f32 %v1929, %v2019
      %v2089 = vadd.f32 %v1930, %v2022
      %v2090 = vadd.f32 %v1931, %v2025
      %v2091 = vadd.f32 %v1932, %v2028
      %v2092 = vadd.f32 %v1933, %v2031
      %v2093 = vadd.f32 %v1934, %v2034
      %v2094 = vadd.f32 %v1935, %v2037
      %v2095 = vadd.f32 %v1936, %v2040
      %v2096 = vadd.f32 %v1937, %v2043
      %v2097 = vadd.f32 %v1938, %v2046
      %v2098 = vadd.f32 %v1939, %v2049
      %v2099 = vadd.f32 %v1940, %v2052
      %v2100 = vadd.f32 %v1941, %v2055
      %v2101 = vadd.f32 %v1942, %v2058
      %v2102 = vadd.f32 %v1943, %v2061
      %v2103 = vadd.f32 %v1944, %v2064
      %v2104 = vadd.f32 %v1945, %v2067
      %v2105 = vadd.f32 %v1946, %v2070
      %v2106 = vadd.f32 %v1947, %v2073
      %v2107 = vsel %vm204, %v2075, 0.0
      %v2108 = vsel %vm204, %v2076, 0.0
      %v2109 = vadd.f32 %v2107, %v2108
      %v2110 = vsel %vm204, %v2077, 0.0
      %v2111 = vadd.f32 %v2109, %v2110
      %v2112 = vsel %vm204, %v2078, 0.0
      %v2113 = vadd.f32 %v2111, %v2112
      %v2114 = vsel %vm204, %v2079, 0.0
      %v2115 = vadd.f32 %v2113, %v2114
      %v2116 = vsel %vm204, %v2080, 0.0
      %v2117 = vadd.f32 %v2115, %v2116
      %v2118 = vsel %vm204, %v2081, 0.0
      %v2119 = vadd.f32 %v2117, %v2118
      %v2120 = vsel %vm204, %v2082, 0.0
      %v2121 = vadd.f32 %v2119, %v2120
      %v2122 = vsel %vm204, %v2083, 0.0
      %v2123 = vadd.f32 %v2121, %v2122
      %v2124 = vsel %vm204, %v2084, 0.0
      %v2125 = vadd.f32 %v2123, %v2124
      %v2126 = vsel %vm204, %v2085, 0.0
      %v2127 = vadd.f32 %v2125, %v2126
      %v2128 = vsel %vm204, %v2086, 0.0
      %v2129 = vadd.f32 %v2127, %v2128
      %v2130 = vsel %vm204, %v2087, 0.0
      %v2131 = vadd.f32 %v2129, %v2130
      %v2132 = vsel %vm204, %v2088, 0.0
      %v2133 = vadd.f32 %v2131, %v2132
      %v2134 = vsel %vm204, %v2089, 0.0
      %v2135 = vadd.f32 %v2133, %v2134
      %v2136 = vsel %vm204, %v2090, 0.0
      %v2137 = vadd.f32 %v2135, %v2136
      %v2138 = vsel %vm204, %v2091, 0.0
      %v2139 = vadd.f32 %v2137, %v2138
      %v2140 = vsel %vm204, %v2092, 0.0
      %v2141 = vadd.f32 %v2139, %v2140
      %v2142 = vsel %vm204, %v2093, 0.0
      %v2143 = vadd.f32 %v2141, %v2142
      %v2144 = vsel %vm204, %v2094, 0.0
      %v2145 = vadd.f32 %v2143, %v2144
      %v2146 = vsel %vm204, %v2095, 0.0
      %v2147 = vadd.f32 %v2145, %v2146
      %v2148 = vsel %vm204, %v2096, 0.0
      %v2149 = vadd.f32 %v2147, %v2148
      %v2150 = vsel %vm204, %v2097, 0.0
      %v2151 = vadd.f32 %v2149, %v2150
      %v2152 = vsel %vm204, %v2098, 0.0
      %v2153 = vadd.f32 %v2151, %v2152
      %v2154 = vsel %vm204, %v2099, 0.0
      %v2155 = vadd.f32 %v2153, %v2154
      %v2156 = vsel %vm204, %v2100, 0.0
      %v2157 = vadd.f32 %v2155, %v2156
      %v2158 = vsel %vm204, %v2101, 0.0
      %v2159 = vadd.f32 %v2157, %v2158
      %v2160 = vsel %vm204, %v2102, 0.0
      %v2161 = vadd.f32 %v2159, %v2160
      %v2162 = vsel %vm204, %v2103, 0.0
      %v2163 = vadd.f32 %v2161, %v2162
      %v2164 = vsel %vm204, %v2104, 0.0
      %v2165 = vadd.f32 %v2163, %v2164
      %v2166 = vsel %vm204, %v2105, 0.0
      %v2167 = vadd.f32 %v2165, %v2166
      %v2168 = vsel %vm204, %v2106, 0.0
      %v2169 = vadd.f32 %v2167, %v2168
      %v2170 = vrot.slane %v2169, 4
      %v2171 = vadd.f32 %v2169, %v2170
      %v2172 = vrot.slane %v2171, 2
      %v2173 = vadd.f32 %v2171, %v2172
      %v2174 = vrot.slane %v2173, 1
      %v2175 = vadd.f32 %v2173, %v2174
      %v2176 = vmul.f32 %v2175, 0.00390625
      %v2177 = vmul.f32 %v2075, %v2075
      %v2178 = vmul.f32 %v2076, %v2076
      %v2179 = vmul.f32 %v2077, %v2077
      %v2180 = vmul.f32 %v2078, %v2078
      %v2181 = vmul.f32 %v2079, %v2079
      %v2182 = vmul.f32 %v2080, %v2080
      %v2183 = vmul.f32 %v2081, %v2081
      %v2184 = vmul.f32 %v2082, %v2082
      %v2185 = vmul.f32 %v2083, %v2083
      %v2186 = vmul.f32 %v2084, %v2084
      %v2187 = vmul.f32 %v2085, %v2085
      %v2188 = vmul.f32 %v2086, %v2086
      %v2189 = vmul.f32 %v2087, %v2087
      %v2190 = vmul.f32 %v2088, %v2088
      %v2191 = vmul.f32 %v2089, %v2089
      %v2192 = vmul.f32 %v2090, %v2090
      %v2193 = vmul.f32 %v2091, %v2091
      %v2194 = vmul.f32 %v2092, %v2092
      %v2195 = vmul.f32 %v2093, %v2093
      %v2196 = vmul.f32 %v2094, %v2094
      %v2197 = vmul.f32 %v2095, %v2095
      %v2198 = vmul.f32 %v2096, %v2096
      %v2199 = vmul.f32 %v2097, %v2097
      %v2200 = vmul.f32 %v2098, %v2098
      %v2201 = vmul.f32 %v2099, %v2099
      %v2202 = vmul.f32 %v2100, %v2100
      %v2203 = vmul.f32 %v2101, %v2101
      %v2204 = vmul.f32 %v2102, %v2102
      %v2205 = vmul.f32 %v2103, %v2103
      %v2206 = vmul.f32 %v2104, %v2104
      %v2207 = vmul.f32 %v2105, %v2105
      %v2208 = vmul.f32 %v2106, %v2106
      %v2209 = vsel %vm204, %v2177, 0.0
      %v2210 = vsel %vm204, %v2178, 0.0
      %v2211 = vadd.f32 %v2209, %v2210
      %v2212 = vsel %vm204, %v2179, 0.0
      %v2213 = vadd.f32 %v2211, %v2212
      %v2214 = vsel %vm204, %v2180, 0.0
      %v2215 = vadd.f32 %v2213, %v2214
      %v2216 = vsel %vm204, %v2181, 0.0
      %v2217 = vadd.f32 %v2215, %v2216
      %v2218 = vsel %vm204, %v2182, 0.0
      %v2219 = vadd.f32 %v2217, %v2218
      %v2220 = vsel %vm204, %v2183, 0.0
      %v2221 = vadd.f32 %v2219, %v2220
      %v2222 = vsel %vm204, %v2184, 0.0
      %v2223 = vadd.f32 %v2221, %v2222
      %v2224 = vsel %vm204, %v2185, 0.0
      %v2225 = vadd.f32 %v2223, %v2224
      %v2226 = vsel %vm204, %v2186, 0.0
      %v2227 = vadd.f32 %v2225, %v2226
      %v2228 = vsel %vm204, %v2187, 0.0
      %v2229 = vadd.f32 %v2227, %v2228
      %v2230 = vsel %vm204, %v2188, 0.0
      %v2231 = vadd.f32 %v2229, %v2230
      %v2232 = vsel %vm204, %v2189, 0.0
      %v2233 = vadd.f32 %v2231, %v2232
      %v2234 = vsel %vm204, %v2190, 0.0
      %v2235 = vadd.f32 %v2233, %v2234
      %v2236 = vsel %vm204, %v2191, 0.0
      %v2237 = vadd.f32 %v2235, %v2236
      %v2238 = vsel %vm204, %v2192, 0.0
      %v2239 = vadd.f32 %v2237, %v2238
      %v2240 = vsel %vm204, %v2193, 0.0
      %v2241 = vadd.f32 %v2239, %v2240
      %v2242 = vsel %vm204, %v2194, 0.0
      %v2243 = vadd.f32 %v2241, %v2242
      %v2244 = vsel %vm204, %v2195, 0.0
      %v2245 = vadd.f32 %v2243, %v2244
      %v2246 = vsel %vm204, %v2196, 0.0
      %v2247 = vadd.f32 %v2245, %v2246
      %v2248 = vsel %vm204, %v2197, 0.0
      %v2249 = vadd.f32 %v2247, %v2248
      %v2250 = vsel %vm204, %v2198, 0.0
      %v2251 = vadd.f32 %v2249, %v2250
      %v2252 = vsel %vm204, %v2199, 0.0
      %v2253 = vadd.f32 %v2251, %v2252
      %v2254 = vsel %vm204, %v2200, 0.0
      %v2255 = vadd.f32 %v2253, %v2254
      %v2256 = vsel %vm204, %v2201, 0.0
      %v2257 = vadd.f32 %v2255, %v2256
      %v2258 = vsel %vm204, %v2202, 0.0
      %v2259 = vadd.f32 %v2257, %v2258
      %v2260 = vsel %vm204, %v2203, 0.0
      %v2261 = vadd.f32 %v2259, %v2260
      %v2262 = vsel %vm204, %v2204, 0.0
      %v2263 = vadd.f32 %v2261, %v2262
      %v2264 = vsel %vm204, %v2205, 0.0
      %v2265 = vadd.f32 %v2263, %v2264
      %v2266 = vsel %vm204, %v2206, 0.0
      %v2267 = vadd.f32 %v2265, %v2266
      %v2268 = vsel %vm204, %v2207, 0.0
      %v2269 = vadd.f32 %v2267, %v2268
      %v2270 = vsel %vm204, %v2208, 0.0
      %v2271 = vadd.f32 %v2269, %v2270
      %v2272 = vrot.slane %v2271, 4
      %v2273 = vadd.f32 %v2271, %v2272
      %v2274 = vrot.slane %v2273, 2
      %v2275 = vadd.f32 %v2273, %v2274
      %v2276 = vrot.slane %v2275, 1
      %v2277 = vadd.f32 %v2275, %v2276
      %v2278 = vmul.f32 %v2277, 0.00390625
      %v2279 = vmul.f32 %v2176, %v2176
      %v2280 = vsub.f32 %v2278, %v2279
      %v2281 = vmax.f32 %v2280, 0.0
      %v2282 = vsub.f32 %v2075, %v2176
      %v2283 = vsub.f32 %v2076, %v2176
      %v2284 = vsub.f32 %v2077, %v2176
      %v2285 = vsub.f32 %v2078, %v2176
      %v2286 = vsub.f32 %v2079, %v2176
      %v2287 = vsub.f32 %v2080, %v2176
      %v2288 = vsub.f32 %v2081, %v2176
      %v2289 = vsub.f32 %v2082, %v2176
      %v2290 = vsub.f32 %v2083, %v2176
      %v2291 = vsub.f32 %v2084, %v2176
      %v2292 = vsub.f32 %v2085, %v2176
      %v2293 = vsub.f32 %v2086, %v2176
      %v2294 = vsub.f32 %v2087, %v2176
      %v2295 = vsub.f32 %v2088, %v2176
      %v2296 = vsub.f32 %v2089, %v2176
      %v2297 = vsub.f32 %v2090, %v2176
      %v2298 = vsub.f32 %v2091, %v2176
      %v2299 = vsub.f32 %v2092, %v2176
      %v2300 = vsub.f32 %v2093, %v2176
      %v2301 = vsub.f32 %v2094, %v2176
      %v2302 = vsub.f32 %v2095, %v2176
      %v2303 = vsub.f32 %v2096, %v2176
      %v2304 = vsub.f32 %v2097, %v2176
      %v2305 = vsub.f32 %v2098, %v2176
      %v2306 = vsub.f32 %v2099, %v2176
      %v2307 = vsub.f32 %v2100, %v2176
      %v2308 = vsub.f32 %v2101, %v2176
      %v2309 = vsub.f32 %v2102, %v2176
      %v2310 = vsub.f32 %v2103, %v2176
      %v2311 = vsub.f32 %v2104, %v2176
      %v2312 = vsub.f32 %v2105, %v2176
      %v2313 = vsub.f32 %v2106, %v2176
      %v2314 = vadd.f32 %v2281, 1e-05
      %v2315 = vrsqrt.pop %v2314
      %v2316 = vmul.f32 %v2315, %v2314
      %v2317 = vmul.f32 %v2316, %v2315
      %v2318 = vmul.f32 0.5, %v2317
      %v2319 = vsub.f32 1.5, %v2318
      %v2320 = vmul.f32 %v2315, %v2319
      %vm2321 = vweird.f32 %v2314
      %vm2322 = vweird.f32 %v2315
      %vm2323 = vmor %vm2321, %vm2322
      %v2324 = vsel %vm2323, %v2315, %v2320
      %v2325 = vmul.f32 %v2282, %v2324
      %v2326 = vmul.f32 %v2283, %v2324
      %v2327 = vmul.f32 %v2284, %v2324
      %v2328 = vmul.f32 %v2285, %v2324
      %v2329 = vmul.f32 %v2286, %v2324
      %v2330 = vmul.f32 %v2287, %v2324
      %v2331 = vmul.f32 %v2288, %v2324
      %v2332 = vmul.f32 %v2289, %v2324
      %v2333 = vmul.f32 %v2290, %v2324
      %v2334 = vmul.f32 %v2291, %v2324
      %v2335 = vmul.f32 %v2292, %v2324
      %v2336 = vmul.f32 %v2293, %v2324
      %v2337 = vmul.f32 %v2294, %v2324
      %v2338 = vmul.f32 %v2295, %v2324
      %v2339 = vmul.f32 %v2296, %v2324
      %v2340 = vmul.f32 %v2297, %v2324
      %v2341 = vmul.f32 %v2298, %v2324
      %v2342 = vmul.f32 %v2299, %v2324
      %v2343 = vmul.f32 %v2300, %v2324
      %v2344 = vmul.f32 %v2301, %v2324
      %v2345 = vmul.f32 %v2302, %v2324
      %v2346 = vmul.f32 %v2303, %v2324
      %v2347 = vmul.f32 %v2304, %v2324
      %v2348 = vmul.f32 %v2305, %v2324
      %v2349 = vmul.f32 %v2306, %v2324
      %v2350 = vmul.f32 %v2307, %v2324
      %v2351 = vmul.f32 %v2308, %v2324
      %v2352 = vmul.f32 %v2309, %v2324
      %v2353 = vmul.f32 %v2310, %v2324
      %v2354 = vmul.f32 %v2311, %v2324
      %v2355 = vmul.f32 %v2312, %v2324
      %v2356 = vmul.f32 %v2313, %v2324
      %v2357 = vmax.f32 %v2325, 0.0
      %v2358 = vmax.f32 %v2326, 0.0
      %v2359 = vmax.f32 %v2327, 0.0
      %v2360 = vmax.f32 %v2328, 0.0
      %v2361 = vmax.f32 %v2329, 0.0
      %v2362 = vmax.f32 %v2330, 0.0
      %v2363 = vmax.f32 %v2331, 0.0
      %v2364 = vmax.f32 %v2332, 0.0
      %v2365 = vmax.f32 %v2333, 0.0
      %v2366 = vmax.f32 %v2334, 0.0
      %v2367 = vmax.f32 %v2335, 0.0
      %v2368 = vmax.f32 %v2336, 0.0
      %v2369 = vmax.f32 %v2337, 0.0
      %v2370 = vmax.f32 %v2338, 0.0
      %v2371 = vmax.f32 %v2339, 0.0
      %v2372 = vmax.f32 %v2340, 0.0
      %v2373 = vmax.f32 %v2341, 0.0
      %v2374 = vmax.f32 %v2342, 0.0
      %v2375 = vmax.f32 %v2343, 0.0
      %v2376 = vmax.f32 %v2344, 0.0
      %v2377 = vmax.f32 %v2345, 0.0
      %v2378 = vmax.f32 %v2346, 0.0
      %v2379 = vmax.f32 %v2347, 0.0
      %v2380 = vmax.f32 %v2348, 0.0
      %v2381 = vmax.f32 %v2349, 0.0
      %v2382 = vmax.f32 %v2350, 0.0
      %v2383 = vmax.f32 %v2351, 0.0
      %v2384 = vmax.f32 %v2352, 0.0
      %v2385 = vmax.f32 %v2353, 0.0
      %v2386 = vmax.f32 %v2354, 0.0
      %v2387 = vmax.f32 %v2355, 0.0
      %v2388 = vmax.f32 %v2356, 0.0
      %2389 = vst.msk [vmem:[%s203 + $0x1] sm:$0xff] %vm204, %v2357
      %2390 = vst.msk [vmem:[%s203 + $0x9] sm:$0xff] %vm204, %v2358
      %2391 = vst.msk [vmem:[%s203 + $0x19] sm:$0xff] %vm204, %v2359
      %2392 = vst.msk [vmem:[%s203 + $0x21] sm:$0xff] %vm204, %v2360
      %2393 = vst.msk [vmem:[%s203 + $0x31] sm:$0xff] %vm204, %v2361
      %2394 = vst.msk [vmem:[%s203 + $0x39] sm:$0xff] %vm204, %v2362
      %2395 = vst.msk [vmem:[%s203 + $0x49] sm:$0xff] %vm204, %v2363
      %2396 = vst.msk [vmem:[%s203 + $0x51] sm:$0xff] %vm204, %v2364
      %2397 = vst.msk [vmem:[%s203 + $0x61] sm:$0xff] %vm204, %v2365
      %2398 = vst.msk [vmem:[%s203 + $0x69] sm:$0xff] %vm204, %v2366
      %2399 = vst.msk [vmem:[%s203 + $0x79] sm:$0xff] %vm204, %v2367
      %2400 = vst.msk [vmem:[%s203 + $0x81] sm:$0xff] %vm204, %v2368
      %2401 = vst.msk [vmem:[%s203 + $0x91] sm:$0xff] %vm204, %v2369
      %2402 = vst.msk [vmem:[%s203 + $0x99] sm:$0xff] %vm204, %v2370
      %2403 = vst.msk [vmem:[%s203 + $0xa9] sm:$0xff] %vm204, %v2371
      %2404 = vst.msk [vmem:[%s203 + $0xb1] sm:$0xff] %vm204, %v2372
      %2405 = vst.msk [vmem:[%s203 + $0xc1] sm:$0xff] %vm204, %v2373
      %2406 = vst.msk [vmem:[%s203 + $0xc9] sm:$0xff] %vm204, %v2374
      %2407 = vst.msk [vmem:[%s203 + $0xd9] sm:$0xff] %vm204, %v2375
      %2408 = vst.msk [vmem:[%s203 + $0xe1] sm:$0xff] %vm204, %v2376
      %2409 = vst.msk [vmem:[%s203 + $0xf1] sm:$0xff] %vm204, %v2377
      %2410 = vst.msk [vmem:[%s203 + $0xf9] sm:$0xff] %vm204, %v2378
      %2411 = vst.msk [vmem:[%s203 + $0x109] sm:$0xff] %vm204, %v2379
      %2412 = vst.msk [vmem:[%s203 + $0x111] sm:$0xff] %vm204, %v2380
      %2413 = vst.msk [vmem:[%s203 + $0x121] sm:$0xff] %vm204, %v2381
      %2414 = vst.msk [vmem:[%s203 + $0x129] sm:$0xff] %vm204, %v2382
      %2415 = vst.msk [vmem:[%s203 + $0x139] sm:$0xff] %vm204, %v2383
      %2416 = vst.msk [vmem:[%s203 + $0x141] sm:$0xff] %vm204, %v2384
      %2417 = vst.msk [vmem:[%s203 + $0x151] sm:$0xff] %vm204, %v2385
      %2418 = vst.msk [vmem:[%s203 + $0x159] sm:$0xff] %vm204, %v2386
      %2419 = vst.msk [vmem:[%s203 + $0x169] sm:$0xff] %vm204, %v2387
      %2420 = vst.msk [vmem:[%s203 + $0x171] sm:$0xff] %vm204, %v2388
      %2421 = vst.msk [vmem:[#allocation2 + $0x1] sm:$0xff] %vm204, %v2359
      %2422 = vst.msk [vmem:[#allocation2 + $0x9] sm:$0xff] %vm204, %v2360
      %2423 = vst.msk [vmem:[%s239 + $0x1] sm:$0xff] %vm204, %v2385
      %2424 = vst.msk [vmem:[%s239 + $0x9] sm:$0xff] %vm204, %v2386
      %v2425 = vld [vmem:[#allocation2 + $0x2] sm:$0x1]
      %v2426 = vld [vmem:[#allocation2 + $0x1a] sm:$0x1]
      %v2427 = vld [vmem:[#allocation2 + $0x32] sm:$0x1]
      %v2428 = vld [vmem:[#allocation2 + $0x4a] sm:$0x1]
      %v2429 = vld [vmem:[#allocation2 + $0x62] sm:$0x1]
      %v2430 = vld [vmem:[#allocation2 + $0x7a] sm:$0x1]
      %v2431 = vld [vmem:[#allocation2 + $0x92] sm:$0x1]
      %v2432 = vld [vmem:[#allocation2 + $0xaa] sm:$0x1]
      %v2433 = vld [vmem:[#allocation2 + $0xc2] sm:$0x1]
      %v2434 = vld [vmem:[#allocation2 + $0xda] sm:$0x1]
      %v2435 = vld [vmem:[#allocation2 + $0xf2] sm:$0x1]
      %v2436 = vld [vmem:[#allocation2 + $0x10a] sm:$0x1]
      %v2437 = vld [vmem:[#allocation2 + $0x122] sm:$0x1]
      %v2438 = vld [vmem:[#allocation2 + $0x13a] sm:$0x1]
      %v2439 = vld [vmem:[#allocation2 + $0x152] sm:$0x1]
      %v2440 = vld [vmem:[#allocation2 + $0x16a] sm:$0x1]
      %v2441 = vld [vmem:[#allocation2 + $0x182] sm:$0x1]
      %v2442 = vld [vmem:[#allocation2 + $0x19a] sm:$0x1]
      %2443 = vst.msk [vmem:[#allocation2] sm:$0x1] %vm260, %v2425
      %2444 = vst.msk [vmem:[#allocation2 + $0x18] sm:$0x1] %vm260, %v2426
      %2445 = vst.msk [vmem:[#allocation2 + $0x30] sm:$0x1] %vm260, %v2427
      %2446 = vst.msk [vmem:[#allocation2 + $0x48] sm:$0x1] %vm260, %v2428
      %2447 = vst.msk [vmem:[#allocation2 + $0x60] sm:$0x1] %vm260, %v2429
      %2448 = vst.msk [vmem:[#allocation2 + $0x78] sm:$0x1] %vm260, %v2430
      %2449 = vst.msk [vmem:[#allocation2 + $0x90] sm:$0x1] %vm260, %v2431
      %2450 = vst.msk [vmem:[#allocation2 + $0xa8] sm:$0x1] %vm260, %v2432
      %2451 = vst.msk [vmem:[#allocation2 + $0xc0] sm:$0x1] %vm260, %v2433
      %2452 = vst.msk [vmem:[#allocation2 + $0xd8] sm:$0x1] %vm260, %v2434
      %2453 = vst.msk [vmem:[#allocation2 + $0xf0] sm:$0x1] %vm260, %v2435
      %2454 = vst.msk [vmem:[#allocation2 + $0x108] sm:$0x1] %vm260, %v2436
      %2455 = vst.msk [vmem:[#allocation2 + $0x120] sm:$0x1] %vm260, %v2437
      %2456 = vst.msk [vmem:[#allocation2 + $0x138] sm:$0x1] %vm260, %v2438
      %2457 = vst.msk [vmem:[#allocation2 + $0x150] sm:$0x1] %vm260, %v2439
      %2458 = vst.msk [vmem:[#allocation2 + $0x168] sm:$0x1] %vm260, %v2440
      %2459 = vst.msk [vmem:[#allocation2 + $0x180] sm:$0x1] %vm260, %v2441
      %2460 = vst.msk [vmem:[#allocation2 + $0x198] sm:$0x1] %vm260, %v2442
      %v2461 = vld [vmem:[#allocation2 + $0xf] sm:$0x1]
      %v2462 = vld [vmem:[#allocation2 + $0x27] sm:$0x1]
      %v2463 = vld [vmem:[#allocation2 + $0x3f] sm:$0x1]
      %v2464 = vld [vmem:[#allocation2 + $0x57] sm:$0x1]
      %v2465 = vld [vmem:[#allocation2 + $0x6f] sm:$0x1]
      %v2466 = vld [vmem:[#allocation2 + $0x87] sm:$0x1]
      %v2467 = vld [vmem:[#allocation2 + $0x9f] sm:$0x1]
      %v2468 = vld [vmem:[#allocation2 + $0xb7] sm:$0x1]
      %v2469 = vld [vmem:[#allocation2 + $0xcf] sm:$0x1]
      %v2470 = vld [vmem:[#allocation2 + $0xe7] sm:$0x1]
      %v2471 = vld [vmem:[#allocation2 + $0xff] sm:$0x1]
      %v2472 = vld [vmem:[#allocation2 + $0x117] sm:$0x1]
      %v2473 = vld [vmem:[#allocation2 + $0x12f] sm:$0x1]
      %v2474 = vld [vmem:[#allocation2 + $0x147] sm:$0x1]
      %v2475 = vld [vmem:[#allocation2 + $0x15f] sm:$0x1]
      %v2476 = vld [vmem:[#allocation2 + $0x177] sm:$0x1]
      %v2477 = vld [vmem:[#allocation2 + $0x18f] sm:$0x1]
      %v2478 = vld [vmem:[#allocation2 + $0x1a7] sm:$0x1]
      %2479 = vst.msk [vmem:[#allocation2 + $0x11] sm:$0x1] %vm260, %v2461
      %2480 = vst.msk [vmem:[#allocation2 + $0x29] sm:$0x1] %vm260, %v2462
      %2481 = vst.msk [vmem:[#allocation2 + $0x41] sm:$0x1] %vm260, %v2463
      %2482 = vst.msk [vmem:[#allocation2 + $0x59] sm:$0x1] %vm260, %v2464
      %2483 = vst.msk [vmem:[#allocation2 + $0x71] sm:$0x1] %vm260, %v2465
      %2484 = vst.msk [vmem:[#allocation2 + $0x89] sm:$0x1] %vm260, %v2466
      %2485 = vst.msk [vmem:[#allocation2 + $0xa1] sm:$0x1] %vm260, %v2467
      %2486 = vst.msk [vmem:[#allocation2 + $0xb9] sm:$0x1] %vm260, %v2468
      %2487 = vst.msk [vmem:[#allocation2 + $0xd1] sm:$0x1] %vm260, %v2469
      %2488 = vst.msk [vmem:[#allocation2 + $0xe9] sm:$0x1] %vm260, %v2470
      %2489 = vst.msk [vmem:[#allocation2 + $0x101] sm:$0x1] %vm260, %v2471
      %2490 = vst.msk [vmem:[#allocation2 + $0x119] sm:$0x1] %vm260, %v2472
      %2491 = vst.msk [vmem:[#allocation2 + $0x131] sm:$0x1] %vm260, %v2473
      %2492 = vst.msk [vmem:[#allocation2 + $0x149] sm:$0x1] %vm260, %v2474
      %2493 = vst.msk [vmem:[#allocation2 + $0x161] sm:$0x1] %vm260, %v2475
      %2494 = vst.msk [vmem:[#allocation2 + $0x179] sm:$0x1] %vm260, %v2476
      %2495 = vst.msk [vmem:[#allocation2 + $0x191] sm:$0x1] %vm260, %v2477
      %2496 = vst.msk [vmem:[#allocation2 + $0x1a9] sm:$0x1] %vm260, %v2478
      %v2497 = vld [vmem:[#allocation2] sm:$0xff]
      %v2498 = vld [vmem:[#allocation2 + $0x8] sm:$0xff]
      %v2499 = vld [vmem:[#allocation2 + $0x10] sm:$0x3]
      %v2500 = vld [vmem:[#allocation2 + $0x18] sm:$0xff]
      %v2501 = vld [vmem:[#allocation2 + $0x20] sm:$0xff]
      %v2502 = vld [vmem:[#allocation2 + $0x28] sm:$0x3]
      %v2503 = vld [vmem:[#allocation2 + $0x30] sm:$0xff]
      %v2504 = vld [vmem:[#allocation2 + $0x38] sm:$0xff]
      %v2505 = vld [vmem:[#allocation2 + $0x40] sm:$0x3]
      %v2506 = vld [vmem:[#allocation2 + $0x48] sm:$0xff]
      %v2507 = vld [vmem:[#allocation2 + $0x50] sm:$0xff]
      %v2508 = vld [vmem:[#allocation2 + $0x58] sm:$0x3]
      %v2509 = vld [vmem:[#allocation2 + $0x60] sm:$0xff]
      %v2510 = vld [vmem:[#allocation2 + $0x68] sm:$0xff]
      %v2511 = vld [vmem:[#allocation2 + $0x70] sm:$0x3]
      %v2512 = vld [vmem:[#allocation2 + $0x78] sm:$0xff]
      %v2513 = vld [vmem:[#allocation2 + $0x80] sm:$0xff]
      %v2514 = vld [vmem:[#allocation2 + $0x88] sm:$0x3]
      %v2515 = vld [vmem:[#allocation2 + $0x90] sm:$0xff]
      %v2516 = vld [vmem:[#allocation2 + $0x98] sm:$0xff]
      %v2517 = vld [vmem:[#allocation2 + $0xa0] sm:$0x3]
      %v2518 = vld [vmem:[#allocation2 + $0xa8] sm:$0xff]
      %v2519 = vld [vmem:[#allocation2 + $0xb0] sm:$0xff]
      %v2520 = vld [vmem:[#allocation2 + $0xb8] sm:$0x3]
      %v2521 = vld [vmem:[#allocation2 + $0xc0] sm:$0xff]
      %v2522 = vld [vmem:[#allocation2 + $0xc8] sm:$0xff]
      %v2523 = vld [vmem:[#allocation2 + $0xd0] sm:$0x3]
      %v2524 = vld [vmem:[#allocation2 + $0xd8] sm:$0xff]
      %v2525 = vld [vmem:[#allocation2 + $0xe0] sm:$0xff]
      %v2526 = vld [vmem:[#allocation2 + $0xe8] sm:$0x3]
      %v2527 = vld [vmem:[#allocation2 + $0xf0] sm:$0xff]
      %v2528 = vld [vmem:[#allocation2 + $0xf8] sm:$0xff]
      %v2529 = vld [vmem:[#allocation2 + $0x100] sm:$0x3]
      %v2530 = vld [vmem:[#allocation2 + $0x108] sm:$0xff]
      %v2531 = vld [vmem:[#allocation2 + $0x110] sm:$0xff]
      %v2532 = vld [vmem:[#allocation2 + $0x118] sm:$0x3]
      %v2533 = vld [vmem:[#allocation2 + $0x120] sm:$0xff]
      %v2534 = vld [vmem:[#allocation2 + $0x128] sm:$0xff]
      %v2535 = vld [vmem:[#allocation2 + $0x130] sm:$0x3]
      %v2536 = vld [vmem:[#allocation2 + $0x138] sm:$0xff]
      %v2537 = vld [vmem:[#allocation2 + $0x140] sm:$0xff]
      %v2538 = vld [vmem:[#allocation2 + $0x148] sm:$0x3]
      %v2539 = vld [vmem:[#allocation2 + $0x150] sm:$0xff]
      %v2540 = vld [vmem:[#allocation2 + $0x158] sm:$0xff]
      %v2541 = vld [vmem:[#allocation2 + $0x160] sm:$0x3]
      %v2542 = vld [vmem:[#allocation2 + $0x168] sm:$0xff]
      %v2543 = vld [vmem:[#allocation2 + $0x170] sm:$0xff]
      %v2544 = vld [vmem:[#allocation2 + $0x178] sm:$0x3]
      %v2545 = vld [vmem:[#allocation2 + $0x180] sm:$0xff]
      %v2546 = vld [vmem:[#allocation2 + $0x188] sm:$0xff]
      %v2547 = vld [vmem:[#allocation2 + $0x190] sm:$0x3]
      %v2548 = vld [vmem:[#allocation2 + $0x198] sm:$0xff]
      %v2549 = vld [vmem:[#allocation2 + $0x1a0] sm:$0xff]
      %v2550 = vld [vmem:[#allocation2 + $0x1a8] sm:$0x3]
      %v2551 = vld [vmem:[%s2] sm:$0xf]
      %v2600 = vrot.slane %v2497, 1
      %v2601 = vrot.slane %v2498, 1
      %v2602 = vsel %vm418, %v2600, %v2601
      %v2603 = vrot.slane %v2499, 1
      %v2604 = vsel %vm418, %v2601, %v2603
      %v2605 = vrot.slane %v2500, 1
      %v2606 = vrot.slane %v2501, 1
      %v2607 = vsel %vm418, %v2605, %v2606
      %v2608 = vrot.slane %v2502, 1
      %v2609 = vsel %vm418, %v2606, %v2608
      %v2610 = vrot.slane %v2503, 1
      %v2611 = vrot.slane %v2504, 1
      %v2612 = vsel %vm418, %v2610, %v2611
      %v2613 = vrot.slane %v2505, 1
      %v2614 = vsel %vm418, %v2611, %v2613
      %v2615 = vrot.slane %v2506, 1
      %v2616 = vrot.slane %v2507, 1
      %v2617 = vsel %vm418, %v2615, %v2616
      %v2618 = vrot.slane %v2508, 1
      %v2619 = vsel %vm418, %v2616, %v2618
      %v2620 = vrot.slane %v2509, 1
      %v2621 = vrot.slane %v2510, 1
      %v2622 = vsel %vm418, %v2620, %v2621
      %v2623 = vrot.slane %v2511, 1
      %v2624 = vsel %vm418, %v2621, %v2623
      %v2625 = vrot.slane %v2512, 1
      %v2626 = vrot.slane %v2513, 1
      %v2627 = vsel %vm418, %v2625, %v2626
      %v2628 = vrot.slane %v2514, 1
      %v2629 = vsel %vm418, %v2626, %v2628
      %v2630 = vrot.slane %v2515, 1
      %v2631 = vrot.slane %v2516, 1
      %v2632 = vsel %vm418, %v2630, %v2631
      %v2633 = vrot.slane %v2517, 1
      %v2634 = vsel %vm418, %v2631, %v2633
      %v2635 = vrot.slane %v2518, 1
      %v2636 = vrot.slane %v2519, 1
      %v2637 = vsel %vm418, %v2635, %v2636
      %v2638 = vrot.slane %v2520, 1
      %v2639 = vsel %vm418, %v2636, %v2638
      %v2640 = vrot.slane %v2521, 1
      %v2641 = vrot.slane %v2522, 1
      %v2642 = vsel %vm418, %v2640, %v2641
      %v2643 = vrot.slane %v2523, 1
      %v2644 = vsel %vm418, %v2641, %v2643
      %v2645 = vrot.slane %v2524, 1
      %v2646 = vrot.slane %v2525, 1
      %v2647 = vsel %vm418, %v2645, %v2646
      %v2648 = vrot.slane %v2526, 1
      %v2649 = vsel %vm418, %v2646, %v2648
      %v2650 = vrot.slane %v2527, 1
      %v2651 = vrot.slane %v2528, 1
      %v2652 = vsel %vm418, %v2650, %v2651
      %v2653 = vrot.slane %v2529, 1
      %v2654 = vsel %vm418, %v2651, %v2653
      %v2655 = vrot.slane %v2530, 1
      %v2656 = vrot.slane %v2531, 1
      %v2657 = vsel %vm418, %v2655, %v2656
      %v2658 = vrot.slane %v2532, 1
      %v2659 = vsel %vm418, %v2656, %v2658
      %v2660 = vrot.slane %v2533, 1
      %v2661 = vrot.slane %v2534, 1
      %v2662 = vsel %vm418, %v2660, %v2661
      %v2663 = vrot.slane %v2535, 1
      %v2664 = vsel %vm418, %v2661, %v2663
      %v2665 = vrot.slane %v2536, 1
      %v2666 = vrot.slane %v2537, 1
      %v2667 = vsel %vm418, %v2665, %v2666
      %v2668 = vrot.slane %v2538, 1
      %v2669 = vsel %vm418, %v2666, %v2668
      %v2670 = vrot.slane %v2539, 1
      %v2671 = vrot.slane %v2540, 1
      %v2672 = vsel %vm418, %v2670, %v2671
      %v2673 = vrot.slane %v2541, 1
      %v2674 = vsel %vm418, %v2671, %v2673
      %v2675 = vrot.slane %v2542, 1
      %v2676 = vrot.slane %v2543, 1
      %v2677 = vsel %vm418, %v2675, %v2676
      %v2678 = vrot.slane %v2544, 1
      %v2679 = vsel %vm418, %v2676, %v2678
      %s2680 = scalar_lea.vmem %s2, 4
      %v2681 = vld [vmem:[%s2680] sm:$0xf]
      %v2682 = vsel %vm204, %v2602, 0
      %v2684 = vsel %vm204, %v2604, 0
      %v2686 = vsel %vm204, %v2607, 0
      %v2688 = vsel %vm204, %v2609, 0
      %v2690 = vsel %vm204, %v2612, 0
      %v2692 = vsel %vm204, %v2614, 0
      %v2694 = vsel %vm204, %v2617, 0
      %v2696 = vsel %vm204, %v2619, 0
      %v2698 = vsel %vm204, %v2622, 0
      %v2700 = vsel %vm204, %v2624, 0
      %v2702 = vsel %vm204, %v2627, 0
      %v2704 = vsel %vm204, %v2629, 0
      %v2706 = vsel %vm204, %v2632, 0
      %v2708 = vsel %vm204, %v2634, 0
      %v2710 = vsel %vm204, %v2637, 0
      %v2712 = vsel %vm204, %v2639, 0
      %v2714 = vsel %vm204, %v2642, 0
      %v2716 = vsel %vm204, %v2644, 0
      %v2718 = vsel %vm204, %v2647, 0
      %v2720 = vsel %vm204, %v2649, 0
      %v2722 = vsel %vm204, %v2652, 0
      %v2724 = vsel %vm204, %v2654, 0
      %v2726 = vsel %vm204, %v2657, 0
      %v2728 = vsel %vm204, %v2659, 0
      %v2730 = vsel %vm204, %v2662, 0
      %v2732 = vsel %vm204, %v2664, 0
      %v2734 = vsel %vm204, %v2667, 0
      %v2736 = vsel %vm204, %v2669, 0
      %v2738 = vsel %vm204, %v2672, 0
      %v2740 = vsel %vm204, %v2674, 0
      %v2742 = vsel %vm204, %v2677, 0
      %v2744 = vsel %vm204, %v2679, 0
      %v2747 = vsel %vm565, %v2681, 0
      %2749 = vmatpush.msra.mxu0 0.0
      %2750 = vmatpush.msra.mxu0 0.0
      %2751 = vmatpush.msra.mxu0 0.0
      %2752 = vmatpush.msra.mxu0 0.0
      %2753 = vmatpush.msra.mxu0 0.0
      %2754 = vmatpush.msra.mxu0 0.0
      %2755 = vmatpush.msra.mxu0 0.0
      %2756 = vmatpush.msra.mxu0 0.0
      %2757 = vmatpush.msra.mxu0 0.0
      %2758 = vmatpush.msra.mxu0 0.0
      %2759 = vmatpush.msra.mxu0 0.0
      %2760 = vmatpush.msra.mxu0 0.0
      %2761 = vmatpush.msra.mxu0 0.0
      %2762 = vmatpush.msra.mxu0 0.0
      %2763 = vmatpush.msra.mxu0 0.0
      %2764 = vmatpush.msra.mxu0 %v2747
      %2765 = vmatmul.f32.gmra.mxu0 %v2682
      %v2766 = vpop.f32.mrf.mxu0
      %v2767 = vadd.f32 0.0, %v2766
      %2768 = vmatmul.f32.gmra.mxu0 %v2684
      %v2769 = vpop.f32.mrf.mxu0
      %v2770 = vadd.f32 0.0, %v2769
      %2771 = vmatmul.f32.gmra.mxu0 %v2686
      %v2772 = vpop.f32.mrf.mxu0
      %v2773 = vadd.f32 0.0, %v2772
      %2774 = vmatmul.f32.gmra.mxu0 %v2688
      %v2775 = vpop.f32.mrf.mxu0
      %v2776 = vadd.f32 0.0, %v2775
      %2777 = vmatmul.f32.gmra.mxu0 %v2690
      %v2778 = vpop.f32.mrf.mxu0
      %v2779 = vadd.f32 0.0, %v2778
      %2780 = vmatmul.f32.gmra.mxu0 %v2692
      %v2781 = vpop.f32.mrf.mxu0
      %v2782 = vadd.f32 0.0, %v2781
      %2783 = vmatmul.f32.gmra.mxu0 %v2694
      %v2784 = vpop.f32.mrf.mxu0
      %v2785 = vadd.f32 0.0, %v2784
      %2786 = vmatmul.f32.gmra.mxu0 %v2696
      %v2787 = vpop.f32.mrf.mxu0
      %v2788 = vadd.f32 0.0, %v2787
      %2789 = vmatmul.f32.gmra.mxu0 %v2698
      %v2790 = vpop.f32.mrf.mxu0
      %v2791 = vadd.f32 0.0, %v2790
      %2792 = vmatmul.f32.gmra.mxu0 %v2700
      %v2793 = vpop.f32.mrf.mxu0
      %v2794 = vadd.f32 0.0, %v2793
      %2795 = vmatmul.f32.gmra.mxu0 %v2702
      %v2796 = vpop.f32.mrf.mxu0
      %v2797 = vadd.f32 0.0, %v2796
      %2798 = vmatmul.f32.gmra.mxu0 %v2704
      %v2799 = vpop.f32.mrf.mxu0
      %v2800 = vadd.f32 0.0, %v2799
      %2801 = vmatmul.f32.gmra.mxu0 %v2706
      %v2802 = vpop.f32.mrf.mxu0
      %v2803 = vadd.f32 0.0, %v2802
      %2804 = vmatmul.f32.gmra.mxu0 %v2708
      %v2805 = vpop.f32.mrf.mxu0
      %v2806 = vadd.f32 0.0, %v2805
      %2807 = vmatmul.f32.gmra.mxu0 %v2710
      %v2808 = vpop.f32.mrf.mxu0
      %v2809 = vadd.f32 0.0, %v2808
      %2810 = vmatmul.f32.gmra.mxu0 %v2712
      %v2811 = vpop.f32.mrf.mxu0
      %v2812 = vadd.f32 0.0, %v2811
      %2813 = vmatmul.f32.gmra.mxu0 %v2714
      %v2814 = vpop.f32.mrf.mxu0
      %v2815 = vadd.f32 0.0, %v2814
      %2816 = vmatmul.f32.gmra.mxu0 %v2716
      %v2817 = vpop.f32.mrf.mxu0
      %v2818 = vadd.f32 0.0, %v2817
      %2819 = vmatmul.f32.gmra.mxu0 %v2718
      %v2820 = vpop.f32.mrf.mxu0
      %v2821 = vadd.f32 0.0, %v2820
      %2822 = vmatmul.f32.gmra.mxu0 %v2720
      %v2823 = vpop.f32.mrf.mxu0
      %v2824 = vadd.f32 0.0, %v2823
      %2825 = vmatmul.f32.gmra.mxu0 %v2722
      %v2826 = vpop.f32.mrf.mxu0
      %v2827 = vadd.f32 0.0, %v2826
      %2828 = vmatmul.f32.gmra.mxu0 %v2724
      %v2829 = vpop.f32.mrf.mxu0
      %v2830 = vadd.f32 0.0, %v2829
      %2831 = vmatmul.f32.gmra.mxu0 %v2726
      %v2832 = vpop.f32.mrf.mxu0
      %v2833 = vadd.f32 0.0, %v2832
      %2834 = vmatmul.f32.gmra.mxu0 %v2728
      %v2835 = vpop.f32.mrf.mxu0
      %v2836 = vadd.f32 0.0, %v2835
      %2837 = vmatmul.f32.gmra.mxu0 %v2730
      %v2838 = vpop.f32.mrf.mxu0
      %v2839 = vadd.f32 0.0, %v2838
      %2840 = vmatmul.f32.gmra.mxu0 %v2732
      %v2841 = vpop.f32.mrf.mxu0
      %v2842 = vadd.f32 0.0, %v2841
      %2843 = vmatmul.f32.gmra.mxu0 %v2734
      %v2844 = vpop.f32.mrf.mxu0
      %v2845 = vadd.f32 0.0, %v2844
      %2846 = vmatmul.f32.gmra.mxu0 %v2736
      %v2847 = vpop.f32.mrf.mxu0
      %v2848 = vadd.f32 0.0, %v2847
      %2849 = vmatmul.f32.gmra.mxu0 %v2738
      %v2850 = vpop.f32.mrf.mxu0
      %v2851 = vadd.f32 0.0, %v2850
      %2852 = vmatmul.f32.gmra.mxu0 %v2740
      %v2853 = vpop.f32.mrf.mxu0
      %v2854 = vadd.f32 0.0, %v2853
      %2855 = vmatmul.f32.gmra.mxu0 %v2742
      %v2856 = vpop.f32.mrf.mxu0
      %v2857 = vadd.f32 0.0, %v2856
      %2858 = vmatmul.f32.gmra.mxu0 %v2744
      %v2859 = vpop.f32.mrf.mxu0
      %v2860 = vadd.f32 0.0, %v2859
      %2861 = vdwg.mxu0
      %v2862 = vsel %vm204, %v2497, 0
      %v2864 = vsel %vm204, %v2498, 0
      %v2866 = vsel %vm204, %v2500, 0
      %v2868 = vsel %vm204, %v2501, 0
      %v2870 = vsel %vm204, %v2503, 0
      %v2872 = vsel %vm204, %v2504, 0
      %v2874 = vsel %vm204, %v2506, 0
      %v2876 = vsel %vm204, %v2507, 0
      %v2878 = vsel %vm204, %v2509, 0
      %v2880 = vsel %vm204, %v2510, 0
      %v2882 = vsel %vm204, %v2512, 0
      %v2884 = vsel %vm204, %v2513, 0
      %v2886 = vsel %vm204, %v2515, 0
      %v2888 = vsel %vm204, %v2516, 0
      %v2890 = vsel %vm204, %v2518, 0
      %v2892 = vsel %vm204, %v2519, 0
      %v2894 = vsel %vm204, %v2521, 0
      %v2896 = vsel %vm204, %v2522, 0
      %v2898 = vsel %vm204, %v2524, 0
      %v2900 = vsel %vm204, %v2525, 0
      %v2902 = vsel %vm204, %v2527, 0
      %v2904 = vsel %vm204, %v2528, 0
      %v2906 = vsel %vm204, %v2530, 0
      %v2908 = vsel %vm204, %v2531, 0
      %v2910 = vsel %vm204, %v2533, 0
      %v2912 = vsel %vm204, %v2534, 0
      %v2914 = vsel %vm204, %v2536, 0
      %v2916 = vsel %vm204, %v2537, 0
      %v2918 = vsel %vm204, %v2539, 0
      %v2920 = vsel %vm204, %v2540, 0
      %v2922 = vsel %vm204, %v2542, 0
      %v2924 = vsel %vm204, %v2543, 0
      %v2927 = vsel %vm565, %v2551, 0
      %2929 = vmatpush.msra.mxu0 0.0
      %2930 = vmatpush.msra.mxu0 0.0
      %2931 = vmatpush.msra.mxu0 0.0
      %2932 = vmatpush.msra.mxu0 0.0
      %2933 = vmatpush.msra.mxu0 0.0
      %2934 = vmatpush.msra.mxu0 0.0
      %2935 = vmatpush.msra.mxu0 0.0
      %2936 = vmatpush.msra.mxu0 0.0
      %2937 = vmatpush.msra.mxu0 0.0
      %2938 = vmatpush.msra.mxu0 0.0
      %2939 = vmatpush.msra.mxu0 0.0
      %2940 = vmatpush.msra.mxu0 0.0
      %2941 = vmatpush.msra.mxu0 0.0
      %2942 = vmatpush.msra.mxu0 0.0
      %2943 = vmatpush.msra.mxu0 0.0
      %2944 = vmatpush.msra.mxu0 %v2927
      %2945 = vmatmul.f32.gmra.mxu0 %v2862
      %v2946 = vpop.f32.mrf.mxu0
      %v2947 = vadd.f32 %v2767, %v2946
      %2948 = vmatmul.f32.gmra.mxu0 %v2864
      %v2949 = vpop.f32.mrf.mxu0
      %v2950 = vadd.f32 %v2770, %v2949
      %2951 = vmatmul.f32.gmra.mxu0 %v2866
      %v2952 = vpop.f32.mrf.mxu0
      %v2953 = vadd.f32 %v2773, %v2952
      %2954 = vmatmul.f32.gmra.mxu0 %v2868
      %v2955 = vpop.f32.mrf.mxu0
      %v2956 = vadd.f32 %v2776, %v2955
      %2957 = vmatmul.f32.gmra.mxu0 %v2870
      %v2958 = vpop.f32.mrf.mxu0
      %v2959 = vadd.f32 %v2779, %v2958
      %2960 = vmatmul.f32.gmra.mxu0 %v2872
      %v2961 = vpop.f32.mrf.mxu0
      %v2962 = vadd.f32 %v2782, %v2961
      %2963 = vmatmul.f32.gmra.mxu0 %v2874
      %v2964 = vpop.f32.mrf.mxu0
      %v2965 = vadd.f32 %v2785, %v2964
      %2966 = vmatmul.f32.gmra.mxu0 %v2876
      %v2967 = vpop.f32.mrf.mxu0
      %v2968 = vadd.f32 %v2788, %v2967
      %2969 = vmatmul.f32.gmra.mxu0 %v2878
      %v2970 = vpop.f32.mrf.mxu0
      %v2971 = vadd.f32 %v2791, %v2970
      %2972 = vmatmul.f32.gmra.mxu0 %v2880
      %v2973 = vpop.f32.mrf.mxu0
      %v2974 = vadd.f32 %v2794, %v2973
      %2975 = vmatmul.f32.gmra.mxu0 %v2882
      %v2976 = vpop.f32.mrf.mxu0
      %v2977 = vadd.f32 %v2797, %v2976
      %2978 = vmatmul.f32.gmra.mxu0 %v2884
      %v2979 = vpop.f32.mrf.mxu0
      %v2980 = vadd.f32 %v2800, %v2979
      %2981 = vmatmul.f32.gmra.mxu0 %v2886
      %v2982 = vpop.f32.mrf.mxu0
      %v2983 = vadd.f32 %v2803, %v2982
      %2984 = vmatmul.f32.gmra.mxu0 %v2888
      %v2985 = vpop.f32.mrf.mxu0
      %v2986 = vadd.f32 %v2806, %v2985
      %2987 = vmatmul.f32.gmra.mxu0 %v2890
      %v2988 = vpop.f32.mrf.mxu0
      %v2989 = vadd.f32 %v2809, %v2988
      %2990 = vmatmul.f32.gmra.mxu0 %v2892
      %v2991 = vpop.f32.mrf.mxu0
      %v2992 = vadd.f32 %v2812, %v2991
      %2993 = vmatmul.f32.gmra.mxu0 %v2894
      %v2994 = vpop.f32.mrf.mxu0
      %v2995 = vadd.f32 %v2815, %v2994
      %2996 = vmatmul.f32.gmra.mxu0 %v2896
      %v2997 = vpop.f32.mrf.mxu0
      %v2998 = vadd.f32 %v2818, %v2997
      %2999 = vmatmul.f32.gmra.mxu0 %v2898
      %v3000 = vpop.f32.mrf.mxu0
      %v3001 = vadd.f32 %v2821, %v3000
      %3002 = vmatmul.f32.gmra.mxu0 %v2900
      %v3003 = vpop.f32.mrf.mxu0
      %v3004 = vadd.f32 %v2824, %v3003
      %3005 = vmatmul.f32.gmra.mxu0 %v2902
      %v3006 = vpop.f32.mrf.mxu0
      %v3007 = vadd.f32 %v2827, %v3006
      %3008 = vmatmul.f32.gmra.mxu0 %v2904
      %v3009 = vpop.f32.mrf.mxu0
      %v3010 = vadd.f32 %v2830, %v3009
      %3011 = vmatmul.f32.gmra.mxu0 %v2906
      %v3012 = vpop.f32.mrf.mxu0
      %v3013 = vadd.f32 %v2833, %v3012
      %3014 = vmatmul.f32.gmra.mxu0 %v2908
      %v3015 = vpop.f32.mrf.mxu0
      %v3016 = vadd.f32 %v2836, %v3015
      %3017 = vmatmul.f32.gmra.mxu0 %v2910
      %v3018 = vpop.f32.mrf.mxu0
      %v3019 = vadd.f32 %v2839, %v3018
      %3020 = vmatmul.f32.gmra.mxu0 %v2912
      %v3021 = vpop.f32.mrf.mxu0
      %v3022 = vadd.f32 %v2842, %v3021
      %3023 = vmatmul.f32.gmra.mxu0 %v2914
      %v3024 = vpop.f32.mrf.mxu0
      %v3025 = vadd.f32 %v2845, %v3024
      %3026 = vmatmul.f32.gmra.mxu0 %v2916
      %v3027 = vpop.f32.mrf.mxu0
      %v3028 = vadd.f32 %v2848, %v3027
      %3029 = vmatmul.f32.gmra.mxu0 %v2918
      %v3030 = vpop.f32.mrf.mxu0
      %v3031 = vadd.f32 %v2851, %v3030
      %3032 = vmatmul.f32.gmra.mxu0 %v2920
      %v3033 = vpop.f32.mrf.mxu0
      %v3034 = vadd.f32 %v2854, %v3033
      %3035 = vmatmul.f32.gmra.mxu0 %v2922
      %v3036 = vpop.f32.mrf.mxu0
      %v3037 = vadd.f32 %v2857, %v3036
      %3038 = vmatmul.f32.gmra.mxu0 %v2924
      %v3039 = vpop.f32.mrf.mxu0
      %v3040 = vadd.f32 %v2860, %v3039
      %3041 = vdwg.mxu0
      %v3042 = vrot.slane %v2497, 2
      %v3043 = vrot.slane %v2498, 2
      %v3044 = vsel %vm862, %v3042, %v3043
      %v3045 = vrot.slane %v2499, 2
      %v3046 = vsel %vm862, %v3043, %v3045
      %v3047 = vrot.slane %v2500, 2
      %v3048 = vrot.slane %v2501, 2
      %v3049 = vsel %vm862, %v3047, %v3048
      %v3050 = vrot.slane %v2502, 2
      %v3051 = vsel %vm862, %v3048, %v3050
      %v3052 = vrot.slane %v2503, 2
      %v3053 = vrot.slane %v2504, 2
      %v3054 = vsel %vm862, %v3052, %v3053
      %v3055 = vrot.slane %v2505, 2
      %v3056 = vsel %vm862, %v3053, %v3055
      %v3057 = vrot.slane %v2506, 2
      %v3058 = vrot.slane %v2507, 2
      %v3059 = vsel %vm862, %v3057, %v3058
      %v3060 = vrot.slane %v2508, 2
      %v3061 = vsel %vm862, %v3058, %v3060
      %v3062 = vrot.slane %v2509, 2
      %v3063 = vrot.slane %v2510, 2
      %v3064 = vsel %vm862, %v3062, %v3063
      %v3065 = vrot.slane %v2511, 2
      %v3066 = vsel %vm862, %v3063, %v3065
      %v3067 = vrot.slane %v2512, 2
      %v3068 = vrot.slane %v2513, 2
      %v3069 = vsel %vm862, %v3067, %v3068
      %v3070 = vrot.slane %v2514, 2
      %v3071 = vsel %vm862, %v3068, %v3070
      %v3072 = vrot.slane %v2515, 2
      %v3073 = vrot.slane %v2516, 2
      %v3074 = vsel %vm862, %v3072, %v3073
      %v3075 = vrot.slane %v2517, 2
      %v3076 = vsel %vm862, %v3073, %v3075
      %v3077 = vrot.slane %v2518, 2
      %v3078 = vrot.slane %v2519, 2
      %v3079 = vsel %vm862, %v3077, %v3078
      %v3080 = vrot.slane %v2520, 2
      %v3081 = vsel %vm862, %v3078, %v3080
      %v3082 = vrot.slane %v2521, 2
      %v3083 = vrot.slane %v2522, 2
      %v3084 = vsel %vm862, %v3082, %v3083
      %v3085 = vrot.slane %v2523, 2
      %v3086 = vsel %vm862, %v3083, %v3085
      %v3087 = vrot.slane %v2524, 2
      %v3088 = vrot.slane %v2525, 2
      %v3089 = vsel %vm862, %v3087, %v3088
      %v3090 = vrot.slane %v2526, 2
      %v3091 = vsel %vm862, %v3088, %v3090
      %v3092 = vrot.slane %v2527, 2
      %v3093 = vrot.slane %v2528, 2
      %v3094 = vsel %vm862, %v3092, %v3093
      %v3095 = vrot.slane %v2529, 2
      %v3096 = vsel %vm862, %v3093, %v3095
      %v3097 = vrot.slane %v2530, 2
      %v3098 = vrot.slane %v2531, 2
      %v3099 = vsel %vm862, %v3097, %v3098
      %v3100 = vrot.slane %v2532, 2
      %v3101 = vsel %vm862, %v3098, %v3100
      %v3102 = vrot.slane %v2533, 2
      %v3103 = vrot.slane %v2534, 2
      %v3104 = vsel %vm862, %v3102, %v3103
      %v3105 = vrot.slane %v2535, 2
      %v3106 = vsel %vm862, %v3103, %v3105
      %v3107 = vrot.slane %v2536, 2
      %v3108 = vrot.slane %v2537, 2
      %v3109 = vsel %vm862, %v3107, %v3108
      %v3110 = vrot.slane %v2538, 2
      %v3111 = vsel %vm862, %v3108, %v3110
      %v3112 = vrot.slane %v2539, 2
      %v3113 = vrot.slane %v2540, 2
      %v3114 = vsel %vm862, %v3112, %v3113
      %v3115 = vrot.slane %v2541, 2
      %v3116 = vsel %vm862, %v3113, %v3115
      %v3117 = vrot.slane %v2542, 2
      %v3118 = vrot.slane %v2543, 2
      %v3119 = vsel %vm862, %v3117, %v3118
      %v3120 = vrot.slane %v2544, 2
      %v3121 = vsel %vm862, %v3118, %v3120
      %s3122 = scalar_lea.vmem %s2, 8
      %v3123 = vld [vmem:[%s3122] sm:$0xf]
      %v3124 = vsel %vm204, %v3044, 0
      %v3126 = vsel %vm204, %v3046, 0
      %v3128 = vsel %vm204, %v3049, 0
      %v3130 = vsel %vm204, %v3051, 0
      %v3132 = vsel %vm204, %v3054, 0
      %v3134 = vsel %vm204, %v3056, 0
      %v3136 = vsel %vm204, %v3059, 0
      %v3138 = vsel %vm204, %v3061, 0
      %v3140 = vsel %vm204, %v3064, 0
      %v3142 = vsel %vm204, %v3066, 0
      %v3144 = vsel %vm204, %v3069, 0
      %v3146 = vsel %vm204, %v3071, 0
      %v3148 = vsel %vm204, %v3074, 0
      %v3150 = vsel %vm204, %v3076, 0
      %v3152 = vsel %vm204, %v3079, 0
      %v3154 = vsel %vm204, %v3081, 0
      %v3156 = vsel %vm204, %v3084, 0
      %v3158 = vsel %vm204, %v3086, 0
      %v3160 = vsel %vm204, %v3089, 0
      %v3162 = vsel %vm204, %v3091, 0
      %v3164 = vsel %vm204, %v3094, 0
      %v3166 = vsel %vm204, %v3096, 0
      %v3168 = vsel %vm204, %v3099, 0
      %v3170 = vsel %vm204, %v3101, 0
      %v3172 = vsel %vm204, %v3104, 0
      %v3174 = vsel %vm204, %v3106, 0
      %v3176 = vsel %vm204, %v3109, 0
      %v3178 = vsel %vm204, %v3111, 0
      %v3180 = vsel %vm204, %v3114, 0
      %v3182 = vsel %vm204, %v3116, 0
      %v3184 = vsel %vm204, %v3119, 0
      %v3186 = vsel %vm204, %v3121, 0
      %v3189 = vsel %vm565, %v3123, 0
      %3191 = vmatpush.msra.mxu0 0.0
      %3192 = vmatpush.msra.mxu0 0.0
      %3193 = vmatpush.msra.mxu0 0.0
      %3194 = vmatpush.msra.mxu0 0.0
      %3195 = vmatpush.msra.mxu0 0.0
      %3196 = vmatpush.msra.mxu0 0.0
      %3197 = vmatpush.msra.mxu0 0.0
      %3198 = vmatpush.msra.mxu0 0.0
      %3199 = vmatpush.msra.mxu0 0.0
      %3200 = vmatpush.msra.mxu0 0.0
      %3201 = vmatpush.msra.mxu0 0.0
      %3202 = vmatpush.msra.mxu0 0.0
      %3203 = vmatpush.msra.mxu0 0.0
      %3204 = vmatpush.msra.mxu0 0.0
      %3205 = vmatpush.msra.mxu0 0.0
      %3206 = vmatpush.msra.mxu0 %v3189
      %3207 = vmatmul.f32.gmra.mxu0 %v3124
      %v3208 = vpop.f32.mrf.mxu0
      %v3209 = vadd.f32 0.0, %v3208
      %3210 = vmatmul.f32.gmra.mxu0 %v3126
      %v3211 = vpop.f32.mrf.mxu0
      %v3212 = vadd.f32 0.0, %v3211
      %3213 = vmatmul.f32.gmra.mxu0 %v3128
      %v3214 = vpop.f32.mrf.mxu0
      %v3215 = vadd.f32 0.0, %v3214
      %3216 = vmatmul.f32.gmra.mxu0 %v3130
      %v3217 = vpop.f32.mrf.mxu0
      %v3218 = vadd.f32 0.0, %v3217
      %3219 = vmatmul.f32.gmra.mxu0 %v3132
      %v3220 = vpop.f32.mrf.mxu0
      %v3221 = vadd.f32 0.0, %v3220
      %3222 = vmatmul.f32.gmra.mxu0 %v3134
      %v3223 = vpop.f32.mrf.mxu0
      %v3224 = vadd.f32 0.0, %v3223
      %3225 = vmatmul.f32.gmra.mxu0 %v3136
      %v3226 = vpop.f32.mrf.mxu0
      %v3227 = vadd.f32 0.0, %v3226
      %3228 = vmatmul.f32.gmra.mxu0 %v3138
      %v3229 = vpop.f32.mrf.mxu0
      %v3230 = vadd.f32 0.0, %v3229
      %3231 = vmatmul.f32.gmra.mxu0 %v3140
      %v3232 = vpop.f32.mrf.mxu0
      %v3233 = vadd.f32 0.0, %v3232
      %3234 = vmatmul.f32.gmra.mxu0 %v3142
      %v3235 = vpop.f32.mrf.mxu0
      %v3236 = vadd.f32 0.0, %v3235
      %3237 = vmatmul.f32.gmra.mxu0 %v3144
      %v3238 = vpop.f32.mrf.mxu0
      %v3239 = vadd.f32 0.0, %v3238
      %3240 = vmatmul.f32.gmra.mxu0 %v3146
      %v3241 = vpop.f32.mrf.mxu0
      %v3242 = vadd.f32 0.0, %v3241
      %3243 = vmatmul.f32.gmra.mxu0 %v3148
      %v3244 = vpop.f32.mrf.mxu0
      %v3245 = vadd.f32 0.0, %v3244
      %3246 = vmatmul.f32.gmra.mxu0 %v3150
      %v3247 = vpop.f32.mrf.mxu0
      %v3248 = vadd.f32 0.0, %v3247
      %3249 = vmatmul.f32.gmra.mxu0 %v3152
      %v3250 = vpop.f32.mrf.mxu0
      %v3251 = vadd.f32 0.0, %v3250
      %3252 = vmatmul.f32.gmra.mxu0 %v3154
      %v3253 = vpop.f32.mrf.mxu0
      %v3254 = vadd.f32 0.0, %v3253
      %3255 = vmatmul.f32.gmra.mxu0 %v3156
      %v3256 = vpop.f32.mrf.mxu0
      %v3257 = vadd.f32 0.0, %v3256
      %3258 = vmatmul.f32.gmra.mxu0 %v3158
      %v3259 = vpop.f32.mrf.mxu0
      %v3260 = vadd.f32 0.0, %v3259
      %3261 = vmatmul.f32.gmra.mxu0 %v3160
      %v3262 = vpop.f32.mrf.mxu0
      %v3263 = vadd.f32 0.0, %v3262
      %3264 = vmatmul.f32.gmra.mxu0 %v3162
      %v3265 = vpop.f32.mrf.mxu0
      %v3266 = vadd.f32 0.0, %v3265
      %3267 = vmatmul.f32.gmra.mxu0 %v3164
      %v3268 = vpop.f32.mrf.mxu0
      %v3269 = vadd.f32 0.0, %v3268
      %3270 = vmatmul.f32.gmra.mxu0 %v3166
      %v3271 = vpop.f32.mrf.mxu0
      %v3272 = vadd.f32 0.0, %v3271
      %3273 = vmatmul.f32.gmra.mxu0 %v3168
      %v3274 = vpop.f32.mrf.mxu0
      %v3275 = vadd.f32 0.0, %v3274
      %3276 = vmatmul.f32.gmra.mxu0 %v3170
      %v3277 = vpop.f32.mrf.mxu0
      %v3278 = vadd.f32 0.0, %v3277
      %3279 = vmatmul.f32.gmra.mxu0 %v3172
      %v3280 = vpop.f32.mrf.mxu0
      %v3281 = vadd.f32 0.0, %v3280
      %3282 = vmatmul.f32.gmra.mxu0 %v3174
      %v3283 = vpop.f32.mrf.mxu0
      %v3284 = vadd.f32 0.0, %v3283
      %3285 = vmatmul.f32.gmra.mxu0 %v3176
      %v3286 = vpop.f32.mrf.mxu0
      %v3287 = vadd.f32 0.0, %v3286
      %3288 = vmatmul.f32.gmra.mxu0 %v3178
      %v3289 = vpop.f32.mrf.mxu0
      %v3290 = vadd.f32 0.0, %v3289
      %3291 = vmatmul.f32.gmra.mxu0 %v3180
      %v3292 = vpop.f32.mrf.mxu0
      %v3293 = vadd.f32 0.0, %v3292
      %3294 = vmatmul.f32.gmra.mxu0 %v3182
      %v3295 = vpop.f32.mrf.mxu0
      %v3296 = vadd.f32 0.0, %v3295
      %3297 = vmatmul.f32.gmra.mxu0 %v3184
      %v3298 = vpop.f32.mrf.mxu0
      %v3299 = vadd.f32 0.0, %v3298
      %3300 = vmatmul.f32.gmra.mxu0 %v3186
      %v3301 = vpop.f32.mrf.mxu0
      %v3302 = vadd.f32 0.0, %v3301
      %3303 = vdwg.mxu0
      %v3304 = vadd.f32 %v2947, %v3209
      %v3305 = vadd.f32 %v2950, %v3212
      %v3306 = vadd.f32 %v2953, %v3215
      %v3307 = vadd.f32 %v2956, %v3218
      %v3308 = vadd.f32 %v2959, %v3221
      %v3309 = vadd.f32 %v2962, %v3224
      %v3310 = vadd.f32 %v2965, %v3227
      %v3311 = vadd.f32 %v2968, %v3230
      %v3312 = vadd.f32 %v2971, %v3233
      %v3313 = vadd.f32 %v2974, %v3236
      %v3314 = vadd.f32 %v2977, %v3239
      %v3315 = vadd.f32 %v2980, %v3242
      %v3316 = vadd.f32 %v2983, %v3245
      %v3317 = vadd.f32 %v2986, %v3248
      %v3318 = vadd.f32 %v2989, %v3251
      %v3319 = vadd.f32 %v2992, %v3254
      %v3320 = vadd.f32 %v2995, %v3257
      %v3321 = vadd.f32 %v2998, %v3260
      %v3322 = vadd.f32 %v3001, %v3263
      %v3323 = vadd.f32 %v3004, %v3266
      %v3324 = vadd.f32 %v3007, %v3269
      %v3325 = vadd.f32 %v3010, %v3272
      %v3326 = vadd.f32 %v3013, %v3275
      %v3327 = vadd.f32 %v3016, %v3278
      %v3328 = vadd.f32 %v3019, %v3281
      %v3329 = vadd.f32 %v3022, %v3284
      %v3330 = vadd.f32 %v3025, %v3287
      %v3331 = vadd.f32 %v3028, %v3290
      %v3332 = vadd.f32 %v3031, %v3293
      %v3333 = vadd.f32 %v3034, %v3296
      %v3334 = vadd.f32 %v3037, %v3299
      %v3335 = vadd.f32 %v3040, %v3302
      %s3336 = scalar_lea.vmem %s2, 12
      %v3337 = vld [vmem:[%s3336] sm:$0xf]
      %v3339 = vsel %vm204, %v2545, 0
      %v3342 = vsel %vm204, %v2546, 0
      %v3345 = vsel %vm565, %v3337, 0
      %3347 = vmatpush.msra.mxu0 0.0
      %3348 = vmatpush.msra.mxu0 0.0
      %3349 = vmatpush.msra.mxu0 0.0
      %3350 = vmatpush.msra.mxu0 0.0
      %3351 = vmatpush.msra.mxu0 0.0
      %3352 = vmatpush.msra.mxu0 0.0
      %3353 = vmatpush.msra.mxu0 0.0
      %3354 = vmatpush.msra.mxu0 0.0
      %3355 = vmatpush.msra.mxu0 0.0
      %3356 = vmatpush.msra.mxu0 0.0
      %3357 = vmatpush.msra.mxu0 0.0
      %3358 = vmatpush.msra.mxu0 0.0
      %3359 = vmatpush.msra.mxu0 0.0
      %3360 = vmatpush.msra.mxu0 0.0
      %3361 = vmatpush.msra.mxu0 0.0
      %3362 = vmatpush.msra.mxu0 %v3345
      %3363 = vmatmul.f32.gmra.mxu0 %v2866
      %v3364 = vpop.f32.mrf.mxu0
      %v3365 = vadd.f32 0.0, %v3364
      %3366 = vmatmul.f32.gmra.mxu0 %v2868
      %v3367 = vpop.f32.mrf.mxu0
      %v3368 = vadd.f32 0.0, %v3367
      %3369 = vmatmul.f32.gmra.mxu0 %v2870
      %v3370 = vpop.f32.mrf.mxu0
      %v3371 = vadd.f32 0.0, %v3370
      %3372 = vmatmul.f32.gmra.mxu0 %v2872
      %v3373 = vpop.f32.mrf.mxu0
      %v3374 = vadd.f32 0.0, %v3373
      %3375 = vmatmul.f32.gmra.mxu0 %v2874
      %v3376 = vpop.f32.mrf.mxu0
      %v3377 = vadd.f32 0.0, %v3376
      %3378 = vmatmul.f32.gmra.mxu0 %v2876
      %v3379 = vpop.f32.mrf.mxu0
      %v3380 = vadd.f32 0.0, %v3379
      %3381 = vmatmul.f32.gmra.mxu0 %v2878
      %v3382 = vpop.f32.mrf.mxu0
      %v3383 = vadd.f32 0.0, %v3382
      %3384 = vmatmul.f32.gmra.mxu0 %v2880
      %v3385 = vpop.f32.mrf.mxu0
      %v3386 = vadd.f32 0.0, %v3385
      %3387 = vmatmul.f32.gmra.mxu0 %v2882
      %v3388 = vpop.f32.mrf.mxu0
      %v3389 = vadd.f32 0.0, %v3388
      %3390 = vmatmul.f32.gmra.mxu0 %v2884
      %v3391 = vpop.f32.mrf.mxu0
      %v3392 = vadd.f32 0.0, %v3391
      %3393 = vmatmul.f32.gmra.mxu0 %v2886
      %v3394 = vpop.f32.mrf.mxu0
      %v3395 = vadd.f32 0.0, %v3394
      %3396 = vmatmul.f32.gmra.mxu0 %v2888
      %v3397 = vpop.f32.mrf.mxu0
      %v3398 = vadd.f32 0.0, %v3397
      %3399 = vmatmul.f32.gmra.mxu0 %v2890
      %v3400 = vpop.f32.mrf.mxu0
      %v3401 = vadd.f32 0.0, %v3400
      %3402 = vmatmul.f32.gmra.mxu0 %v2892
      %v3403 = vpop.f32.mrf.mxu0
      %v3404 = vadd.f32 0.0, %v3403
      %3405 = vmatmul.f32.gmra.mxu0 %v2894
      %v3406 = vpop.f32.mrf.mxu0
      %v3407 = vadd.f32 0.0, %v3406
      %3408 = vmatmul.f32.gmra.mxu0 %v2896
      %v3409 = vpop.f32.mrf.mxu0
      %v3410 = vadd.f32 0.0, %v3409
      %3411 = vmatmul.f32.gmra.mxu0 %v2898
      %v3412 = vpop.f32.mrf.mxu0
      %v3413 = vadd.f32 0.0, %v3412
      %3414 = vmatmul.f32.gmra.mxu0 %v2900
      %v3415 = vpop.f32.mrf.mxu0
      %v3416 = vadd.f32 0.0, %v3415
      %3417 = vmatmul.f32.gmra.mxu0 %v2902
      %v3418 = vpop.f32.mrf.mxu0
      %v3419 = vadd.f32 0.0, %v3418
      %3420 = vmatmul.f32.gmra.mxu0 %v2904
      %v3421 = vpop.f32.mrf.mxu0
      %v3422 = vadd.f32 0.0, %v3421
      %3423 = vmatmul.f32.gmra.mxu0 %v2906
      %v3424 = vpop.f32.mrf.mxu0
      %v3425 = vadd.f32 0.0, %v3424
      %3426 = vmatmul.f32.gmra.mxu0 %v2908
      %v3427 = vpop.f32.mrf.mxu0
      %v3428 = vadd.f32 0.0, %v3427
      %3429 = vmatmul.f32.gmra.mxu0 %v2910
      %v3430 = vpop.f32.mrf.mxu0
      %v3431 = vadd.f32 0.0, %v3430
      %3432 = vmatmul.f32.gmra.mxu0 %v2912
      %v3433 = vpop.f32.mrf.mxu0
      %v3434 = vadd.f32 0.0, %v3433
      %3435 = vmatmul.f32.gmra.mxu0 %v2914
      %v3436 = vpop.f32.mrf.mxu0
      %v3437 = vadd.f32 0.0, %v3436
      %3438 = vmatmul.f32.gmra.mxu0 %v2916
      %v3439 = vpop.f32.mrf.mxu0
      %v3440 = vadd.f32 0.0, %v3439
      %3441 = vmatmul.f32.gmra.mxu0 %v2918
      %v3442 = vpop.f32.mrf.mxu0
      %v3443 = vadd.f32 0.0, %v3442
      %3444 = vmatmul.f32.gmra.mxu0 %v2920
      %v3445 = vpop.f32.mrf.mxu0
      %v3446 = vadd.f32 0.0, %v3445
      %3447 = vmatmul.f32.gmra.mxu0 %v2922
      %v3448 = vpop.f32.mrf.mxu0
      %v3449 = vadd.f32 0.0, %v3448
      %3450 = vmatmul.f32.gmra.mxu0 %v2924
      %v3451 = vpop.f32.mrf.mxu0
      %v3452 = vadd.f32 0.0, %v3451
      %3453 = vmatmul.f32.gmra.mxu0 %v3339
      %v3454 = vpop.f32.mrf.mxu0
      %v3455 = vadd.f32 0.0, %v3454
      %3456 = vmatmul.f32.gmra.mxu0 %v3342
      %v3457 = vpop.f32.mrf.mxu0
      %v3458 = vadd.f32 0.0, %v3457
      %3459 = vdwg.mxu0
      %v3460 = vadd.f32 %v3304, %v3365
      %v3461 = vadd.f32 %v3305, %v3368
      %v3462 = vadd.f32 %v3306, %v3371
      %v3463 = vadd.f32 %v3307, %v3374
      %v3464 = vadd.f32 %v3308, %v3377
      %v3465 = vadd.f32 %v3309, %v3380
      %v3466 = vadd.f32 %v3310, %v3383
      %v3467 = vadd.f32 %v3311, %v3386
      %v3468 = vadd.f32 %v3312, %v3389
      %v3469 = vadd.f32 %v3313, %v3392
      %v3470 = vadd.f32 %v3314, %v3395
      %v3471 = vadd.f32 %v3315, %v3398
      %v3472 = vadd.f32 %v3316, %v3401
      %v3473 = vadd.f32 %v3317, %v3404
      %v3474 = vadd.f32 %v3318, %v3407
      %v3475 = vadd.f32 %v3319, %v3410
      %v3476 = vadd.f32 %v3320, %v3413
      %v3477 = vadd.f32 %v3321, %v3416
      %v3478 = vadd.f32 %v3322, %v3419
      %v3479 = vadd.f32 %v3323, %v3422
      %v3480 = vadd.f32 %v3324, %v3425
      %v3481 = vadd.f32 %v3325, %v3428
      %v3482 = vadd.f32 %v3326, %v3431
      %v3483 = vadd.f32 %v3327, %v3434
      %v3484 = vadd.f32 %v3328, %v3437
      %v3485 = vadd.f32 %v3329, %v3440
      %v3486 = vadd.f32 %v3330, %v3443
      %v3487 = vadd.f32 %v3331, %v3446
      %v3488 = vadd.f32 %v3332, %v3449
      %v3489 = vadd.f32 %v3333, %v3452
      %v3490 = vadd.f32 %v3334, %v3455
      %v3491 = vadd.f32 %v3335, %v3458
      %v3493 = vrot.slane %v2545, 1
      %v3494 = vrot.slane %v2546, 1
      %v3495 = vsel %vm418, %v3493, %v3494
      %v3496 = vrot.slane %v2547, 1
      %v3497 = vsel %vm418, %v3494, %v3496
      %s3498 = scalar_lea.vmem %s2, 16
      %v3499 = vld [vmem:[%s3498] sm:$0xf]
      %v3500 = vsel %vm204, %v3495, 0
      %v3502 = vsel %vm204, %v3497, 0
      %v3505 = vsel %vm565, %v3499, 0
      %3507 = vmatpush.msra.mxu0 0.0
      %3508 = vmatpush.msra.mxu0 0.0
      %3509 = vmatpush.msra.mxu0 0.0
      %3510 = vmatpush.msra.mxu0 0.0
      %3511 = vmatpush.msra.mxu0 0.0
      %3512 = vmatpush.msra.mxu0 0.0
      %3513 = vmatpush.msra.mxu0 0.0
      %3514 = vmatpush.msra.mxu0 0.0
      %3515 = vmatpush.msra.mxu0 0.0
      %3516 = vmatpush.msra.mxu0 0.0
      %3517 = vmatpush.msra.mxu0 0.0
      %3518 = vmatpush.msra.mxu0 0.0
      %3519 = vmatpush.msra.mxu0 0.0
      %3520 = vmatpush.msra.mxu0 0.0
      %3521 = vmatpush.msra.mxu0 0.0
      %3522 = vmatpush.msra.mxu0 %v3505
      %3523 = vmatmul.f32.gmra.mxu0 %v2686
      %v3524 = vpop.f32.mrf.mxu0
      %v3525 = vadd.f32 0.0, %v3524
      %3526 = vmatmul.f32.gmra.mxu0 %v2688
      %v3527 = vpop.f32.mrf.mxu0
      %v3528 = vadd.f32 0.0, %v3527
      %3529 = vmatmul.f32.gmra.mxu0 %v2690
      %v3530 = vpop.f32.mrf.mxu0
      %v3531 = vadd.f32 0.0, %v3530
      %3532 = vmatmul.f32.gmra.mxu0 %v2692
      %v3533 = vpop.f32.mrf.mxu0
      %v3534 = vadd.f32 0.0, %v3533
      %3535 = vmatmul.f32.gmra.mxu0 %v2694
      %v3536 = vpop.f32.mrf.mxu0
      %v3537 = vadd.f32 0.0, %v3536
      %3538 = vmatmul.f32.gmra.mxu0 %v2696
      %v3539 = vpop.f32.mrf.mxu0
      %v3540 = vadd.f32 0.0, %v3539
      %3541 = vmatmul.f32.gmra.mxu0 %v2698
      %v3542 = vpop.f32.mrf.mxu0
      %v3543 = vadd.f32 0.0, %v3542
      %3544 = vmatmul.f32.gmra.mxu0 %v2700
      %v3545 = vpop.f32.mrf.mxu0
      %v3546 = vadd.f32 0.0, %v3545
      %3547 = vmatmul.f32.gmra.mxu0 %v2702
      %v3548 = vpop.f32.mrf.mxu0
      %v3549 = vadd.f32 0.0, %v3548
      %3550 = vmatmul.f32.gmra.mxu0 %v2704
      %v3551 = vpop.f32.mrf.mxu0
      %v3552 = vadd.f32 0.0, %v3551
      %3553 = vmatmul.f32.gmra.mxu0 %v2706
      %v3554 = vpop.f32.mrf.mxu0
      %v3555 = vadd.f32 0.0, %v3554
      %3556 = vmatmul.f32.gmra.mxu0 %v2708
      %v3557 = vpop.f32.mrf.mxu0
      %v3558 = vadd.f32 0.0, %v3557
      %3559 = vmatmul.f32.gmra.mxu0 %v2710
      %v3560 = vpop.f32.mrf.mxu0
      %v3561 = vadd.f32 0.0, %v3560
      %3562 = vmatmul.f32.gmra.mxu0 %v2712
      %v3563 = vpop.f32.mrf.mxu0
      %v3564 = vadd.f32 0.0, %v3563
      %3565 = vmatmul.f32.gmra.mxu0 %v2714
      %v3566 = vpop.f32.mrf.mxu0
      %v3567 = vadd.f32 0.0, %v3566
      %3568 = vmatmul.f32.gmra.mxu0 %v2716
      %v3569 = vpop.f32.mrf.mxu0
      %v3570 = vadd.f32 0.0, %v3569
      %3571 = vmatmul.f32.gmra.mxu0 %v2718
      %v3572 = vpop.f32.mrf.mxu0
      %v3573 = vadd.f32 0.0, %v3572
      %3574 = vmatmul.f32.gmra.mxu0 %v2720
      %v3575 = vpop.f32.mrf.mxu0
      %v3576 = vadd.f32 0.0, %v3575
      %3577 = vmatmul.f32.gmra.mxu0 %v2722
      %v3578 = vpop.f32.mrf.mxu0
      %v3579 = vadd.f32 0.0, %v3578
      %3580 = vmatmul.f32.gmra.mxu0 %v2724
      %v3581 = vpop.f32.mrf.mxu0
      %v3582 = vadd.f32 0.0, %v3581
      %3583 = vmatmul.f32.gmra.mxu0 %v2726
      %v3584 = vpop.f32.mrf.mxu0
      %v3585 = vadd.f32 0.0, %v3584
      %3586 = vmatmul.f32.gmra.mxu0 %v2728
      %v3587 = vpop.f32.mrf.mxu0
      %v3588 = vadd.f32 0.0, %v3587
      %3589 = vmatmul.f32.gmra.mxu0 %v2730
      %v3590 = vpop.f32.mrf.mxu0
      %v3591 = vadd.f32 0.0, %v3590
      %3592 = vmatmul.f32.gmra.mxu0 %v2732
      %v3593 = vpop.f32.mrf.mxu0
      %v3594 = vadd.f32 0.0, %v3593
      %3595 = vmatmul.f32.gmra.mxu0 %v2734
      %v3596 = vpop.f32.mrf.mxu0
      %v3597 = vadd.f32 0.0, %v3596
      %3598 = vmatmul.f32.gmra.mxu0 %v2736
      %v3599 = vpop.f32.mrf.mxu0
      %v3600 = vadd.f32 0.0, %v3599
      %3601 = vmatmul.f32.gmra.mxu0 %v2738
      %v3602 = vpop.f32.mrf.mxu0
      %v3603 = vadd.f32 0.0, %v3602
      %3604 = vmatmul.f32.gmra.mxu0 %v2740
      %v3605 = vpop.f32.mrf.mxu0
      %v3606 = vadd.f32 0.0, %v3605
      %3607 = vmatmul.f32.gmra.mxu0 %v2742
      %v3608 = vpop.f32.mrf.mxu0
      %v3609 = vadd.f32 0.0, %v3608
      %3610 = vmatmul.f32.gmra.mxu0 %v2744
      %v3611 = vpop.f32.mrf.mxu0
      %v3612 = vadd.f32 0.0, %v3611
      %3613 = vmatmul.f32.gmra.mxu0 %v3500
      %v3614 = vpop.f32.mrf.mxu0
      %v3615 = vadd.f32 0.0, %v3614
      %3616 = vmatmul.f32.gmra.mxu0 %v3502
      %v3617 = vpop.f32.mrf.mxu0
      %v3618 = vadd.f32 0.0, %v3617
      %3619 = vdwg.mxu0
      %v3620 = vadd.f32 %v3460, %v3525
      %v3621 = vadd.f32 %v3461, %v3528
      %v3622 = vadd.f32 %v3462, %v3531
      %v3623 = vadd.f32 %v3463, %v3534
      %v3624 = vadd.f32 %v3464, %v3537
      %v3625 = vadd.f32 %v3465, %v3540
      %v3626 = vadd.f32 %v3466, %v3543
      %v3627 = vadd.f32 %v3467, %v3546
      %v3628 = vadd.f32 %v3468, %v3549
      %v3629 = vadd.f32 %v3469, %v3552
      %v3630 = vadd.f32 %v3470, %v3555
      %v3631 = vadd.f32 %v3471, %v3558
      %v3632 = vadd.f32 %v3472, %v3561
      %v3633 = vadd.f32 %v3473, %v3564
      %v3634 = vadd.f32 %v3474, %v3567
      %v3635 = vadd.f32 %v3475, %v3570
      %v3636 = vadd.f32 %v3476, %v3573
      %v3637 = vadd.f32 %v3477, %v3576
      %v3638 = vadd.f32 %v3478, %v3579
      %v3639 = vadd.f32 %v3479, %v3582
      %v3640 = vadd.f32 %v3480, %v3585
      %v3641 = vadd.f32 %v3481, %v3588
      %v3642 = vadd.f32 %v3482, %v3591
      %v3643 = vadd.f32 %v3483, %v3594
      %v3644 = vadd.f32 %v3484, %v3597
      %v3645 = vadd.f32 %v3485, %v3600
      %v3646 = vadd.f32 %v3486, %v3603
      %v3647 = vadd.f32 %v3487, %v3606
      %v3648 = vadd.f32 %v3488, %v3609
      %v3649 = vadd.f32 %v3489, %v3612
      %v3650 = vadd.f32 %v3490, %v3615
      %v3651 = vadd.f32 %v3491, %v3618
      %v3652 = vrot.slane %v2545, 2
      %v3653 = vrot.slane %v2546, 2
      %v3654 = vsel %vm862, %v3652, %v3653
      %v3655 = vrot.slane %v2547, 2
      %v3656 = vsel %vm862, %v3653, %v3655
      %s3657 = scalar_lea.vmem %s2, 20
      %v3658 = vld [vmem:[%s3657] sm:$0xf]
      %v3659 = vsel %vm204, %v3654, 0
      %v3661 = vsel %vm204, %v3656, 0
      %v3664 = vsel %vm565, %v3658, 0
      %3666 = vmatpush.msra.mxu0 0.0
      %3667 = vmatpush.msra.mxu0 0.0
      %3668 = vmatpush.msra.mxu0 0.0
      %3669 = vmatpush.msra.mxu0 0.0
      %3670 = vmatpush.msra.mxu0 0.0
      %3671 = vmatpush.msra.mxu0 0.0
      %3672 = vmatpush.msra.mxu0 0.0
      %3673 = vmatpush.msra.mxu0 0.0
      %3674 = vmatpush.msra.mxu0 0.0
      %3675 = vmatpush.msra.mxu0 0.0
      %3676 = vmatpush.msra.mxu0 0.0
      %3677 = vmatpush.msra.mxu0 0.0
      %3678 = vmatpush.msra.mxu0 0.0
      %3679 = vmatpush.msra.mxu0 0.0
      %3680 = vmatpush.msra.mxu0 0.0
      %3681 = vmatpush.msra.mxu0 %v3664
      %3682 = vmatmul.f32.gmra.mxu0 %v3128
      %v3683 = vpop.f32.mrf.mxu0
      %v3684 = vadd.f32 0.0, %v3683
      %3685 = vmatmul.f32.gmra.mxu0 %v3130
      %v3686 = vpop.f32.mrf.mxu0
      %v3687 = vadd.f32 0.0, %v3686
      %3688 = vmatmul.f32.gmra.mxu0 %v3132
      %v3689 = vpop.f32.mrf.mxu0
      %v3690 = vadd.f32 0.0, %v3689
      %3691 = vmatmul.f32.gmra.mxu0 %v3134
      %v3692 = vpop.f32.mrf.mxu0
      %v3693 = vadd.f32 0.0, %v3692
      %3694 = vmatmul.f32.gmra.mxu0 %v3136
      %v3695 = vpop.f32.mrf.mxu0
      %v3696 = vadd.f32 0.0, %v3695
      %3697 = vmatmul.f32.gmra.mxu0 %v3138
      %v3698 = vpop.f32.mrf.mxu0
      %v3699 = vadd.f32 0.0, %v3698
      %3700 = vmatmul.f32.gmra.mxu0 %v3140
      %v3701 = vpop.f32.mrf.mxu0
      %v3702 = vadd.f32 0.0, %v3701
      %3703 = vmatmul.f32.gmra.mxu0 %v3142
      %v3704 = vpop.f32.mrf.mxu0
      %v3705 = vadd.f32 0.0, %v3704
      %3706 = vmatmul.f32.gmra.mxu0 %v3144
      %v3707 = vpop.f32.mrf.mxu0
      %v3708 = vadd.f32 0.0, %v3707
      %3709 = vmatmul.f32.gmra.mxu0 %v3146
      %v3710 = vpop.f32.mrf.mxu0
      %v3711 = vadd.f32 0.0, %v3710
      %3712 = vmatmul.f32.gmra.mxu0 %v3148
      %v3713 = vpop.f32.mrf.mxu0
      %v3714 = vadd.f32 0.0, %v3713
      %3715 = vmatmul.f32.gmra.mxu0 %v3150
      %v3716 = vpop.f32.mrf.mxu0
      %v3717 = vadd.f32 0.0, %v3716
      %3718 = vmatmul.f32.gmra.mxu0 %v3152
      %v3719 = vpop.f32.mrf.mxu0
      %v3720 = vadd.f32 0.0, %v3719
      %3721 = vmatmul.f32.gmra.mxu0 %v3154
      %v3722 = vpop.f32.mrf.mxu0
      %v3723 = vadd.f32 0.0, %v3722
      %3724 = vmatmul.f32.gmra.mxu0 %v3156
      %v3725 = vpop.f32.mrf.mxu0
      %v3726 = vadd.f32 0.0, %v3725
      %3727 = vmatmul.f32.gmra.mxu0 %v3158
      %v3728 = vpop.f32.mrf.mxu0
      %v3729 = vadd.f32 0.0, %v3728
      %3730 = vmatmul.f32.gmra.mxu0 %v3160
      %v3731 = vpop.f32.mrf.mxu0
      %v3732 = vadd.f32 0.0, %v3731
      %3733 = vmatmul.f32.gmra.mxu0 %v3162
      %v3734 = vpop.f32.mrf.mxu0
      %v3735 = vadd.f32 0.0, %v3734
      %3736 = vmatmul.f32.gmra.mxu0 %v3164
      %v3737 = vpop.f32.mrf.mxu0
      %v3738 = vadd.f32 0.0, %v3737
      %3739 = vmatmul.f32.gmra.mxu0 %v3166
      %v3740 = vpop.f32.mrf.mxu0
      %v3741 = vadd.f32 0.0, %v3740
      %3742 = vmatmul.f32.gmra.mxu0 %v3168
      %v3743 = vpop.f32.mrf.mxu0
      %v3744 = vadd.f32 0.0, %v3743
      %3745 = vmatmul.f32.gmra.mxu0 %v3170
      %v3746 = vpop.f32.mrf.mxu0
      %v3747 = vadd.f32 0.0, %v3746
      %3748 = vmatmul.f32.gmra.mxu0 %v3172
      %v3749 = vpop.f32.mrf.mxu0
      %v3750 = vadd.f32 0.0, %v3749
      %3751 = vmatmul.f32.gmra.mxu0 %v3174
      %v3752 = vpop.f32.mrf.mxu0
      %v3753 = vadd.f32 0.0, %v3752
      %3754 = vmatmul.f32.gmra.mxu0 %v3176
      %v3755 = vpop.f32.mrf.mxu0
      %v3756 = vadd.f32 0.0, %v3755
      %3757 = vmatmul.f32.gmra.mxu0 %v3178
      %v3758 = vpop.f32.mrf.mxu0
      %v3759 = vadd.f32 0.0, %v3758
      %3760 = vmatmul.f32.gmra.mxu0 %v3180
      %v3761 = vpop.f32.mrf.mxu0
      %v3762 = vadd.f32 0.0, %v3761
      %3763 = vmatmul.f32.gmra.mxu0 %v3182
      %v3764 = vpop.f32.mrf.mxu0
      %v3765 = vadd.f32 0.0, %v3764
      %3766 = vmatmul.f32.gmra.mxu0 %v3184
      %v3767 = vpop.f32.mrf.mxu0
      %v3768 = vadd.f32 0.0, %v3767
      %3769 = vmatmul.f32.gmra.mxu0 %v3186
      %v3770 = vpop.f32.mrf.mxu0
      %v3771 = vadd.f32 0.0, %v3770
      %3772 = vmatmul.f32.gmra.mxu0 %v3659
      %v3773 = vpop.f32.mrf.mxu0
      %v3774 = vadd.f32 0.0, %v3773
      %3775 = vmatmul.f32.gmra.mxu0 %v3661
      %v3776 = vpop.f32.mrf.mxu0
      %v3777 = vadd.f32 0.0, %v3776
      %3778 = vdwg.mxu0
      %v3779 = vadd.f32 %v3620, %v3684
      %v3780 = vadd.f32 %v3621, %v3687
      %v3781 = vadd.f32 %v3622, %v3690
      %v3782 = vadd.f32 %v3623, %v3693
      %v3783 = vadd.f32 %v3624, %v3696
      %v3784 = vadd.f32 %v3625, %v3699
      %v3785 = vadd.f32 %v3626, %v3702
      %v3786 = vadd.f32 %v3627, %v3705
      %v3787 = vadd.f32 %v3628, %v3708
      %v3788 = vadd.f32 %v3629, %v3711
      %v3789 = vadd.f32 %v3630, %v3714
      %v3790 = vadd.f32 %v3631, %v3717
      %v3791 = vadd.f32 %v3632, %v3720
      %v3792 = vadd.f32 %v3633, %v3723
      %v3793 = vadd.f32 %v3634, %v3726
      %v3794 = vadd.f32 %v3635, %v3729
      %v3795 = vadd.f32 %v3636, %v3732
      %v3796 = vadd.f32 %v3637, %v3735
      %v3797 = vadd.f32 %v3638, %v3738
      %v3798 = vadd.f32 %v3639, %v3741
      %v3799 = vadd.f32 %v3640, %v3744
      %v3800 = vadd.f32 %v3641, %v3747
      %v3801 = vadd.f32 %v3642, %v3750
      %v3802 = vadd.f32 %v3643, %v3753
      %v3803 = vadd.f32 %v3644, %v3756
      %v3804 = vadd.f32 %v3645, %v3759
      %v3805 = vadd.f32 %v3646, %v3762
      %v3806 = vadd.f32 %v3647, %v3765
      %v3807 = vadd.f32 %v3648, %v3768
      %v3808 = vadd.f32 %v3649, %v3771
      %v3809 = vadd.f32 %v3650, %v3774
      %v3810 = vadd.f32 %v3651, %v3777
      %s3811 = scalar_lea.vmem %s2, 24
      %v3812 = vld [vmem:[%s3811] sm:$0xf]
      %v3814 = vsel %vm204, %v2548, 0
      %v3817 = vsel %vm204, %v2549, 0
      %v3820 = vsel %vm565, %v3812, 0
      %3822 = vmatpush.msra.mxu0 0.0
      %3823 = vmatpush.msra.mxu0 0.0
      %3824 = vmatpush.msra.mxu0 0.0
      %3825 = vmatpush.msra.mxu0 0.0
      %3826 = vmatpush.msra.mxu0 0.0
      %3827 = vmatpush.msra.mxu0 0.0
      %3828 = vmatpush.msra.mxu0 0.0
      %3829 = vmatpush.msra.mxu0 0.0
      %3830 = vmatpush.msra.mxu0 0.0
      %3831 = vmatpush.msra.mxu0 0.0
      %3832 = vmatpush.msra.mxu0 0.0
      %3833 = vmatpush.msra.mxu0 0.0
      %3834 = vmatpush.msra.mxu0 0.0
      %3835 = vmatpush.msra.mxu0 0.0
      %3836 = vmatpush.msra.mxu0 0.0
      %3837 = vmatpush.msra.mxu0 %v3820
      %3838 = vmatmul.f32.gmra.mxu0 %v2870
      %v3839 = vpop.f32.mrf.mxu0
      %v3840 = vadd.f32 0.0, %v3839
      %3841 = vmatmul.f32.gmra.mxu0 %v2872
      %v3842 = vpop.f32.mrf.mxu0
      %v3843 = vadd.f32 0.0, %v3842
      %3844 = vmatmul.f32.gmra.mxu0 %v2874
      %v3845 = vpop.f32.mrf.mxu0
      %v3846 = vadd.f32 0.0, %v3845
      %3847 = vmatmul.f32.gmra.mxu0 %v2876
      %v3848 = vpop.f32.mrf.mxu0
      %v3849 = vadd.f32 0.0, %v3848
      %3850 = vmatmul.f32.gmra.mxu0 %v2878
      %v3851 = vpop.f32.mrf.mxu0
      %v3852 = vadd.f32 0.0, %v3851
      %3853 = vmatmul.f32.gmra.mxu0 %v2880
      %v3854 = vpop.f32.mrf.mxu0
      %v3855 = vadd.f32 0.0, %v3854
      %3856 = vmatmul.f32.gmra.mxu0 %v2882
      %v3857 = vpop.f32.mrf.mxu0
      %v3858 = vadd.f32 0.0, %v3857
      %3859 = vmatmul.f32.gmra.mxu0 %v2884
      %v3860 = vpop.f32.mrf.mxu0
      %v3861 = vadd.f32 0.0, %v3860
      %3862 = vmatmul.f32.gmra.mxu0 %v2886
      %v3863 = vpop.f32.mrf.mxu0
      %v3864 = vadd.f32 0.0, %v3863
      %3865 = vmatmul.f32.gmra.mxu0 %v2888
      %v3866 = vpop.f32.mrf.mxu0
      %v3867 = vadd.f32 0.0, %v3866
      %3868 = vmatmul.f32.gmra.mxu0 %v2890
      %v3869 = vpop.f32.mrf.mxu0
      %v3870 = vadd.f32 0.0, %v3869
      %3871 = vmatmul.f32.gmra.mxu0 %v2892
      %v3872 = vpop.f32.mrf.mxu0
      %v3873 = vadd.f32 0.0, %v3872
      %3874 = vmatmul.f32.gmra.mxu0 %v2894
      %v3875 = vpop.f32.mrf.mxu0
      %v3876 = vadd.f32 0.0, %v3875
      %3877 = vmatmul.f32.gmra.mxu0 %v2896
      %v3878 = vpop.f32.mrf.mxu0
      %v3879 = vadd.f32 0.0, %v3878
      %3880 = vmatmul.f32.gmra.mxu0 %v2898
      %v3881 = vpop.f32.mrf.mxu0
      %v3882 = vadd.f32 0.0, %v3881
      %3883 = vmatmul.f32.gmra.mxu0 %v2900
      %v3884 = vpop.f32.mrf.mxu0
      %v3885 = vadd.f32 0.0, %v3884
      %3886 = vmatmul.f32.gmra.mxu0 %v2902
      %v3887 = vpop.f32.mrf.mxu0
      %v3888 = vadd.f32 0.0, %v3887
      %3889 = vmatmul.f32.gmra.mxu0 %v2904
      %v3890 = vpop.f32.mrf.mxu0
      %v3891 = vadd.f32 0.0, %v3890
      %3892 = vmatmul.f32.gmra.mxu0 %v2906
      %v3893 = vpop.f32.mrf.mxu0
      %v3894 = vadd.f32 0.0, %v3893
      %3895 = vmatmul.f32.gmra.mxu0 %v2908
      %v3896 = vpop.f32.mrf.mxu0
      %v3897 = vadd.f32 0.0, %v3896
      %3898 = vmatmul.f32.gmra.mxu0 %v2910
      %v3899 = vpop.f32.mrf.mxu0
      %v3900 = vadd.f32 0.0, %v3899
      %3901 = vmatmul.f32.gmra.mxu0 %v2912
      %v3902 = vpop.f32.mrf.mxu0
      %v3903 = vadd.f32 0.0, %v3902
      %3904 = vmatmul.f32.gmra.mxu0 %v2914
      %v3905 = vpop.f32.mrf.mxu0
      %v3906 = vadd.f32 0.0, %v3905
      %3907 = vmatmul.f32.gmra.mxu0 %v2916
      %v3908 = vpop.f32.mrf.mxu0
      %v3909 = vadd.f32 0.0, %v3908
      %3910 = vmatmul.f32.gmra.mxu0 %v2918
      %v3911 = vpop.f32.mrf.mxu0
      %v3912 = vadd.f32 0.0, %v3911
      %3913 = vmatmul.f32.gmra.mxu0 %v2920
      %v3914 = vpop.f32.mrf.mxu0
      %v3915 = vadd.f32 0.0, %v3914
      %3916 = vmatmul.f32.gmra.mxu0 %v2922
      %v3917 = vpop.f32.mrf.mxu0
      %v3918 = vadd.f32 0.0, %v3917
      %3919 = vmatmul.f32.gmra.mxu0 %v2924
      %v3920 = vpop.f32.mrf.mxu0
      %v3921 = vadd.f32 0.0, %v3920
      %3922 = vmatmul.f32.gmra.mxu0 %v3339
      %v3923 = vpop.f32.mrf.mxu0
      %v3924 = vadd.f32 0.0, %v3923
      %3925 = vmatmul.f32.gmra.mxu0 %v3342
      %v3926 = vpop.f32.mrf.mxu0
      %v3927 = vadd.f32 0.0, %v3926
      %3928 = vmatmul.f32.gmra.mxu0 %v3814
      %v3929 = vpop.f32.mrf.mxu0
      %v3930 = vadd.f32 0.0, %v3929
      %3931 = vmatmul.f32.gmra.mxu0 %v3817
      %v3932 = vpop.f32.mrf.mxu0
      %v3933 = vadd.f32 0.0, %v3932
      %3934 = vdwg.mxu0
      %v3935 = vadd.f32 %v3779, %v3840
      %v3936 = vadd.f32 %v3780, %v3843
      %v3937 = vadd.f32 %v3781, %v3846
      %v3938 = vadd.f32 %v3782, %v3849
      %v3939 = vadd.f32 %v3783, %v3852
      %v3940 = vadd.f32 %v3784, %v3855
      %v3941 = vadd.f32 %v3785, %v3858
      %v3942 = vadd.f32 %v3786, %v3861
      %v3943 = vadd.f32 %v3787, %v3864
      %v3944 = vadd.f32 %v3788, %v3867
      %v3945 = vadd.f32 %v3789, %v3870
      %v3946 = vadd.f32 %v3790, %v3873
      %v3947 = vadd.f32 %v3791, %v3876
      %v3948 = vadd.f32 %v3792, %v3879
      %v3949 = vadd.f32 %v3793, %v3882
      %v3950 = vadd.f32 %v3794, %v3885
      %v3951 = vadd.f32 %v3795, %v3888
      %v3952 = vadd.f32 %v3796, %v3891
      %v3953 = vadd.f32 %v3797, %v3894
      %v3954 = vadd.f32 %v3798, %v3897
      %v3955 = vadd.f32 %v3799, %v3900
      %v3956 = vadd.f32 %v3800, %v3903
      %v3957 = vadd.f32 %v3801, %v3906
      %v3958 = vadd.f32 %v3802, %v3909
      %v3959 = vadd.f32 %v3803, %v3912
      %v3960 = vadd.f32 %v3804, %v3915
      %v3961 = vadd.f32 %v3805, %v3918
      %v3962 = vadd.f32 %v3806, %v3921
      %v3963 = vadd.f32 %v3807, %v3924
      %v3964 = vadd.f32 %v3808, %v3927
      %v3965 = vadd.f32 %v3809, %v3930
      %v3966 = vadd.f32 %v3810, %v3933
      %v3968 = vrot.slane %v2548, 1
      %v3969 = vrot.slane %v2549, 1
      %v3970 = vsel %vm418, %v3968, %v3969
      %v3971 = vrot.slane %v2550, 1
      %v3972 = vsel %vm418, %v3969, %v3971
      %s3973 = scalar_lea.vmem %s2, 28
      %v3974 = vld [vmem:[%s3973] sm:$0xf]
      %v3975 = vsel %vm204, %v3970, 0
      %v3977 = vsel %vm204, %v3972, 0
      %v3980 = vsel %vm565, %v3974, 0
      %3982 = vmatpush.msra.mxu0 0.0
      %3983 = vmatpush.msra.mxu0 0.0
      %3984 = vmatpush.msra.mxu0 0.0
      %3985 = vmatpush.msra.mxu0 0.0
      %3986 = vmatpush.msra.mxu0 0.0
      %3987 = vmatpush.msra.mxu0 0.0
      %3988 = vmatpush.msra.mxu0 0.0
      %3989 = vmatpush.msra.mxu0 0.0
      %3990 = vmatpush.msra.mxu0 0.0
      %3991 = vmatpush.msra.mxu0 0.0
      %3992 = vmatpush.msra.mxu0 0.0
      %3993 = vmatpush.msra.mxu0 0.0
      %3994 = vmatpush.msra.mxu0 0.0
      %3995 = vmatpush.msra.mxu0 0.0
      %3996 = vmatpush.msra.mxu0 0.0
      %3997 = vmatpush.msra.mxu0 %v3980
      %3998 = vmatmul.f32.gmra.mxu0 %v2690
      %v3999 = vpop.f32.mrf.mxu0
      %v4000 = vadd.f32 0.0, %v3999
      %4001 = vmatmul.f32.gmra.mxu0 %v2692
      %v4002 = vpop.f32.mrf.mxu0
      %v4003 = vadd.f32 0.0, %v4002
      %4004 = vmatmul.f32.gmra.mxu0 %v2694
      %v4005 = vpop.f32.mrf.mxu0
      %v4006 = vadd.f32 0.0, %v4005
      %4007 = vmatmul.f32.gmra.mxu0 %v2696
      %v4008 = vpop.f32.mrf.mxu0
      %v4009 = vadd.f32 0.0, %v4008
      %4010 = vmatmul.f32.gmra.mxu0 %v2698
      %v4011 = vpop.f32.mrf.mxu0
      %v4012 = vadd.f32 0.0, %v4011
      %4013 = vmatmul.f32.gmra.mxu0 %v2700
      %v4014 = vpop.f32.mrf.mxu0
      %v4015 = vadd.f32 0.0, %v4014
      %4016 = vmatmul.f32.gmra.mxu0 %v2702
      %v4017 = vpop.f32.mrf.mxu0
      %v4018 = vadd.f32 0.0, %v4017
      %4019 = vmatmul.f32.gmra.mxu0 %v2704
      %v4020 = vpop.f32.mrf.mxu0
      %v4021 = vadd.f32 0.0, %v4020
      %4022 = vmatmul.f32.gmra.mxu0 %v2706
      %v4023 = vpop.f32.mrf.mxu0
      %v4024 = vadd.f32 0.0, %v4023
      %4025 = vmatmul.f32.gmra.mxu0 %v2708
      %v4026 = vpop.f32.mrf.mxu0
      %v4027 = vadd.f32 0.0, %v4026
      %4028 = vmatmul.f32.gmra.mxu0 %v2710
      %v4029 = vpop.f32.mrf.mxu0
      %v4030 = vadd.f32 0.0, %v4029
      %4031 = vmatmul.f32.gmra.mxu0 %v2712
      %v4032 = vpop.f32.mrf.mxu0
      %v4033 = vadd.f32 0.0, %v4032
      %4034 = vmatmul.f32.gmra.mxu0 %v2714
      %v4035 = vpop.f32.mrf.mxu0
      %v4036 = vadd.f32 0.0, %v4035
      %4037 = vmatmul.f32.gmra.mxu0 %v2716
      %v4038 = vpop.f32.mrf.mxu0
      %v4039 = vadd.f32 0.0, %v4038
      %4040 = vmatmul.f32.gmra.mxu0 %v2718
      %v4041 = vpop.f32.mrf.mxu0
      %v4042 = vadd.f32 0.0, %v4041
      %4043 = vmatmul.f32.gmra.mxu0 %v2720
      %v4044 = vpop.f32.mrf.mxu0
      %v4045 = vadd.f32 0.0, %v4044
      %4046 = vmatmul.f32.gmra.mxu0 %v2722
      %v4047 = vpop.f32.mrf.mxu0
      %v4048 = vadd.f32 0.0, %v4047
      %4049 = vmatmul.f32.gmra.mxu0 %v2724
      %v4050 = vpop.f32.mrf.mxu0
      %v4051 = vadd.f32 0.0, %v4050
      %4052 = vmatmul.f32.gmra.mxu0 %v2726
      %v4053 = vpop.f32.mrf.mxu0
      %v4054 = vadd.f32 0.0, %v4053
      %4055 = vmatmul.f32.gmra.mxu0 %v2728
      %v4056 = vpop.f32.mrf.mxu0
      %v4057 = vadd.f32 0.0, %v4056
      %4058 = vmatmul.f32.gmra.mxu0 %v2730
      %v4059 = vpop.f32.mrf.mxu0
      %v4060 = vadd.f32 0.0, %v4059
      %4061 = vmatmul.f32.gmra.mxu0 %v2732
      %v4062 = vpop.f32.mrf.mxu0
      %v4063 = vadd.f32 0.0, %v4062
      %4064 = vmatmul.f32.gmra.mxu0 %v2734
      %v4065 = vpop.f32.mrf.mxu0
      %v4066 = vadd.f32 0.0, %v4065
      %4067 = vmatmul.f32.gmra.mxu0 %v2736
      %v4068 = vpop.f32.mrf.mxu0
      %v4069 = vadd.f32 0.0, %v4068
      %4070 = vmatmul.f32.gmra.mxu0 %v2738
      %v4071 = vpop.f32.mrf.mxu0
      %v4072 = vadd.f32 0.0, %v4071
      %4073 = vmatmul.f32.gmra.mxu0 %v2740
      %v4074 = vpop.f32.mrf.mxu0
      %v4075 = vadd.f32 0.0, %v4074
      %4076 = vmatmul.f32.gmra.mxu0 %v2742
      %v4077 = vpop.f32.mrf.mxu0
      %v4078 = vadd.f32 0.0, %v4077
      %4079 = vmatmul.f32.gmra.mxu0 %v2744
      %v4080 = vpop.f32.mrf.mxu0
      %v4081 = vadd.f32 0.0, %v4080
      %4082 = vmatmul.f32.gmra.mxu0 %v3500
      %v4083 = vpop.f32.mrf.mxu0
      %v4084 = vadd.f32 0.0, %v4083
      %4085 = vmatmul.f32.gmra.mxu0 %v3502
      %v4086 = vpop.f32.mrf.mxu0
      %v4087 = vadd.f32 0.0, %v4086
      %4088 = vmatmul.f32.gmra.mxu0 %v3975
      %v4089 = vpop.f32.mrf.mxu0
      %v4090 = vadd.f32 0.0, %v4089
      %4091 = vmatmul.f32.gmra.mxu0 %v3977
      %v4092 = vpop.f32.mrf.mxu0
      %v4093 = vadd.f32 0.0, %v4092
      %4094 = vdwg.mxu0
      %v4095 = vadd.f32 %v3935, %v4000
      %v4096 = vadd.f32 %v3936, %v4003
      %v4097 = vadd.f32 %v3937, %v4006
      %v4098 = vadd.f32 %v3938, %v4009
      %v4099 = vadd.f32 %v3939, %v4012
      %v4100 = vadd.f32 %v3940, %v4015
      %v4101 = vadd.f32 %v3941, %v4018
      %v4102 = vadd.f32 %v3942, %v4021
      %v4103 = vadd.f32 %v3943, %v4024
      %v4104 = vadd.f32 %v3944, %v4027
      %v4105 = vadd.f32 %v3945, %v4030
      %v4106 = vadd.f32 %v3946, %v4033
      %v4107 = vadd.f32 %v3947, %v4036
      %v4108 = vadd.f32 %v3948, %v4039
      %v4109 = vadd.f32 %v3949, %v4042
      %v4110 = vadd.f32 %v3950, %v4045
      %v4111 = vadd.f32 %v3951, %v4048
      %v4112 = vadd.f32 %v3952, %v4051
      %v4113 = vadd.f32 %v3953, %v4054
      %v4114 = vadd.f32 %v3954, %v4057
      %v4115 = vadd.f32 %v3955, %v4060
      %v4116 = vadd.f32 %v3956, %v4063
      %v4117 = vadd.f32 %v3957, %v4066
      %v4118 = vadd.f32 %v3958, %v4069
      %v4119 = vadd.f32 %v3959, %v4072
      %v4120 = vadd.f32 %v3960, %v4075
      %v4121 = vadd.f32 %v3961, %v4078
      %v4122 = vadd.f32 %v3962, %v4081
      %v4123 = vadd.f32 %v3963, %v4084
      %v4124 = vadd.f32 %v3964, %v4087
      %v4125 = vadd.f32 %v3965, %v4090
      %v4126 = vadd.f32 %v3966, %v4093
      %v4127 = vrot.slane %v2548, 2
      %v4128 = vrot.slane %v2549, 2
      %v4129 = vsel %vm862, %v4127, %v4128
      %v4130 = vrot.slane %v2550, 2
      %v4131 = vsel %vm862, %v4128, %v4130
      %s4132 = scalar_lea.vmem %s2, 32
      %v4133 = vld [vmem:[%s4132] sm:$0xf]
      %v4134 = vsel %vm204, %v4129, 0
      %v4136 = vsel %vm204, %v4131, 0
      %v4139 = vsel %vm565, %v4133, 0
      %4141 = vmatpush.msra.mxu0 0.0
      %4142 = vmatpush.msra.mxu0 0.0
      %4143 = vmatpush.msra.mxu0 0.0
      %4144 = vmatpush.msra.mxu0 0.0
      %4145 = vmatpush.msra.mxu0 0.0
      %4146 = vmatpush.msra.mxu0 0.0
      %4147 = vmatpush.msra.mxu0 0.0
      %4148 = vmatpush.msra.mxu0 0.0
      %4149 = vmatpush.msra.mxu0 0.0
      %4150 = vmatpush.msra.mxu0 0.0
      %4151 = vmatpush.msra.mxu0 0.0
      %4152 = vmatpush.msra.mxu0 0.0
      %4153 = vmatpush.msra.mxu0 0.0
      %4154 = vmatpush.msra.mxu0 0.0
      %4155 = vmatpush.msra.mxu0 0.0
      %4156 = vmatpush.msra.mxu0 %v4139
      %4157 = vmatmul.f32.gmra.mxu0 %v3132
      %v4158 = vpop.f32.mrf.mxu0
      %v4159 = vadd.f32 0.0, %v4158
      %4160 = vmatmul.f32.gmra.mxu0 %v3134
      %v4161 = vpop.f32.mrf.mxu0
      %v4162 = vadd.f32 0.0, %v4161
      %4163 = vmatmul.f32.gmra.mxu0 %v3136
      %v4164 = vpop.f32.mrf.mxu0
      %v4165 = vadd.f32 0.0, %v4164
      %4166 = vmatmul.f32.gmra.mxu0 %v3138
      %v4167 = vpop.f32.mrf.mxu0
      %v4168 = vadd.f32 0.0, %v4167
      %4169 = vmatmul.f32.gmra.mxu0 %v3140
      %v4170 = vpop.f32.mrf.mxu0
      %v4171 = vadd.f32 0.0, %v4170
      %4172 = vmatmul.f32.gmra.mxu0 %v3142
      %v4173 = vpop.f32.mrf.mxu0
      %v4174 = vadd.f32 0.0, %v4173
      %4175 = vmatmul.f32.gmra.mxu0 %v3144
      %v4176 = vpop.f32.mrf.mxu0
      %v4177 = vadd.f32 0.0, %v4176
      %4178 = vmatmul.f32.gmra.mxu0 %v3146
      %v4179 = vpop.f32.mrf.mxu0
      %v4180 = vadd.f32 0.0, %v4179
      %4181 = vmatmul.f32.gmra.mxu0 %v3148
      %v4182 = vpop.f32.mrf.mxu0
      %v4183 = vadd.f32 0.0, %v4182
      %4184 = vmatmul.f32.gmra.mxu0 %v3150
      %v4185 = vpop.f32.mrf.mxu0
      %v4186 = vadd.f32 0.0, %v4185
      %4187 = vmatmul.f32.gmra.mxu0 %v3152
      %v4188 = vpop.f32.mrf.mxu0
      %v4189 = vadd.f32 0.0, %v4188
      %4190 = vmatmul.f32.gmra.mxu0 %v3154
      %v4191 = vpop.f32.mrf.mxu0
      %v4192 = vadd.f32 0.0, %v4191
      %4193 = vmatmul.f32.gmra.mxu0 %v3156
      %v4194 = vpop.f32.mrf.mxu0
      %v4195 = vadd.f32 0.0, %v4194
      %4196 = vmatmul.f32.gmra.mxu0 %v3158
      %v4197 = vpop.f32.mrf.mxu0
      %v4198 = vadd.f32 0.0, %v4197
      %4199 = vmatmul.f32.gmra.mxu0 %v3160
      %v4200 = vpop.f32.mrf.mxu0
      %v4201 = vadd.f32 0.0, %v4200
      %4202 = vmatmul.f32.gmra.mxu0 %v3162
      %v4203 = vpop.f32.mrf.mxu0
      %v4204 = vadd.f32 0.0, %v4203
      %4205 = vmatmul.f32.gmra.mxu0 %v3164
      %v4206 = vpop.f32.mrf.mxu0
      %v4207 = vadd.f32 0.0, %v4206
      %4208 = vmatmul.f32.gmra.mxu0 %v3166
      %v4209 = vpop.f32.mrf.mxu0
      %v4210 = vadd.f32 0.0, %v4209
      %4211 = vmatmul.f32.gmra.mxu0 %v3168
      %v4212 = vpop.f32.mrf.mxu0
      %v4213 = vadd.f32 0.0, %v4212
      %4214 = vmatmul.f32.gmra.mxu0 %v3170
      %v4215 = vpop.f32.mrf.mxu0
      %v4216 = vadd.f32 0.0, %v4215
      %4217 = vmatmul.f32.gmra.mxu0 %v3172
      %v4218 = vpop.f32.mrf.mxu0
      %v4219 = vadd.f32 0.0, %v4218
      %4220 = vmatmul.f32.gmra.mxu0 %v3174
      %v4221 = vpop.f32.mrf.mxu0
      %v4222 = vadd.f32 0.0, %v4221
      %4223 = vmatmul.f32.gmra.mxu0 %v3176
      %v4224 = vpop.f32.mrf.mxu0
      %v4225 = vadd.f32 0.0, %v4224
      %4226 = vmatmul.f32.gmra.mxu0 %v3178
      %v4227 = vpop.f32.mrf.mxu0
      %v4228 = vadd.f32 0.0, %v4227
      %4229 = vmatmul.f32.gmra.mxu0 %v3180
      %v4230 = vpop.f32.mrf.mxu0
      %v4231 = vadd.f32 0.0, %v4230
      %4232 = vmatmul.f32.gmra.mxu0 %v3182
      %v4233 = vpop.f32.mrf.mxu0
      %v4234 = vadd.f32 0.0, %v4233
      %4235 = vmatmul.f32.gmra.mxu0 %v3184
      %v4236 = vpop.f32.mrf.mxu0
      %v4237 = vadd.f32 0.0, %v4236
      %4238 = vmatmul.f32.gmra.mxu0 %v3186
      %v4239 = vpop.f32.mrf.mxu0
      %v4240 = vadd.f32 0.0, %v4239
      %4241 = vmatmul.f32.gmra.mxu0 %v3659
      %v4242 = vpop.f32.mrf.mxu0
      %v4243 = vadd.f32 0.0, %v4242
      %4244 = vmatmul.f32.gmra.mxu0 %v3661
      %v4245 = vpop.f32.mrf.mxu0
      %v4246 = vadd.f32 0.0, %v4245
      %4247 = vmatmul.f32.gmra.mxu0 %v4134
      %v4248 = vpop.f32.mrf.mxu0
      %v4249 = vadd.f32 0.0, %v4248
      %4250 = vmatmul.f32.gmra.mxu0 %v4136
      %v4251 = vpop.f32.mrf.mxu0
      %v4252 = vadd.f32 0.0, %v4251
      %4253 = vdwg.mxu0
      %v4254 = vadd.f32 %v4095, %v4159
      %v4255 = vadd.f32 %v4096, %v4162
      %v4256 = vadd.f32 %v4097, %v4165
      %v4257 = vadd.f32 %v4098, %v4168
      %v4258 = vadd.f32 %v4099, %v4171
      %v4259 = vadd.f32 %v4100, %v4174
      %v4260 = vadd.f32 %v4101, %v4177
      %v4261 = vadd.f32 %v4102, %v4180
      %v4262 = vadd.f32 %v4103, %v4183
      %v4263 = vadd.f32 %v4104, %v4186
      %v4264 = vadd.f32 %v4105, %v4189
      %v4265 = vadd.f32 %v4106, %v4192
      %v4266 = vadd.f32 %v4107, %v4195
      %v4267 = vadd.f32 %v4108, %v4198
      %v4268 = vadd.f32 %v4109, %v4201
      %v4269 = vadd.f32 %v4110, %v4204
      %v4270 = vadd.f32 %v4111, %v4207
      %v4271 = vadd.f32 %v4112, %v4210
      %v4272 = vadd.f32 %v4113, %v4213
      %v4273 = vadd.f32 %v4114, %v4216
      %v4274 = vadd.f32 %v4115, %v4219
      %v4275 = vadd.f32 %v4116, %v4222
      %v4276 = vadd.f32 %v4117, %v4225
      %v4277 = vadd.f32 %v4118, %v4228
      %v4278 = vadd.f32 %v4119, %v4231
      %v4279 = vadd.f32 %v4120, %v4234
      %v4280 = vadd.f32 %v4121, %v4237
      %v4281 = vadd.f32 %v4122, %v4240
      %v4282 = vadd.f32 %v4123, %v4243
      %v4283 = vadd.f32 %v4124, %v4246
      %v4284 = vadd.f32 %v4125, %v4249
      %v4285 = vadd.f32 %v4126, %v4252
      %v4286 = vsel %vm204, %v4254, 0.0
      %v4287 = vsel %vm204, %v4255, 0.0
      %v4288 = vadd.f32 %v4286, %v4287
      %v4289 = vsel %vm204, %v4256, 0.0
      %v4290 = vadd.f32 %v4288, %v4289
      %v4291 = vsel %vm204, %v4257, 0.0
      %v4292 = vadd.f32 %v4290, %v4291
      %v4293 = vsel %vm204, %v4258, 0.0
      %v4294 = vadd.f32 %v4292, %v4293
      %v4295 = vsel %vm204, %v4259, 0.0
      %v4296 = vadd.f32 %v4294, %v4295
      %v4297 = vsel %vm204, %v4260, 0.0
      %v4298 = vadd.f32 %v4296, %v4297
      %v4299 = vsel %vm204, %v4261, 0.0
      %v4300 = vadd.f32 %v4298, %v4299
      %v4301 = vsel %vm204, %v4262, 0.0
      %v4302 = vadd.f32 %v4300, %v4301
      %v4303 = vsel %vm204, %v4263, 0.0
      %v4304 = vadd.f32 %v4302, %v4303
      %v4305 = vsel %vm204, %v4264, 0.0
      %v4306 = vadd.f32 %v4304, %v4305
      %v4307 = vsel %vm204, %v4265, 0.0
      %v4308 = vadd.f32 %v4306, %v4307
      %v4309 = vsel %vm204, %v4266, 0.0
      %v4310 = vadd.f32 %v4308, %v4309
      %v4311 = vsel %vm204, %v4267, 0.0
      %v4312 = vadd.f32 %v4310, %v4311
      %v4313 = vsel %vm204, %v4268, 0.0
      %v4314 = vadd.f32 %v4312, %v4313
      %v4315 = vsel %vm204, %v4269, 0.0
      %v4316 = vadd.f32 %v4314, %v4315
      %v4317 = vsel %vm204, %v4270, 0.0
      %v4318 = vadd.f32 %v4316, %v4317
      %v4319 = vsel %vm204, %v4271, 0.0
      %v4320 = vadd.f32 %v4318, %v4319
      %v4321 = vsel %vm204, %v4272, 0.0
      %v4322 = vadd.f32 %v4320, %v4321
      %v4323 = vsel %vm204, %v4273, 0.0
      %v4324 = vadd.f32 %v4322, %v4323
      %v4325 = vsel %vm204, %v4274, 0.0
      %v4326 = vadd.f32 %v4324, %v4325
      %v4327 = vsel %vm204, %v4275, 0.0
      %v4328 = vadd.f32 %v4326, %v4327
      %v4329 = vsel %vm204, %v4276, 0.0
      %v4330 = vadd.f32 %v4328, %v4329
      %v4331 = vsel %vm204, %v4277, 0.0
      %v4332 = vadd.f32 %v4330, %v4331
      %v4333 = vsel %vm204, %v4278, 0.0
      %v4334 = vadd.f32 %v4332, %v4333
      %v4335 = vsel %vm204, %v4279, 0.0
      %v4336 = vadd.f32 %v4334, %v4335
      %v4337 = vsel %vm204, %v4280, 0.0
      %v4338 = vadd.f32 %v4336, %v4337
      %v4339 = vsel %vm204, %v4281, 0.0
      %v4340 = vadd.f32 %v4338, %v4339
      %v4341 = vsel %vm204, %v4282, 0.0
      %v4342 = vadd.f32 %v4340, %v4341
      %v4343 = vsel %vm204, %v4283, 0.0
      %v4344 = vadd.f32 %v4342, %v4343
      %v4345 = vsel %vm204, %v4284, 0.0
      %v4346 = vadd.f32 %v4344, %v4345
      %v4347 = vsel %vm204, %v4285, 0.0
      %v4348 = vadd.f32 %v4346, %v4347
      %v4349 = vrot.slane %v4348, 4
      %v4350 = vadd.f32 %v4348, %v4349
      %v4351 = vrot.slane %v4350, 2
      %v4352 = vadd.f32 %v4350, %v4351
      %v4353 = vrot.slane %v4352, 1
      %v4354 = vadd.f32 %v4352, %v4353
      %v4355 = vmul.f32 %v4354, 0.00390625
      %v4356 = vmul.f32 %v4254, %v4254
      %v4357 = vmul.f32 %v4255, %v4255
      %v4358 = vmul.f32 %v4256, %v4256
      %v4359 = vmul.f32 %v4257, %v4257
      %v4360 = vmul.f32 %v4258, %v4258
      %v4361 = vmul.f32 %v4259, %v4259
      %v4362 = vmul.f32 %v4260, %v4260
      %v4363 = vmul.f32 %v4261, %v4261
      %v4364 = vmul.f32 %v4262, %v4262
      %v4365 = vmul.f32 %v4263, %v4263
      %v4366 = vmul.f32 %v4264, %v4264
      %v4367 = vmul.f32 %v4265, %v4265
      %v4368 = vmul.f32 %v4266, %v4266
      %v4369 = vmul.f32 %v4267, %v4267
      %v4370 = vmul.f32 %v4268, %v4268
      %v4371 = vmul.f32 %v4269, %v4269
      %v4372 = vmul.f32 %v4270, %v4270
      %v4373 = vmul.f32 %v4271, %v4271
      %v4374 = vmul.f32 %v4272, %v4272
      %v4375 = vmul.f32 %v4273, %v4273
      %v4376 = vmul.f32 %v4274, %v4274
      %v4377 = vmul.f32 %v4275, %v4275
      %v4378 = vmul.f32 %v4276, %v4276
      %v4379 = vmul.f32 %v4277, %v4277
      %v4380 = vmul.f32 %v4278, %v4278
      %v4381 = vmul.f32 %v4279, %v4279
      %v4382 = vmul.f32 %v4280, %v4280
      %v4383 = vmul.f32 %v4281, %v4281
      %v4384 = vmul.f32 %v4282, %v4282
      %v4385 = vmul.f32 %v4283, %v4283
      %v4386 = vmul.f32 %v4284, %v4284
      %v4387 = vmul.f32 %v4285, %v4285
      %v4388 = vsel %vm204, %v4356, 0.0
      %v4389 = vsel %vm204, %v4357, 0.0
      %v4390 = vadd.f32 %v4388, %v4389
      %v4391 = vsel %vm204, %v4358, 0.0
      %v4392 = vadd.f32 %v4390, %v4391
      %v4393 = vsel %vm204, %v4359, 0.0
      %v4394 = vadd.f32 %v4392, %v4393
      %v4395 = vsel %vm204, %v4360, 0.0
      %v4396 = vadd.f32 %v4394, %v4395
      %v4397 = vsel %vm204, %v4361, 0.0
      %v4398 = vadd.f32 %v4396, %v4397
      %v4399 = vsel %vm204, %v4362, 0.0
      %v4400 = vadd.f32 %v4398, %v4399
      %v4401 = vsel %vm204, %v4363, 0.0
      %v4402 = vadd.f32 %v4400, %v4401
      %v4403 = vsel %vm204, %v4364, 0.0
      %v4404 = vadd.f32 %v4402, %v4403
      %v4405 = vsel %vm204, %v4365, 0.0
      %v4406 = vadd.f32 %v4404, %v4405
      %v4407 = vsel %vm204, %v4366, 0.0
      %v4408 = vadd.f32 %v4406, %v4407
      %v4409 = vsel %vm204, %v4367, 0.0
      %v4410 = vadd.f32 %v4408, %v4409
      %v4411 = vsel %vm204, %v4368, 0.0
      %v4412 = vadd.f32 %v4410, %v4411
      %v4413 = vsel %vm204, %v4369, 0.0
      %v4414 = vadd.f32 %v4412, %v4413
      %v4415 = vsel %vm204, %v4370, 0.0
      %v4416 = vadd.f32 %v4414, %v4415
      %v4417 = vsel %vm204, %v4371, 0.0
      %v4418 = vadd.f32 %v4416, %v4417
      %v4419 = vsel %vm204, %v4372, 0.0
      %v4420 = vadd.f32 %v4418, %v4419
      %v4421 = vsel %vm204, %v4373, 0.0
      %v4422 = vadd.f32 %v4420, %v4421
      %v4423 = vsel %vm204, %v4374, 0.0
      %v4424 = vadd.f32 %v4422, %v4423
      %v4425 = vsel %vm204, %v4375, 0.0
      %v4426 = vadd.f32 %v4424, %v4425
      %v4427 = vsel %vm204, %v4376, 0.0
      %v4428 = vadd.f32 %v4426, %v4427
      %v4429 = vsel %vm204, %v4377, 0.0
      %v4430 = vadd.f32 %v4428, %v4429
      %v4431 = vsel %vm204, %v4378, 0.0
      %v4432 = vadd.f32 %v4430, %v4431
      %v4433 = vsel %vm204, %v4379, 0.0
      %v4434 = vadd.f32 %v4432, %v4433
      %v4435 = vsel %vm204, %v4380, 0.0
      %v4436 = vadd.f32 %v4434, %v4435
      %v4437 = vsel %vm204, %v4381, 0.0
      %v4438 = vadd.f32 %v4436, %v4437
      %v4439 = vsel %vm204, %v4382, 0.0
      %v4440 = vadd.f32 %v4438, %v4439
      %v4441 = vsel %vm204, %v4383, 0.0
      %v4442 = vadd.f32 %v4440, %v4441
      %v4443 = vsel %vm204, %v4384, 0.0
      %v4444 = vadd.f32 %v4442, %v4443
      %v4445 = vsel %vm204, %v4385, 0.0
      %v4446 = vadd.f32 %v4444, %v4445
      %v4447 = vsel %vm204, %v4386, 0.0
      %v4448 = vadd.f32 %v4446, %v4447
      %v4449 = vsel %vm204, %v4387, 0.0
      %v4450 = vadd.f32 %v4448, %v4449
      %v4451 = vrot.slane %v4450, 4
      %v4452 = vadd.f32 %v4450, %v4451
      %v4453 = vrot.slane %v4452, 2
      %v4454 = vadd.f32 %v4452, %v4453
      %v4455 = vrot.slane %v4454, 1
      %v4456 = vadd.f32 %v4454, %v4455
      %v4457 = vmul.f32 %v4456, 0.00390625
      %v4458 = vmul.f32 %v4355, %v4355
      %v4459 = vsub.f32 %v4457, %v4458
      %v4460 = vmax.f32 %v4459, 0.0
      %v4461 = vsub.f32 %v4254, %v4355
      %v4462 = vsub.f32 %v4255, %v4355
      %v4463 = vsub.f32 %v4256, %v4355
      %v4464 = vsub.f32 %v4257, %v4355
      %v4465 = vsub.f32 %v4258, %v4355
      %v4466 = vsub.f32 %v4259, %v4355
      %v4467 = vsub.f32 %v4260, %v4355
      %v4468 = vsub.f32 %v4261, %v4355
      %v4469 = vsub.f32 %v4262, %v4355
      %v4470 = vsub.f32 %v4263, %v4355
      %v4471 = vsub.f32 %v4264, %v4355
      %v4472 = vsub.f32 %v4265, %v4355
      %v4473 = vsub.f32 %v4266, %v4355
      %v4474 = vsub.f32 %v4267, %v4355
      %v4475 = vsub.f32 %v4268, %v4355
      %v4476 = vsub.f32 %v4269, %v4355
      %v4477 = vsub.f32 %v4270, %v4355
      %v4478 = vsub.f32 %v4271, %v4355
      %v4479 = vsub.f32 %v4272, %v4355
      %v4480 = vsub.f32 %v4273, %v4355
      %v4481 = vsub.f32 %v4274, %v4355
      %v4482 = vsub.f32 %v4275, %v4355
      %v4483 = vsub.f32 %v4276, %v4355
      %v4484 = vsub.f32 %v4277, %v4355
      %v4485 = vsub.f32 %v4278, %v4355
      %v4486 = vsub.f32 %v4279, %v4355
      %v4487 = vsub.f32 %v4280, %v4355
      %v4488 = vsub.f32 %v4281, %v4355
      %v4489 = vsub.f32 %v4282, %v4355
      %v4490 = vsub.f32 %v4283, %v4355
      %v4491 = vsub.f32 %v4284, %v4355
      %v4492 = vsub.f32 %v4285, %v4355
      %v4493 = vadd.f32 %v4460, 1e-05
      %v4494 = vrsqrt.pop %v4493
      %v4495 = vmul.f32 %v4494, %v4493
      %v4496 = vmul.f32 %v4495, %v4494
      %v4497 = vmul.f32 0.5, %v4496
      %v4498 = vsub.f32 1.5, %v4497
      %v4499 = vmul.f32 %v4494, %v4498
      %vm4500 = vweird.f32 %v4493
      %vm4501 = vweird.f32 %v4494
      %vm4502 = vmor %vm4500, %vm4501
      %v4503 = vsel %vm4502, %v4494, %v4499
      %v4504 = vmul.f32 %v4461, %v4503
      %v4505 = vmul.f32 %v4462, %v4503
      %v4506 = vmul.f32 %v4463, %v4503
      %v4507 = vmul.f32 %v4464, %v4503
      %v4508 = vmul.f32 %v4465, %v4503
      %v4509 = vmul.f32 %v4466, %v4503
      %v4510 = vmul.f32 %v4467, %v4503
      %v4511 = vmul.f32 %v4468, %v4503
      %v4512 = vmul.f32 %v4469, %v4503
      %v4513 = vmul.f32 %v4470, %v4503
      %v4514 = vmul.f32 %v4471, %v4503
      %v4515 = vmul.f32 %v4472, %v4503
      %v4516 = vmul.f32 %v4473, %v4503
      %v4517 = vmul.f32 %v4474, %v4503
      %v4518 = vmul.f32 %v4475, %v4503
      %v4519 = vmul.f32 %v4476, %v4503
      %v4520 = vmul.f32 %v4477, %v4503
      %v4521 = vmul.f32 %v4478, %v4503
      %v4522 = vmul.f32 %v4479, %v4503
      %v4523 = vmul.f32 %v4480, %v4503
      %v4524 = vmul.f32 %v4481, %v4503
      %v4525 = vmul.f32 %v4482, %v4503
      %v4526 = vmul.f32 %v4483, %v4503
      %v4527 = vmul.f32 %v4484, %v4503
      %v4528 = vmul.f32 %v4485, %v4503
      %v4529 = vmul.f32 %v4486, %v4503
      %v4530 = vmul.f32 %v4487, %v4503
      %v4531 = vmul.f32 %v4488, %v4503
      %v4532 = vmul.f32 %v4489, %v4503
      %v4533 = vmul.f32 %v4490, %v4503
      %v4534 = vmul.f32 %v4491, %v4503
      %v4535 = vmul.f32 %v4492, %v4503
      %v4536 = vadd.f32 %v4504, %v171
      %v4537 = vadd.f32 %v4505, %v172
      %v4538 = vadd.f32 %v4506, %v173
      %v4539 = vadd.f32 %v4507, %v174
      %v4540 = vadd.f32 %v4508, %v175
      %v4541 = vadd.f32 %v4509, %v176
      %v4542 = vadd.f32 %v4510, %v177
      %v4543 = vadd.f32 %v4511, %v178
      %v4544 = vadd.f32 %v4512, %v179
      %v4545 = vadd.f32 %v4513, %v180
      %v4546 = vadd.f32 %v4514, %v181
      %v4547 = vadd.f32 %v4515, %v182
      %v4548 = vadd.f32 %v4516, %v183
      %v4549 = vadd.f32 %v4517, %v184
      %v4550 = vadd.f32 %v4518, %v185
      %v4551 = vadd.f32 %v4519, %v186
      %v4552 = vadd.f32 %v4520, %v187
      %v4553 = vadd.f32 %v4521, %v188
      %v4554 = vadd.f32 %v4522, %v189
      %v4555 = vadd.f32 %v4523, %v190
      %v4556 = vadd.f32 %v4524, %v191
      %v4557 = vadd.f32 %v4525, %v192
      %v4558 = vadd.f32 %v4526, %v193
      %v4559 = vadd.f32 %v4527, %v194
      %v4560 = vadd.f32 %v4528, %v195
      %v4561 = vadd.f32 %v4529, %v196
      %v4562 = vadd.f32 %v4530, %v197
      %v4563 = vadd.f32 %v4531, %v198
      %v4564 = vadd.f32 %v4532, %v199
      %v4565 = vadd.f32 %v4533, %v200
      %v4566 = vadd.f32 %v4534, %v201
      %v4567 = vadd.f32 %v4535, %v202
      %4568 = vst.msk [vmem:[%s170] sm:$0xff] %vm204, %v4536
      %4569 = vst.msk [vmem:[%s170 + $0x8] sm:$0xff] %vm204, %v4537
      %4570 = vst.msk [vmem:[%s170 + $0x10] sm:$0xff] %vm204, %v4538
      %4571 = vst.msk [vmem:[%s170 + $0x18] sm:$0xff] %vm204, %v4539
      %4572 = vst.msk [vmem:[%s170 + $0x20] sm:$0xff] %vm204, %v4540
      %4573 = vst.msk [vmem:[%s170 + $0x28] sm:$0xff] %vm204, %v4541
      %4574 = vst.msk [vmem:[%s170 + $0x30] sm:$0xff] %vm204, %v4542
      %4575 = vst.msk [vmem:[%s170 + $0x38] sm:$0xff] %vm204, %v4543
      %4576 = vst.msk [vmem:[%s170 + $0x40] sm:$0xff] %vm204, %v4544
      %4577 = vst.msk [vmem:[%s170 + $0x48] sm:$0xff] %vm204, %v4545
      %4578 = vst.msk [vmem:[%s170 + $0x50] sm:$0xff] %vm204, %v4546
      %4579 = vst.msk [vmem:[%s170 + $0x58] sm:$0xff] %vm204, %v4547
      %4580 = vst.msk [vmem:[%s170 + $0x60] sm:$0xff] %vm204, %v4548
      %4581 = vst.msk [vmem:[%s170 + $0x68] sm:$0xff] %vm204, %v4549
      %4582 = vst.msk [vmem:[%s170 + $0x70] sm:$0xff] %vm204, %v4550
      %4583 = vst.msk [vmem:[%s170 + $0x78] sm:$0xff] %vm204, %v4551
      %4584 = vst.msk [vmem:[%s170 + $0x80] sm:$0xff] %vm204, %v4552
      %4585 = vst.msk [vmem:[%s170 + $0x88] sm:$0xff] %vm204, %v4553
      %4586 = vst.msk [vmem:[%s170 + $0x90] sm:$0xff] %vm204, %v4554
      %4587 = vst.msk [vmem:[%s170 + $0x98] sm:$0xff] %vm204, %v4555
      %4588 = vst.msk [vmem:[%s170 + $0xa0] sm:$0xff] %vm204, %v4556
      %4589 = vst.msk [vmem:[%s170 + $0xa8] sm:$0xff] %vm204, %v4557
      %4590 = vst.msk [vmem:[%s170 + $0xb0] sm:$0xff] %vm204, %v4558
      %4591 = vst.msk [vmem:[%s170 + $0xb8] sm:$0xff] %vm204, %v4559
      %4592 = vst.msk [vmem:[%s170 + $0xc0] sm:$0xff] %vm204, %v4560
      %4593 = vst.msk [vmem:[%s170 + $0xc8] sm:$0xff] %vm204, %v4561
      %4594 = vst.msk [vmem:[%s170 + $0xd0] sm:$0xff] %vm204, %v4562
      %4595 = vst.msk [vmem:[%s170 + $0xd8] sm:$0xff] %vm204, %v4563
      %4596 = vst.msk [vmem:[%s170 + $0xe0] sm:$0xff] %vm204, %v4564
      %4597 = vst.msk [vmem:[%s170 + $0xe8] sm:$0xff] %vm204, %v4565
      %4598 = vst.msk [vmem:[%s170 + $0xf0] sm:$0xff] %vm204, %v4566
      %4599 = vst.msk [vmem:[%s170 + $0xf8] sm:$0xff] %vm204, %v4567
      %p4600 = scmp.lt.s32.totalorder %s14, 1
      %s4601 = scalar_select %p4600, %s14, 1
      %s4602 = smul.addr %s4601, 32
      %s4603 = smul.addr %s4602, 8
      %s4604 = scalar_lea.vmem %s3, %s4603
      // Predicated region
      $region33: #{tpu_custom_call.1} parent=31 // pred_check
        %p4605 = pneg %p100
      $region34: #{tpu_custom_call.1} parent=31 // pred_check_branch
        %4607 = sbr.rel (%p4605) target = $region36
      $region35: #{tpu_custom_call.1} parent=31 // pred_region
        _
      $region36: #{tpu_custom_call.1} parent=31 // pred_fallthru
        _
    $region32: #{tpu_custom_call.1} parent=5 // pred_fallthru
      _
    %p4608 = scmp.le.s32.totalorder 2, %s9
    // Predicated region
    $region37: #{tpu_custom_call.1} parent=5 // pred_check
      %p4609 = pneg %p4608
    $region38: #{tpu_custom_call.1} parent=5 // pred_check_branch
      %4611 = sbr.rel (%p4609) target = $region40
    $region39: #{tpu_custom_call.1} parent=5 // pred_region
      %s4612 = ssub.s32 %s9, 2
      // Predicated region
      $region41: #{tpu_custom_call.1} parent=39 // pred_check
        %p4613 = pneg %p106
      $region42: #{tpu_custom_call.1} parent=39 // pred_check_branch
        %4615 = sbr.rel (%p4613) target = $region44
      $region43: #{tpu_custom_call.1} parent=39 // pred_region
        %p4616 = scmp.lt.s32.totalorder %s15, 1
        %s4617 = scalar_select %p4616, %s15, 1
        %s4618 = smul.addr %s4617, 32
        %s4619 = smul.addr %s4618, 8
        %s4620 = scalar_lea.vmem %s3, %s4619
      $region44: #{tpu_custom_call.1} parent=39 // pred_fallthru
        _
    $region40: #{tpu_custom_call.1} parent=5 // pred_fallthru
      _
  $region6: #{tpu_custom_call.1} parent=0 // loop_footer
    %s13 = sadd.s32 1, %s9
  $region7: #{tpu_custom_call.1} parent=0 // loop_footer_branch
    %8 = sbr.rel target = $region3
  $region8: #{tpu_custom_call.1} parent=0 // loop_exit
    _

</llo_original>
